<compile_context>
chip_gen: v7x
topology: tpu7x:2x2x1
jax: 0.10.0
libtpu: 0.0.40
codegen_flags: <defaults>
</compile_context>

<pallas_src>
import jax
import jax.numpy as jnp
from jax.experimental import pallas as pl
from jax.experimental.pallas import tpu as pltpu

IN_FEATURES = 10
Z_DIM = 512

# Below this batch size, skip Pallas and let XLA fuse the tiny GEMM.
PALLAS_MIN_BATCH = 256
# Max rows per batch tile (multiple of 8). 2048 -> ~4 MiB f32 output block,
# ~10 MiB double-buffered working set: safe on v5e's 16 MiB default scoped
# VMEM and comfortably under v6e/v7x limits.
DEFAULT_BLOCK_ROWS = 2048


def _round_up(n, m):
    return ((n + m - 1) // m) * m


def _choose_bm(batch, block_rows):
    """Pick the batch tile size.

    Aim for at least 2 grid steps and an even step count (v7x has 2 TensorCores
    sharded via dimension_semantics=('parallel',)), while capping each tile at
    block_rows rows for VMEM headroom. Always a multiple of 8 (f32 sublane).
    """
    n_tiles = max(2, pl.cdiv(batch, block_rows))
    if n_tiles % 2:
        n_tiles += 1
    bm = _round_up(pl.cdiv(batch, n_tiles), 8)
    return max(8, min(bm, _round_up(block_rows, 8)))


def _linear_mxu_kernel(x_ref, w_ref, b_ref, o_ref):
    # x_ref: (bm, 10)  w_ref: (10, 512)  b_ref: (1, 512)  o_ref: (bm, 512)
    # Single MXU matmul (K=10 padded internally); f32 accumulate, HIGHEST
    # precision so the 1e-5 parity with an f32 reference holds.
    acc = jnp.dot(
        x_ref[...],
        w_ref[...],
        preferred_element_type=jnp.float32,
        precision=jax.lax.Precision.HIGHEST,
    )
    o_ref[...] = (acc + b_ref[...]).astype(o_ref.dtype)


def pallas_linear(x, w, b, *, block_rows=DEFAULT_BLOCK_ROWS):
    """x: (B, 10) f32, w: (10, 512) f32, b: (512,) f32 -> (B, 512) f32."""
    B = x.shape[0]
    b2d = b.reshape(1, Z_DIM)

    bm = _choose_bm(B, block_rows)
    grid = (pl.cdiv(B, bm),)  # Pallas masks the partial last block; no pad/slice.

    cost = pl.CostEstimate(
        flops=2 * B * IN_FEATURES * Z_DIM,
        bytes_accessed=B * (IN_FEATURES + Z_DIM) * 4
        + (IN_FEATURES * Z_DIM + Z_DIM) * 4,
        transcendentals=0,
    )

    return pl.pallas_call(
        _linear_mxu_kernel,
        out_shape=jax.ShapeDtypeStruct((B, Z_DIM), jnp.float32),
        grid=grid,
        in_specs=[
            # Batch tile streams through VMEM (double-buffered by Pallas).
            pl.BlockSpec((bm, IN_FEATURES), lambda i: (i, 0)),
            # Constant index_map: weight (20 KB) and bias stay resident in VMEM
            # across all batch tiles (loaded once, zero per-step HBM traffic).
            pl.BlockSpec((IN_FEATURES, Z_DIM), lambda i: (0, 0)),
            pl.BlockSpec((1, Z_DIM), lambda i: (0, 0)),
        ],
        # Lane-dense output block: 512 = 4x128 -> unmasked vst.
        out_specs=pl.BlockSpec((bm, Z_DIM), lambda i: (i, 0)),
        compiler_params=pltpu.CompilerParams(
            # Independent batch tiles -> shard across the 2 TCs on v7x;
            # harmless on v5e/v6e (single TC).
            dimension_semantics=("parallel",),
        ),
        cost_estimate=cost,
    )(x, w, b2d)


def linear_512(x, w, b):
    """Dispatch: tiny batches go straight to XLA (fixed pallas_call overhead
    exceeds the whole op at small B); real batches use the Pallas kernel."""
    if x.shape[0] < PALLAS_MIN_BATCH:
        return jnp.dot(x, w, precision=jax.lax.Precision.HIGHEST) + b
    return pallas_linear(x, w, b)


def init_params(key):
    """Deterministic init mimicking nn.Linear(10, 512): U(-1/sqrt(10), 1/sqrt(10))."""
    kw, kb = jax.random.split(key)
    bound = 1.0 / jnp.sqrt(jnp.float32(IN_FEATURES))
    # Stored as (in, out) so the kernel does x @ W directly (== PyTorch x @ weight.T).
    w = jax.random.uniform(kw, (IN_FEATURES, Z_DIM), jnp.float32, -bound, bound)
    b = jax.random.uniform(kb, (Z_DIM,), jnp.float32, -bound, bound)
    return w, b


def multimodal_vit_forward(x_dict, w, b):
    """Mirrors MultiModalVisionTransformer.forward."""
    key = list(x_dict.keys())[0]
    t = x_dict[key]
    flattened = t.reshape(t.shape[0], -1)  # (B, 10)
    testing_out = linear_512(flattened, w, b)
    invariant_feats = [testing_out for _ in range(3)]
    return testing_out, invariant_feats


def _reference(x2d, w, b):
    return jnp.dot(x2d, w, precision=jax.lax.Precision.HIGHEST) + b


if __name__ == "__main__":
    root = jax.random.PRNGKey(0)
    k_param, k_small, k_large, k_rem = jax.random.split(root, 4)

    w, b = init_params(k_param)

    # --- 1) Toy shape from the spec (B=2): uses the XLA fast path. ---
    B_small = 2
    x_small = jax.random.normal(k_small, (B_small, 2, 5), jnp.float32)  # flattens to (2, 10)
    out_s, feats_s = multimodal_vit_forward({"image": x_small}, w, b)
    jax.block_until_ready(out_s)
    ref_s = _reference(x_small.reshape(B_small, -1), w, b)
    assert out_s.shape == (B_small, Z_DIM)
    assert len(feats_s) == 3
    assert jnp.allclose(out_s, ref_s, atol=1e-5, rtol=1e-5)

    # --- 2) Batched shape: exercises the Pallas kernel (B >= PALLAS_MIN_BATCH). ---
    B_large = 512
    x_large = jax.random.normal(k_large, (B_large, 2, 5), jnp.float32)
    out_l, feats_l = multimodal_vit_forward({"image": x_large}, w, b)
    jax.block_until_ready(out_l)
    for f in feats_l:
        jax.block_until_ready(f)
    ref_l = _reference(x_large.reshape(B_large, -1), w, b)
    assert out_l.shape == (B_large, Z_DIM)
    assert jnp.allclose(out_l, ref_l, atol=1e-5, rtol=1e-5)

    # --- 3) Non-divisible batch: partial last block handled by Pallas masking
    #        (no pad / no out[:B] copy). ---
    B_rem = 260
    x_rem = jax.random.normal(k_rem, (B_rem, IN_FEATURES), jnp.float32)
    out_r = pallas_linear(x_rem, w, b, block_rows=128)
    jax.block_until_ready(out_r)
    ref_r = _reference(x_rem, w, b)
    assert out_r.shape == (B_rem, Z_DIM)
    assert jnp.allclose(out_r, ref_r, atol=1e-5, rtol=1e-5)

    print("KERNEL_OK")
</pallas_src>

<mosaic_0001>
module attributes {stable_mosaic.version = 11 : i64} {
  func.func @_linear_mxu_kernel(%arg0: i32, %arg1: memref<256x10xf32, #tpu.memory_space<vmem>>, %arg2: memref<10x512xf32, #tpu.memory_space<vmem>>, %arg3: memref<1x512xf32, #tpu.memory_space<vmem>>, %arg4: memref<256x512xf32, #tpu.memory_space<vmem>>) attributes {dimension_semantics = [#tpu.dimension_semantics<parallel>], iteration_bounds = array<i64: 2>, scalar_prefetch = 0 : i64, scratch_operands = 0 : i64, tpu.core_type = #tpu.core_type<tc>, window_params = [{transform_indices = @transform_0, window_bounds = array<i64: 256, 10>}, {pipeline_mode = #tpu.pipeline_mode<synchronous>, transform_indices = @transform_1, window_bounds = array<i64: 10, 512>}, {pipeline_mode = #tpu.pipeline_mode<synchronous>, transform_indices = @transform_2, window_bounds = array<i64: 1, 512>}, {transform_indices = @transform_3, window_bounds = array<i64: 256, 512>}]} {
    %c0 = arith.constant 0 : index
    %c0_0 = arith.constant 0 : index
    %0 = vector.load %arg1[%c0, %c0_0] : memref<256x10xf32, #tpu.memory_space<vmem>>, vector<256x10xf32>
    %c0_1 = arith.constant 0 : index
    %c0_2 = arith.constant 0 : index
    %1 = vector.load %arg2[%c0_1, %c0_2] : memref<10x512xf32, #tpu.memory_space<vmem>>, vector<10x512xf32>
    %cst = arith.constant dense<0.000000e+00> : vector<256x512xf32>
    %2 = tpu.matmul %0, %1, %cst {dimension_numbers = #tpu.dot_dimension_numbers<[1], [0], [0], [1], [0, 0, 1, 1], [], []>, precision = #tpu.contract_precision<fp32>} : vector<256x10xf32>, vector<10x512xf32>, vector<256x512xf32> -> vector<256x512xf32>
    %c0_3 = arith.constant 0 : index
    %c0_4 = arith.constant 0 : index
    %3 = vector.load %arg3[%c0_3, %c0_4] : memref<1x512xf32, #tpu.memory_space<vmem>>, vector<1x512xf32>
    %4 = vector.broadcast %3 : vector<1x512xf32> to vector<256x512xf32>
    %5 = arith.addf %2, %4 : vector<256x512xf32>
    %c0_5 = arith.constant 0 : index
    %c0_6 = arith.constant 0 : index
    %6 = vector.load %arg4[%c0_5, %c0_6] : memref<256x512xf32, #tpu.memory_space<vmem>>, vector<256x512xf32>
    tpu.vector_store %arg4[%c0_5, %c0_6], %5 {strides = array<i32>} : memref<256x512xf32, #tpu.memory_space<vmem>>, vector<256x512xf32>,
    return
  }
  func.func @transform_0(%arg0: i32) -> (i32, i32) {
    %c0_i32 = arith.constant 0 : i32
    %c0_i32_0 = arith.constant 0 : i32
    return %arg0, %c0_i32 : i32, i32
  }
  func.func @transform_1(%arg0: i32) -> (i32, i32) {
    %c0_i32 = arith.constant 0 : i32
    %c0_i32_0 = arith.constant 0 : i32
    %c0_i32_1 = arith.constant 0 : i32
    return %c0_i32, %c0_i32_0 : i32, i32
  }
  func.func @transform_2(%arg0: i32) -> (i32, i32) {
    %c0_i32 = arith.constant 0 : i32
    %c0_i32_0 = arith.constant 0 : i32
    %c0_i32_1 = arith.constant 0 : i32
    return %c0_i32, %c0_i32_0 : i32, i32
  }
  func.func @transform_3(%arg0: i32) -> (i32, i32) {
    %c0_i32 = arith.constant 0 : i32
    %c0_i32_0 = arith.constant 0 : i32
    return %arg0, %c0_i32 : i32, i32
  }
}

</mosaic_0001>

<llo_original>
// kernel: tpu_custom_call.1
$region0: #{tpu_custom_call.1}
  #allocation0 [shape = 'u32[]', space=smem, size = 0x4, offset = 0x4, fixed_abs, tag = 'smem constant byte address 0x4 - core index']
  #allocation1 [shape = 'u32[144,128]{1,0:T(1,128)}', space=vmem, size = 0x12000, scoped, tag = 'internal scratch']
  %s0 = inlined_call_operand.vmem [shape: f32[512,10], index: 0, kind: input, shape index: {}]
  %s1 = inlined_call_operand.vmem [shape: f32[10,512], index: 1, kind: input, shape index: {}]
  %s2 = inlined_call_operand.vmem [shape: f32[1,512], index: 2, kind: input, shape index: {}]
  %s3 = inlined_call_operand.hbm [shape: f32[512,512], index: 3, kind: output, shape index: {}]
  %s4 = sld [smem:[#allocation0]]
  $region45: #{tpu_custom_call.1} parent=0
    _
  %s6 = ssub.s32 1, %s4
  %s7 = scalar_select 0, %s6, %s4
  $region1: #{tpu_custom_call.1} parent=0
    #allocation2 [shape = 'u8[1048576]{0}', space=vmem, size = 0x100000, scoped, tag = 'output window, operand 0']
    #allocation3 [shape = 's32[2]{0}', space=sflag, size = 0x8, scoped, tag = 'scoped memory for tpu_custom_call.1']
    %8 = vsyncpa [#allocation3], 0
    %s9 = scalar_lea.sflag [#allocation3], 1
    %10 = vsyncpa %s9, 0
    loop: start=0, step=1, limit=4
    $region2: #{tpu_custom_call.1} parent=1 // loop_pre_header
      _
    $region3: #{tpu_custom_call.1} parent=1 // loop_header
      %s12 = sphi 0, %s16
      %p13 = scmp.ge.s32.totalorder %s12, 4
      %s22 = sphi 0, %s24
      %s25 = sphi 0, %s22
      %s26 = sphi 0, %s25
      %s42 = sphi 0, %s26
      %s46 = sphi 0, %s46
      %s48 = sphi 0, %s46
      %s49 = sphi 0, %s48
      %s63 = sphi 0, %s49
      %s67 = sphi 0, %s67
      %s69 = sphi 0, %s67
      %s70 = sphi 0, %s69
      %s84 = sphi 0, %s70
      %s90 = sphi 0, %s92
      %s93 = sphi 0, %s90
      %s94 = sphi 0, %s93
      %s110 = sphi 0, %s94
    $region4: #{tpu_custom_call.1} parent=1 // loop_header_branch
      %15 = sbr.rel (%p13) target = $region8
    $region5: #{tpu_custom_call.1} parent=1 // loop_body
      %s17 = ssub.s32 %s12, 1
      %s18 = ssub.s32 %s12, 2
      %s19 = sadd.s32 %s12, 1
      %s20 = ssub.s32 %s12, %s19
      %p21 = scmp.eq.s32.totalorder %s20, 0
      %s23 = sadd.s32 %s22, 1
      %s24 = scalar_select %p21, %s22, %s23
      %p27 = pneg %p21
      %p28 = scmp.eq.s32.totalorder %s12, 1
      %p29 = por %p27, %p28
      %p30 = scmp.ne.s32.totalorder %s22, %s25
      %p31 = scmp.eq.s32.totalorder %s12, 0
      %p32 = por %p30, %p31
      %p33 = scmp.ne.s32.totalorder %s22, %s25
      %p34 = scmp.eq.s32.totalorder %s17, 1
      %p35 = por %p33, %p34
      %p36 = scmp.ne.s32.totalorder %s25, %s26
      %p37 = scmp.eq.s32.totalorder %s17, 0
      %p38 = por %p36, %p37
      %p39 = scmp.ne.s32.totalorder %s25, %s26
      %p40 = scmp.eq.s32.totalorder %s18, 1
      %p41 = por %p39, %p40
      %p43 = scmp.ne.s32.totalorder %s26, %s42
      %p44 = scmp.eq.s32.totalorder %s18, 0
      %p45 = por %p43, %p44
      %s47 = sadd.s32 %s46, 1
      %p50 = scmp.eq.s32.totalorder %s12, 1
      %p51 = scmp.ne.s32.totalorder %s46, %s48
      %p52 = scmp.eq.s32.totalorder %s12, 0
      %p53 = por %p51, %p52
      %p54 = scmp.ne.s32.totalorder %s46, %s48
      %p55 = scmp.eq.s32.totalorder %s17, 1
      %p56 = por %p54, %p55
      %p57 = scmp.ne.s32.totalorder %s48, %s49
      %p58 = scmp.eq.s32.totalorder %s17, 0
      %p59 = por %p57, %p58
      %p60 = scmp.ne.s32.totalorder %s48, %s49
      %p61 = scmp.eq.s32.totalorder %s18, 1
      %p62 = por %p60, %p61
      %p64 = scmp.ne.s32.totalorder %s49, %s63
      %p65 = scmp.eq.s32.totalorder %s18, 0
      %p66 = por %p64, %p65
      %s68 = sadd.s32 %s67, 1
      %p71 = scmp.eq.s32.totalorder %s12, 1
      %p72 = scmp.ne.s32.totalorder %s67, %s69
      %p73 = scmp.eq.s32.totalorder %s12, 0
      %p74 = por %p72, %p73
      %p75 = scmp.ne.s32.totalorder %s67, %s69
      %p76 = scmp.eq.s32.totalorder %s17, 1
      %p77 = por %p75, %p76
      %p78 = scmp.ne.s32.totalorder %s69, %s70
      %p79 = scmp.eq.s32.totalorder %s17, 0
      %p80 = por %p78, %p79
      %p81 = scmp.ne.s32.totalorder %s69, %s70
      %p82 = scmp.eq.s32.totalorder %s18, 1
      %p83 = por %p81, %p82
      %p85 = scmp.ne.s32.totalorder %s70, %s84
      %p86 = scmp.eq.s32.totalorder %s18, 0
      %p87 = por %p85, %p86
      %s88 = ssub.s32 %s12, %s19
      %p89 = scmp.eq.s32.totalorder %s88, 0
      %s91 = sadd.s32 %s90, 1
      %s92 = scalar_select %p89, %s90, %s91
      %p95 = pneg %p89
      %p96 = scmp.eq.s32.totalorder %s12, 1
      %p97 = por %p95, %p96
      %p98 = scmp.ne.s32.totalorder %s90, %s93
      %p99 = scmp.eq.s32.totalorder %s12, 0
      %p100 = por %p98, %p99
      %p101 = scmp.ne.s32.totalorder %s90, %s93
      %p102 = scmp.eq.s32.totalorder %s17, 1
      %p103 = por %p101, %p102
      %p104 = scmp.ne.s32.totalorder %s93, %s94
      %p105 = scmp.eq.s32.totalorder %s17, 0
      %p106 = por %p104, %p105
      %p107 = scmp.ne.s32.totalorder %s93, %s94
      %p108 = scmp.eq.s32.totalorder %s18, 1
      %p109 = por %p107, %p108
      %p111 = scmp.ne.s32.totalorder %s94, %s110
      %p112 = scmp.eq.s32.totalorder %s18, 0
      %p113 = por %p111, %p112
      %p114 = scmp.le.s32.totalorder 1, %s12
      %p115 = scmp.lt.s32.totalorder %s12, 3
      %p116 = pnand %p114, %p115
      %p117 = pneg %p116
      // Predicated region
      $region9: #{tpu_custom_call.1} parent=5 // pred_check
        _
      $region10: #{tpu_custom_call.1} parent=5 // pred_check_branch
        %119 = sbr.rel (%p116) target = $region12
      $region11: #{tpu_custom_call.1} parent=5 // pred_region
        %s120 = ssub.s32 %s12, 1
        // Predicated region
        $region13: #{tpu_custom_call.1} parent=11 // pred_check
          %p121 = pneg %p59
        $region14: #{tpu_custom_call.1} parent=11 // pred_check_branch
          %123 = sbr.rel (%p121) target = $region16
        $region15: #{tpu_custom_call.1} parent=11 // pred_region
          _
        $region16: #{tpu_custom_call.1} parent=11 // pred_fallthru
          _
        // Predicated region
        $region17: #{tpu_custom_call.1} parent=11 // pred_check
          %p124 = pneg %p80
        $region18: #{tpu_custom_call.1} parent=11 // pred_check_branch
          %126 = sbr.rel (%p124) target = $region20
        $region19: #{tpu_custom_call.1} parent=11 // pred_region
          _
        $region20: #{tpu_custom_call.1} parent=11 // pred_fallthru
          _
      $region12: #{tpu_custom_call.1} parent=5 // pred_fallthru
        _
      %p127 = scmp.lt.s32.totalorder %s12, 2
      // Predicated region
      $region21: #{tpu_custom_call.1} parent=5 // pred_check
        %p128 = pneg %p127
      $region22: #{tpu_custom_call.1} parent=5 // pred_check_branch
        %130 = sbr.rel (%p128) target = $region24
      $region23: #{tpu_custom_call.1} parent=5 // pred_region
        // Predicated region
        $region25: #{tpu_custom_call.1} parent=23 // pred_check
          %p131 = pneg %p32
        $region26: #{tpu_custom_call.1} parent=23 // pred_check_branch
          %133 = sbr.rel (%p131) target = $region28
        $region27: #{tpu_custom_call.1} parent=23 // pred_region
          %s134 = smul.u32 32, %s12
          %p135 = scmp.lt.s32.totalorder %s134, 63
          %s136 = scalar_select %p135, %s134, 63
          %s137 = smul.addr %s136, 8
          %s138 = scalar_lea.vmem %s0, %s137
          %s139 = smul.u32 32, %s12
        $region28: #{tpu_custom_call.1} parent=23 // pred_fallthru
          _
      $region24: #{tpu_custom_call.1} parent=5 // pred_fallthru
        _
      %p140 = scmp.le.s32.totalorder 1, %s12
      %p141 = scmp.lt.s32.totalorder %s12, 3
      %p142 = pnand %p140, %p141
      %p143 = pneg %p142
      // Predicated region
      $region29: #{tpu_custom_call.1} parent=5 // pred_check
        _
      $region30: #{tpu_custom_call.1} parent=5 // pred_check_branch
        %145 = sbr.rel (%p142) target = $region32
      $region31: #{tpu_custom_call.1} parent=5 // pred_region
        %s146 = ssub.s32 %s12, 1
        %s147 = smul.u32 32, %s17
        %p148 = scmp.lt.s32.totalorder %s147, 63
        %s149 = scalar_select %p148, %s147, 63
        %s150 = smul.addr %s149, 8
        %s151 = scalar_lea.vmem %s0, %s150
        %p152 = pneg %p38
        %p153 = pneg %p35
        %p154 = pneg %p59
        %p155 = pneg %p56
        %p156 = pneg %p80
        %p157 = pneg %p77
        %p158 = pneg %p106
        %p159 = pneg %p103
        %s160 = sand.u32 %s93, 1
        %s161 = scalar_lea.sflag [#allocation3], %s160
        %s162 = sand.u32 %s93, 1
        %s163 = smul.addr %s162, 1024
        %s164 = scalar_lea.vmem [#allocation2], %s163
        %s165 = smul.u32 32, %s17
        %p166 = scmp.lt.s32.totalorder %s165, 63
        %s167 = scalar_select %p166, %s165, 63
        %s168 = smul.addr %s167, 8
        %s169 = scalar_lea.vmem %s0, %s168
        %s170 = smul.u32 32, %s17
        %s171 = smul.u32 32, %s17
        %v172 = vld [vmem:[%s169] sm:$0xff]
        %v173 = vld [vmem:[%s169 + $0x8] sm:$0xff]
        %v174 = vld [vmem:[%s169 + $0x10] sm:$0xff]
        %v175 = vld [vmem:[%s169 + $0x18] sm:$0xff]
        %v176 = vld [vmem:[%s169 + $0x20] sm:$0xff]
        %v177 = vld [vmem:[%s169 + $0x28] sm:$0xff]
        %v178 = vld [vmem:[%s169 + $0x30] sm:$0xff]
        %v179 = vld [vmem:[%s169 + $0x38] sm:$0xff]
        %v180 = vld [vmem:[%s169 + $0x40] sm:$0xff]
        %v181 = vld [vmem:[%s169 + $0x48] sm:$0xff]
        %v182 = vld [vmem:[%s169 + $0x50] sm:$0xff]
        %v183 = vld [vmem:[%s169 + $0x58] sm:$0xff]
        %v184 = vld [vmem:[%s169 + $0x60] sm:$0xff]
        %v185 = vld [vmem:[%s169 + $0x68] sm:$0xff]
        %v186 = vld [vmem:[%s169 + $0x70] sm:$0xff]
        %v187 = vld [vmem:[%s169 + $0x78] sm:$0xff]
        %v188 = vld [vmem:[%s169 + $0x80] sm:$0xff]
        %v189 = vld [vmem:[%s169 + $0x88] sm:$0xff]
        %v190 = vld [vmem:[%s169 + $0x90] sm:$0xff]
        %v191 = vld [vmem:[%s169 + $0x98] sm:$0xff]
        %v192 = vld [vmem:[%s169 + $0xa0] sm:$0xff]
        %v193 = vld [vmem:[%s169 + $0xa8] sm:$0xff]
        %v194 = vld [vmem:[%s169 + $0xb0] sm:$0xff]
        %v195 = vld [vmem:[%s169 + $0xb8] sm:$0xff]
        %v196 = vld [vmem:[%s169 + $0xc0] sm:$0xff]
        %v197 = vld [vmem:[%s169 + $0xc8] sm:$0xff]
        %v198 = vld [vmem:[%s169 + $0xd0] sm:$0xff]
        %v199 = vld [vmem:[%s169 + $0xd8] sm:$0xff]
        %v200 = vld [vmem:[%s169 + $0xe0] sm:$0xff]
        %v201 = vld [vmem:[%s169 + $0xe8] sm:$0xff]
        %v202 = vld [vmem:[%s169 + $0xf0] sm:$0xff]
        %v203 = vld [vmem:[%s169 + $0xf8] sm:$0xff]
        %v204 = vld [vmem:[%s1] sm:$0xff]
        %v205 = vld [vmem:[%s1 + $0x8] sm:$0xff]
        %v206 = vld [vmem:[%s1 + $0x10] sm:$0xff]
        %v207 = vld [vmem:[%s1 + $0x18] sm:$0xff]
        %v208 = vld [vmem:[%s1 + $0x20] sm:$0x3]
        %v209 = vld [vmem:[%s1 + $0x28] sm:$0x3]
        %v210 = vld [vmem:[%s1 + $0x30] sm:$0x3]
        %v211 = vld [vmem:[%s1 + $0x38] sm:$0x3]
        %v212 = vld [vmem:[%s2] sm:$0xf]
        %v214 = vlaneseq
        %v215 = vshrl.u32 %v214, 7
        %v216 = vsub.s32 0, %v215
        %v217 = vrot.slane %v212, %v216
        %v218 = vlaneseq
        %v219 = vshrl.u32 %v218, 7
        %v220 = vsub.s32 1, %v219
        %v221 = vrot.slane %v212, %v220
        %v222 = vlaneseq
        %v223 = vshrl.u32 %v222, 7
        %v224 = vsub.s32 2, %v223
        %v225 = vrot.slane %v212, %v224
        %v226 = vlaneseq
        %v227 = vshrl.u32 %v226, 7
        %v228 = vsub.s32 3, %v227
        %v229 = vrot.slane %v212, %v228
        %vm234 = vcmask 80896
        %v236 = vsel %vm234, %v172, 0
        %v239 = vsel %vm234, %v173, 0
        %v242 = vsel %vm234, %v174, 0
        %v245 = vsel %vm234, %v175, 0
        %v248 = vsel %vm234, %v176, 0
        %v251 = vsel %vm234, %v177, 0
        %v254 = vsel %vm234, %v178, 0
        %v257 = vsel %vm234, %v179, 0
        %v260 = vsel %vm234, %v180, 0
        %v263 = vsel %vm234, %v181, 0
        %v266 = vsel %vm234, %v182, 0
        %v269 = vsel %vm234, %v183, 0
        %v272 = vsel %vm234, %v184, 0
        %v275 = vsel %vm234, %v185, 0
        %v278 = vsel %vm234, %v186, 0
        %v281 = vsel %vm234, %v187, 0
        %v284 = vsel %vm234, %v188, 0
        %v287 = vsel %vm234, %v189, 0
        %v290 = vsel %vm234, %v190, 0
        %v293 = vsel %vm234, %v191, 0
        %v296 = vsel %vm234, %v192, 0
        %v299 = vsel %vm234, %v193, 0
        %v302 = vsel %vm234, %v194, 0
        %v305 = vsel %vm234, %v195, 0
        %v308 = vsel %vm234, %v196, 0
        %v311 = vsel %vm234, %v197, 0
        %v314 = vsel %vm234, %v198, 0
        %v317 = vsel %vm234, %v199, 0
        %v320 = vsel %vm234, %v200, 0
        %v323 = vsel %vm234, %v201, 0
        %v326 = vsel %vm234, %v202, 0
        %v329 = vsel %vm234, %v203, 0
        %vm331 = vcmask 1041408
        %v333 = vsel %vm331, %v208, 0
        %v336 = vsel %vm331, %v209, 0
        %v339 = vsel %vm331, %v210, 0
        %v342 = vsel %vm331, %v211, 0
        %v344 = vand.u32 %v205, 4294901760
        %345 = vmatprep.subr.mxu0 %v344
        %v346 = vand.u32 %v204, 4294901760
        %347 = vmatpush1.msra.mxu0 %v346
        %v348 = vand.u32 %v336, 4294901760
        %349 = vmatprep.subr.mxu0 %v348
        %v350 = vand.u32 %v333, 4294901760
        %351 = vmatpush1.msra.mxu0 %v350
        %352 = vmatprep.subr.mxu0 0.0
        %353 = vmatpush1.msra.mxu0 0.0
        %354 = vmatprep.subr.mxu0 0.0
        %355 = vmatpush1.msra.mxu0 0.0
        %356 = vmatprep.subr.mxu0 0.0
        %357 = vmatpush1.msra.mxu0 0.0
        %358 = vmatprep.subr.mxu0 0.0
        %359 = vmatpush1.msra.mxu0 0.0
        %360 = vmatprep.subr.mxu0 0.0
        %361 = vmatpush1.msra.mxu0 0.0
        %362 = vmatprep.subr.mxu0 0.0
        %363 = vmatpush1.msra.mxu0 0.0
        %364 = vmatprep.subr.mxu0 0.0
        %365 = vmatpush1.msra.mxu0 0.0
        %366 = vmatprep.subr.mxu0 0.0
        %367 = vmatpush1.msra.mxu0 0.0
        %368 = vmatprep.subr.mxu0 0.0
        %369 = vmatpush1.msra.mxu0 0.0
        %370 = vmatprep.subr.mxu0 0.0
        %371 = vmatpush1.msra.mxu0 0.0
        %372 = vmatprep.subr.mxu0 0.0
        %373 = vmatpush1.msra.mxu0 0.0
        %374 = vmatprep.subr.mxu0 0.0
        %375 = vmatpush1.msra.mxu0 0.0
        %376 = vmatprep.subr.mxu0 0.0
        %377 = vmatpush1.msra.mxu0 0.0
        %378 = vmatprep.subr.mxu0 0.0
        %379 = vmatpush1.msra.mxu0 0.0
        %380 = vmatprep.subr.mxu0 0.0
        %381 = vmatpush1.msra.mxu0 0.0
        %382 = vmatprep.subr.mxu0 0.0
        %383 = vmatpush1.msra.mxu0 0.0
        %384 = vmatprep.subr.mxu0 0.0
        %385 = vmatpush1.msra.mxu0 0.0
        %386 = vmatprep.subr.mxu0 0.0
        %387 = vmatpush1.msra.mxu0 0.0
        %388 = vmatprep.subr.mxu0 0.0
        %389 = vmatpush1.msra.mxu0 0.0
        %390 = vmatprep.subr.mxu0 0.0
        %391 = vmatpush1.msra.mxu0 0.0
        %392 = vmatprep.subr.mxu0 0.0
        %393 = vmatpush1.msra.mxu0 0.0
        %394 = vmatprep.subr.mxu0 0.0
        %395 = vmatpush1.msra.mxu0 0.0
        %396 = vmatprep.subr.mxu0 0.0
        %397 = vmatpush1.msra.mxu0 0.0
        %398 = vmatprep.subr.mxu0 0.0
        %399 = vmatpush1.msra.mxu0 0.0
        %400 = vmatprep.subr.mxu0 0.0
        %401 = vmatpush1.msra.mxu0 0.0
        %402 = vmatprep.subr.mxu0 0.0
        %403 = vmatpush1.msra.mxu0 0.0
        %404 = vmatprep.subr.mxu0 0.0
        %405 = vmatpush1.msra.mxu0 0.0
        %406 = vmatprep.subr.mxu0 0.0
        %407 = vmatpush1.msra.mxu0 0.0
        %408 = vmatprep.subr.mxu0 0.0
        %409 = vmatpush1.msra.mxu0 0.0
        %410 = vmatprep.subr.mxu0 0.0
        %411 = vmatpush1.msra.mxu0 0.0
        %412 = vmatprep.mubr.f32.mxu0 0.0
        %v413 = vand.u32 %v236, 4294901760
        %v414 = vsub.f32 %v236, %v413
        %v415 = vand.u32 %v414, 4294901760
        %v416 = vsub.f32 %v414, %v415
        %v417 = vand.u32 %v416, 4294901760
        %418 = vmatmul.mubr.f32.gmra.mrb[0].mxu0 %v417
        %v419 = vpop.f32.mrb[0].mxu0
        %v420 = vadd.f32 %v217, %v419
        %v421 = vpop.f32.mrb[0].mxu0
        %v422 = vadd.f32 %v221, %v421
        %423 = vmatprep.mubr.f32.mxu0 0.0
        %v424 = vand.u32 %v239, 4294901760
        %v425 = vsub.f32 %v239, %v424
        %v426 = vand.u32 %v425, 4294901760
        %v427 = vsub.f32 %v425, %v426
        %v428 = vand.u32 %v427, 4294901760
        %429 = vmatmul.mubr.f32.gmra.mrb[0].mxu0 %v428
        %v430 = vpop.f32.mrb[0].mxu0
        %v431 = vadd.f32 %v217, %v430
        %v432 = vpop.f32.mrb[0].mxu0
        %v433 = vadd.f32 %v221, %v432
        %434 = vmatprep.mubr.f32.mxu0 0.0
        %v435 = vand.u32 %v242, 4294901760
        %v436 = vsub.f32 %v242, %v435
        %v437 = vand.u32 %v436, 4294901760
        %v438 = vsub.f32 %v436, %v437
        %v439 = vand.u32 %v438, 4294901760
        %440 = vmatmul.mubr.f32.gmra.mrb[0].mxu0 %v439
        %v441 = vpop.f32.mrb[0].mxu0
        %v442 = vadd.f32 %v217, %v441
        %v443 = vpop.f32.mrb[0].mxu0
        %v444 = vadd.f32 %v221, %v443
        %445 = vmatprep.mubr.f32.mxu0 0.0
        %v446 = vand.u32 %v245, 4294901760
        %v447 = vsub.f32 %v245, %v446
        %v448 = vand.u32 %v447, 4294901760
        %v449 = vsub.f32 %v447, %v448
        %v450 = vand.u32 %v449, 4294901760
        %451 = vmatmul.mubr.f32.gmra.mrb[0].mxu0 %v450
        %v452 = vpop.f32.mrb[0].mxu0
        %v453 = vadd.f32 %v217, %v452
        %v454 = vpop.f32.mrb[0].mxu0
        %v455 = vadd.f32 %v221, %v454
        %456 = vmatprep.mubr.f32.mxu0 0.0
        %v457 = vand.u32 %v248, 4294901760
        %v458 = vsub.f32 %v248, %v457
        %v459 = vand.u32 %v458, 4294901760
        %v460 = vsub.f32 %v458, %v459
        %v461 = vand.u32 %v460, 4294901760
        %462 = vmatmul.mubr.f32.gmra.mrb[0].mxu0 %v461
        %v463 = vpop.f32.mrb[0].mxu0
        %v464 = vadd.f32 %v217, %v463
        %v465 = vpop.f32.mrb[0].mxu0
        %v466 = vadd.f32 %v221, %v465
        %467 = vmatprep.mubr.f32.mxu0 0.0
        %v468 = vand.u32 %v251, 4294901760
        %v469 = vsub.f32 %v251, %v468
        %v470 = vand.u32 %v469, 4294901760
        %v471 = vsub.f32 %v469, %v470
        %v472 = vand.u32 %v471, 4294901760
        %473 = vmatmul.mubr.f32.gmra.mrb[0].mxu0 %v472
        %v474 = vpop.f32.mrb[0].mxu0
        %v475 = vadd.f32 %v217, %v474
        %v476 = vpop.f32.mrb[0].mxu0
        %v477 = vadd.f32 %v221, %v476
        %478 = vmatprep.mubr.f32.mxu0 0.0
        %v479 = vand.u32 %v254, 4294901760
        %v480 = vsub.f32 %v254, %v479
        %v481 = vand.u32 %v480, 4294901760
        %v482 = vsub.f32 %v480, %v481
        %v483 = vand.u32 %v482, 4294901760
        %484 = vmatmul.mubr.f32.gmra.mrb[0].mxu0 %v483
        %v485 = vpop.f32.mrb[0].mxu0
        %v486 = vadd.f32 %v217, %v485
        %v487 = vpop.f32.mrb[0].mxu0
        %v488 = vadd.f32 %v221, %v487
        %489 = vmatprep.mubr.f32.mxu0 0.0
        %v490 = vand.u32 %v257, 4294901760
        %v491 = vsub.f32 %v257, %v490
        %v492 = vand.u32 %v491, 4294901760
        %v493 = vsub.f32 %v491, %v492
        %v494 = vand.u32 %v493, 4294901760
        %495 = vmatmul.mubr.f32.gmra.mrb[0].mxu0 %v494
        %v496 = vpop.f32.mrb[0].mxu0
        %v497 = vadd.f32 %v217, %v496
        %v498 = vpop.f32.mrb[0].mxu0
        %v499 = vadd.f32 %v221, %v498
        %500 = vmatprep.mubr.f32.mxu0 0.0
        %v501 = vand.u32 %v260, 4294901760
        %v502 = vsub.f32 %v260, %v501
        %v503 = vand.u32 %v502, 4294901760
        %v504 = vsub.f32 %v502, %v503
        %v505 = vand.u32 %v504, 4294901760
        %506 = vmatmul.mubr.f32.gmra.mrb[0].mxu0 %v505
        %v507 = vpop.f32.mrb[0].mxu0
        %v508 = vadd.f32 %v217, %v507
        %v509 = vpop.f32.mrb[0].mxu0
        %v510 = vadd.f32 %v221, %v509
        %511 = vmatprep.mubr.f32.mxu0 0.0
        %v512 = vand.u32 %v263, 4294901760
        %v513 = vsub.f32 %v263, %v512
        %v514 = vand.u32 %v513, 4294901760
        %v515 = vsub.f32 %v513, %v514
        %v516 = vand.u32 %v515, 4294901760
        %517 = vmatmul.mubr.f32.gmra.mrb[0].mxu0 %v516
        %v518 = vpop.f32.mrb[0].mxu0
        %v519 = vadd.f32 %v217, %v518
        %v520 = vpop.f32.mrb[0].mxu0
        %v521 = vadd.f32 %v221, %v520
        %522 = vmatprep.mubr.f32.mxu0 0.0
        %v523 = vand.u32 %v266, 4294901760
        %v524 = vsub.f32 %v266, %v523
        %v525 = vand.u32 %v524, 4294901760
        %v526 = vsub.f32 %v524, %v525
        %v527 = vand.u32 %v526, 4294901760
        %528 = vmatmul.mubr.f32.gmra.mrb[0].mxu0 %v527
        %v529 = vpop.f32.mrb[0].mxu0
        %v530 = vadd.f32 %v217, %v529
        %v531 = vpop.f32.mrb[0].mxu0
        %v532 = vadd.f32 %v221, %v531
        %533 = vmatprep.mubr.f32.mxu0 0.0
        %v534 = vand.u32 %v269, 4294901760
        %v535 = vsub.f32 %v269, %v534
        %v536 = vand.u32 %v535, 4294901760
        %v537 = vsub.f32 %v535, %v536
        %v538 = vand.u32 %v537, 4294901760
        %539 = vmatmul.mubr.f32.gmra.mrb[0].mxu0 %v538
        %v540 = vpop.f32.mrb[0].mxu0
        %v541 = vadd.f32 %v217, %v540
        %v542 = vpop.f32.mrb[0].mxu0
        %v543 = vadd.f32 %v221, %v542
        %544 = vmatprep.mubr.f32.mxu0 0.0
        %v545 = vand.u32 %v272, 4294901760
        %v546 = vsub.f32 %v272, %v545
        %v547 = vand.u32 %v546, 4294901760
        %v548 = vsub.f32 %v546, %v547
        %v549 = vand.u32 %v548, 4294901760
        %550 = vmatmul.mubr.f32.gmra.mrb[0].mxu0 %v549
        %v551 = vpop.f32.mrb[0].mxu0
        %v552 = vadd.f32 %v217, %v551
        %v553 = vpop.f32.mrb[0].mxu0
        %v554 = vadd.f32 %v221, %v553
        %555 = vmatprep.mubr.f32.mxu0 0.0
        %v556 = vand.u32 %v275, 4294901760
        %v557 = vsub.f32 %v275, %v556
        %v558 = vand.u32 %v557, 4294901760
        %v559 = vsub.f32 %v557, %v558
        %v560 = vand.u32 %v559, 4294901760
        %561 = vmatmul.mubr.f32.gmra.mrb[0].mxu0 %v560
        %v562 = vpop.f32.mrb[0].mxu0
        %v563 = vadd.f32 %v217, %v562
        %v564 = vpop.f32.mrb[0].mxu0
        %v565 = vadd.f32 %v221, %v564
        %566 = vmatprep.mubr.f32.mxu0 0.0
        %v567 = vand.u32 %v278, 4294901760
        %v568 = vsub.f32 %v278, %v567
        %v569 = vand.u32 %v568, 4294901760
        %v570 = vsub.f32 %v568, %v569
        %v571 = vand.u32 %v570, 4294901760
        %572 = vmatmul.mubr.f32.gmra.mrb[0].mxu0 %v571
        %v573 = vpop.f32.mrb[0].mxu0
        %v574 = vadd.f32 %v217, %v573
        %v575 = vpop.f32.mrb[0].mxu0
        %v576 = vadd.f32 %v221, %v575
        %577 = vmatprep.mubr.f32.mxu0 0.0
        %v578 = vand.u32 %v281, 4294901760
        %v579 = vsub.f32 %v281, %v578
        %v580 = vand.u32 %v579, 4294901760
        %v581 = vsub.f32 %v579, %v580
        %v582 = vand.u32 %v581, 4294901760
        %583 = vmatmul.mubr.f32.gmra.mrb[0].mxu0 %v582
        %v584 = vpop.f32.mrb[0].mxu0
        %v585 = vadd.f32 %v217, %v584
        %v586 = vpop.f32.mrb[0].mxu0
        %v587 = vadd.f32 %v221, %v586
        %588 = vmatprep.mubr.f32.mxu0 0.0
        %v589 = vand.u32 %v284, 4294901760
        %v590 = vsub.f32 %v284, %v589
        %v591 = vand.u32 %v590, 4294901760
        %v592 = vsub.f32 %v590, %v591
        %v593 = vand.u32 %v592, 4294901760
        %594 = vmatmul.mubr.f32.gmra.mrb[0].mxu0 %v593
        %v595 = vpop.f32.mrb[0].mxu0
        %v596 = vadd.f32 %v217, %v595
        %v597 = vpop.f32.mrb[0].mxu0
        %v598 = vadd.f32 %v221, %v597
        %599 = vmatprep.mubr.f32.mxu0 0.0
        %v600 = vand.u32 %v287, 4294901760
        %v601 = vsub.f32 %v287, %v600
        %v602 = vand.u32 %v601, 4294901760
        %v603 = vsub.f32 %v601, %v602
        %v604 = vand.u32 %v603, 4294901760
        %605 = vmatmul.mubr.f32.gmra.mrb[0].mxu0 %v604
        %v606 = vpop.f32.mrb[0].mxu0
        %v607 = vadd.f32 %v217, %v606
        %v608 = vpop.f32.mrb[0].mxu0
        %v609 = vadd.f32 %v221, %v608
        %610 = vmatprep.mubr.f32.mxu0 0.0
        %v611 = vand.u32 %v290, 4294901760
        %v612 = vsub.f32 %v290, %v611
        %v613 = vand.u32 %v612, 4294901760
        %v614 = vsub.f32 %v612, %v613
        %v615 = vand.u32 %v614, 4294901760
        %616 = vmatmul.mubr.f32.gmra.mrb[0].mxu0 %v615
        %v617 = vpop.f32.mrb[0].mxu0
        %v618 = vadd.f32 %v217, %v617
        %v619 = vpop.f32.mrb[0].mxu0
        %v620 = vadd.f32 %v221, %v619
        %621 = vmatprep.mubr.f32.mxu0 0.0
        %v622 = vand.u32 %v293, 4294901760
        %v623 = vsub.f32 %v293, %v622
        %v624 = vand.u32 %v623, 4294901760
        %v625 = vsub.f32 %v623, %v624
        %v626 = vand.u32 %v625, 4294901760
        %627 = vmatmul.mubr.f32.gmra.mrb[0].mxu0 %v626
        %v628 = vpop.f32.mrb[0].mxu0
        %v629 = vadd.f32 %v217, %v628
        %v630 = vpop.f32.mrb[0].mxu0
        %v631 = vadd.f32 %v221, %v630
        %632 = vmatprep.mubr.f32.mxu0 0.0
        %v633 = vand.u32 %v296, 4294901760
        %v634 = vsub.f32 %v296, %v633
        %v635 = vand.u32 %v634, 4294901760
        %v636 = vsub.f32 %v634, %v635
        %v637 = vand.u32 %v636, 4294901760
        %638 = vmatmul.mubr.f32.gmra.mrb[0].mxu0 %v637
        %v639 = vpop.f32.mrb[0].mxu0
        %v640 = vadd.f32 %v217, %v639
        %v641 = vpop.f32.mrb[0].mxu0
        %v642 = vadd.f32 %v221, %v641
        %643 = vmatprep.mubr.f32.mxu0 0.0
        %v644 = vand.u32 %v299, 4294901760
        %v645 = vsub.f32 %v299, %v644
        %v646 = vand.u32 %v645, 4294901760
        %v647 = vsub.f32 %v645, %v646
        %v648 = vand.u32 %v647, 4294901760
        %649 = vmatmul.mubr.f32.gmra.mrb[0].mxu0 %v648
        %v650 = vpop.f32.mrb[0].mxu0
        %v651 = vadd.f32 %v217, %v650
        %v652 = vpop.f32.mrb[0].mxu0
        %v653 = vadd.f32 %v221, %v652
        %654 = vmatprep.mubr.f32.mxu0 0.0
        %v655 = vand.u32 %v302, 4294901760
        %v656 = vsub.f32 %v302, %v655
        %v657 = vand.u32 %v656, 4294901760
        %v658 = vsub.f32 %v656, %v657
        %v659 = vand.u32 %v658, 4294901760
        %660 = vmatmul.mubr.f32.gmra.mrb[0].mxu0 %v659
        %v661 = vpop.f32.mrb[0].mxu0
        %v662 = vadd.f32 %v217, %v661
        %v663 = vpop.f32.mrb[0].mxu0
        %v664 = vadd.f32 %v221, %v663
        %665 = vmatprep.mubr.f32.mxu0 0.0
        %v666 = vand.u32 %v305, 4294901760
        %v667 = vsub.f32 %v305, %v666
        %v668 = vand.u32 %v667, 4294901760
        %v669 = vsub.f32 %v667, %v668
        %v670 = vand.u32 %v669, 4294901760
        %671 = vmatmul.mubr.f32.gmra.mrb[0].mxu0 %v670
        %v672 = vpop.f32.mrb[0].mxu0
        %v673 = vadd.f32 %v217, %v672
        %v674 = vpop.f32.mrb[0].mxu0
        %v675 = vadd.f32 %v221, %v674
        %676 = vmatprep.mubr.f32.mxu0 0.0
        %v677 = vand.u32 %v308, 4294901760
        %v678 = vsub.f32 %v308, %v677
        %v679 = vand.u32 %v678, 4294901760
        %v680 = vsub.f32 %v678, %v679
        %v681 = vand.u32 %v680, 4294901760
        %682 = vmatmul.mubr.f32.gmra.mrb[0].mxu0 %v681
        %v683 = vpop.f32.mrb[0].mxu0
        %v684 = vadd.f32 %v217, %v683
        %v685 = vpop.f32.mrb[0].mxu0
        %v686 = vadd.f32 %v221, %v685
        %687 = vmatprep.mubr.f32.mxu0 0.0
        %v688 = vand.u32 %v311, 4294901760
        %v689 = vsub.f32 %v311, %v688
        %v690 = vand.u32 %v689, 4294901760
        %v691 = vsub.f32 %v689, %v690
        %v692 = vand.u32 %v691, 4294901760
        %693 = vmatmul.mubr.f32.gmra.mrb[0].mxu0 %v692
        %v694 = vpop.f32.mrb[0].mxu0
        %v695 = vadd.f32 %v217, %v694
        %v696 = vpop.f32.mrb[0].mxu0
        %v697 = vadd.f32 %v221, %v696
        %698 = vmatprep.mubr.f32.mxu0 0.0
        %v699 = vand.u32 %v314, 4294901760
        %v700 = vsub.f32 %v314, %v699
        %v701 = vand.u32 %v700, 4294901760
        %v702 = vsub.f32 %v700, %v701
        %v703 = vand.u32 %v702, 4294901760
        %704 = vmatmul.mubr.f32.gmra.mrb[0].mxu0 %v703
        %v705 = vpop.f32.mrb[0].mxu0
        %v706 = vadd.f32 %v217, %v705
        %v707 = vpop.f32.mrb[0].mxu0
        %v708 = vadd.f32 %v221, %v707
        %709 = vmatprep.mubr.f32.mxu0 0.0
        %v710 = vand.u32 %v317, 4294901760
        %v711 = vsub.f32 %v317, %v710
        %v712 = vand.u32 %v711, 4294901760
        %v713 = vsub.f32 %v711, %v712
        %v714 = vand.u32 %v713, 4294901760
        %715 = vmatmul.mubr.f32.gmra.mrb[0].mxu0 %v714
        %v716 = vpop.f32.mrb[0].mxu0
        %v717 = vadd.f32 %v217, %v716
        %v718 = vpop.f32.mrb[0].mxu0
        %v719 = vadd.f32 %v221, %v718
        %720 = vmatprep.mubr.f32.mxu0 0.0
        %v721 = vand.u32 %v320, 4294901760
        %v722 = vsub.f32 %v320, %v721
        %v723 = vand.u32 %v722, 4294901760
        %v724 = vsub.f32 %v722, %v723
        %v725 = vand.u32 %v724, 4294901760
        %726 = vmatmul.mubr.f32.gmra.mrb[0].mxu0 %v725
        %v727 = vpop.f32.mrb[0].mxu0
        %v728 = vadd.f32 %v217, %v727
        %v729 = vpop.f32.mrb[0].mxu0
        %v730 = vadd.f32 %v221, %v729
        %731 = vmatprep.mubr.f32.mxu0 0.0
        %v732 = vand.u32 %v323, 4294901760
        %v733 = vsub.f32 %v323, %v732
        %v734 = vand.u32 %v733, 4294901760
        %v735 = vsub.f32 %v733, %v734
        %v736 = vand.u32 %v735, 4294901760
        %737 = vmatmul.mubr.f32.gmra.mrb[0].mxu0 %v736
        %v738 = vpop.f32.mrb[0].mxu0
        %v739 = vadd.f32 %v217, %v738
        %v740 = vpop.f32.mrb[0].mxu0
        %v741 = vadd.f32 %v221, %v740
        %742 = vmatprep.mubr.f32.mxu0 0.0
        %v743 = vand.u32 %v326, 4294901760
        %v744 = vsub.f32 %v326, %v743
        %v745 = vand.u32 %v744, 4294901760
        %v746 = vsub.f32 %v744, %v745
        %v747 = vand.u32 %v746, 4294901760
        %748 = vmatmul.mubr.f32.gmra.mrb[0].mxu0 %v747
        %v749 = vpop.f32.mrb[0].mxu0
        %v750 = vadd.f32 %v217, %v749
        %v751 = vpop.f32.mrb[0].mxu0
        %v752 = vadd.f32 %v221, %v751
        %753 = vmatprep.mubr.f32.mxu0 0.0
        %v754 = vand.u32 %v329, 4294901760
        %v755 = vsub.f32 %v329, %v754
        %v756 = vand.u32 %v755, 4294901760
        %v757 = vsub.f32 %v755, %v756
        %v758 = vand.u32 %v757, 4294901760
        %759 = vmatmul.mubr.f32.gmra.mrb[0].mxu0 %v758
        %v760 = vpop.f32.mrb[0].mxu0
        %v761 = vadd.f32 %v217, %v760
        %v762 = vpop.f32.mrb[0].mxu0
        %v763 = vadd.f32 %v221, %v762
        %764 = vdwg.mxu0
        %v765 = vand.u32 %v205, 4294901760
        %v766 = vsub.f32 %v205, %v765
        %v767 = vand.u32 %v766, 4294901760
        %v768 = vsub.f32 %v766, %v767
        %v769 = vand.u32 %v768, 4294901760
        %770 = vmatprep.subr.mxu0 %v769
        %v771 = vand.u32 %v204, 4294901760
        %v772 = vsub.f32 %v204, %v771
        %v773 = vand.u32 %v772, 4294901760
        %v774 = vsub.f32 %v772, %v773
        %v775 = vand.u32 %v774, 4294901760
        %776 = vmatpush1.msra.mxu0 %v775
        %v777 = vand.u32 %v336, 4294901760
        %v778 = vsub.f32 %v336, %v777
        %v779 = vand.u32 %v778, 4294901760
        %v780 = vsub.f32 %v778, %v779
        %v781 = vand.u32 %v780, 4294901760
        %782 = vmatprep.subr.mxu0 %v781
        %v783 = vand.u32 %v333, 4294901760
        %v784 = vsub.f32 %v333, %v783
        %v785 = vand.u32 %v784, 4294901760
        %v786 = vsub.f32 %v784, %v785
        %v787 = vand.u32 %v786, 4294901760
        %788 = vmatpush1.msra.mxu0 %v787
        %789 = vmatprep.subr.mxu0 0.0
        %790 = vmatpush1.msra.mxu0 0.0
        %791 = vmatprep.subr.mxu0 0.0
        %792 = vmatpush1.msra.mxu0 0.0
        %793 = vmatprep.subr.mxu0 0.0
        %794 = vmatpush1.msra.mxu0 0.0
        %795 = vmatprep.subr.mxu0 0.0
        %796 = vmatpush1.msra.mxu0 0.0
        %797 = vmatprep.subr.mxu0 0.0
        %798 = vmatpush1.msra.mxu0 0.0
        %799 = vmatprep.subr.mxu0 0.0
        %800 = vmatpush1.msra.mxu0 0.0
        %801 = vmatprep.subr.mxu0 0.0
        %802 = vmatpush1.msra.mxu0 0.0
        %803 = vmatprep.subr.mxu0 0.0
        %804 = vmatpush1.msra.mxu0 0.0
        %805 = vmatprep.subr.mxu0 0.0
        %806 = vmatpush1.msra.mxu0 0.0
        %807 = vmatprep.subr.mxu0 0.0
        %808 = vmatpush1.msra.mxu0 0.0
        %809 = vmatprep.subr.mxu0 0.0
        %810 = vmatpush1.msra.mxu0 0.0
        %811 = vmatprep.subr.mxu0 0.0
        %812 = vmatpush1.msra.mxu0 0.0
        %813 = vmatprep.subr.mxu0 0.0
        %814 = vmatpush1.msra.mxu0 0.0
        %815 = vmatprep.subr.mxu0 0.0
        %816 = vmatpush1.msra.mxu0 0.0
        %817 = vmatprep.subr.mxu0 0.0
        %818 = vmatpush1.msra.mxu0 0.0
        %819 = vmatprep.subr.mxu0 0.0
        %820 = vmatpush1.msra.mxu0 0.0
        %821 = vmatprep.subr.mxu0 0.0
        %822 = vmatpush1.msra.mxu0 0.0
        %823 = vmatprep.subr.mxu0 0.0
        %824 = vmatpush1.msra.mxu0 0.0
        %825 = vmatprep.subr.mxu0 0.0
        %826 = vmatpush1.msra.mxu0 0.0
        %827 = vmatprep.subr.mxu0 0.0
        %828 = vmatpush1.msra.mxu0 0.0
        %829 = vmatprep.subr.mxu0 0.0
        %830 = vmatpush1.msra.mxu0 0.0
        %831 = vmatprep.subr.mxu0 0.0
        %832 = vmatpush1.msra.mxu0 0.0
        %833 = vmatprep.subr.mxu0 0.0
        %834 = vmatpush1.msra.mxu0 0.0
        %835 = vmatprep.subr.mxu0 0.0
        %836 = vmatpush1.msra.mxu0 0.0
        %837 = vmatprep.subr.mxu0 0.0
        %838 = vmatpush1.msra.mxu0 0.0
        %839 = vmatprep.subr.mxu0 0.0
        %840 = vmatpush1.msra.mxu0 0.0
        %841 = vmatprep.subr.mxu0 0.0
        %842 = vmatpush1.msra.mxu0 0.0
        %843 = vmatprep.subr.mxu0 0.0
        %844 = vmatpush1.msra.mxu0 0.0
        %845 = vmatprep.subr.mxu0 0.0
        %846 = vmatpush1.msra.mxu0 0.0
        %847 = vmatprep.subr.mxu0 0.0
        %848 = vmatpush1.msra.mxu0 0.0
        %849 = vmatprep.mubr.f32.mxu0 0.0
        %v850 = vand.u32 %v236, 4294901760
        %851 = vmatmul.mubr.f32.gmra.mrb[0].mxu0 %v850
        %v852 = vpop.f32.mrb[0].mxu0
        %v853 = vadd.f32 %v420, %v852
        %v854 = vpop.f32.mrb[0].mxu0
        %v855 = vadd.f32 %v422, %v854
        %856 = vmatprep.mubr.f32.mxu0 0.0
        %v857 = vand.u32 %v239, 4294901760
        %858 = vmatmul.mubr.f32.gmra.mrb[0].mxu0 %v857
        %v859 = vpop.f32.mrb[0].mxu0
        %v860 = vadd.f32 %v431, %v859
        %v861 = vpop.f32.mrb[0].mxu0
        %v862 = vadd.f32 %v433, %v861
        %863 = vmatprep.mubr.f32.mxu0 0.0
        %v864 = vand.u32 %v242, 4294901760
        %865 = vmatmul.mubr.f32.gmra.mrb[0].mxu0 %v864
        %v866 = vpop.f32.mrb[0].mxu0
        %v867 = vadd.f32 %v442, %v866
        %v868 = vpop.f32.mrb[0].mxu0
        %v869 = vadd.f32 %v444, %v868
        %870 = vmatprep.mubr.f32.mxu0 0.0
        %v871 = vand.u32 %v245, 4294901760
        %872 = vmatmul.mubr.f32.gmra.mrb[0].mxu0 %v871
        %v873 = vpop.f32.mrb[0].mxu0
        %v874 = vadd.f32 %v453, %v873
        %v875 = vpop.f32.mrb[0].mxu0
        %v876 = vadd.f32 %v455, %v875
        %877 = vmatprep.mubr.f32.mxu0 0.0
        %v878 = vand.u32 %v248, 4294901760
        %879 = vmatmul.mubr.f32.gmra.mrb[0].mxu0 %v878
        %v880 = vpop.f32.mrb[0].mxu0
        %v881 = vadd.f32 %v464, %v880
        %v882 = vpop.f32.mrb[0].mxu0
        %v883 = vadd.f32 %v466, %v882
        %884 = vmatprep.mubr.f32.mxu0 0.0
        %v885 = vand.u32 %v251, 4294901760
        %886 = vmatmul.mubr.f32.gmra.mrb[0].mxu0 %v885
        %v887 = vpop.f32.mrb[0].mxu0
        %v888 = vadd.f32 %v475, %v887
        %v889 = vpop.f32.mrb[0].mxu0
        %v890 = vadd.f32 %v477, %v889
        %891 = vmatprep.mubr.f32.mxu0 0.0
        %v892 = vand.u32 %v254, 4294901760
        %893 = vmatmul.mubr.f32.gmra.mrb[0].mxu0 %v892
        %v894 = vpop.f32.mrb[0].mxu0
        %v895 = vadd.f32 %v486, %v894
        %v896 = vpop.f32.mrb[0].mxu0
        %v897 = vadd.f32 %v488, %v896
        %898 = vmatprep.mubr.f32.mxu0 0.0
        %v899 = vand.u32 %v257, 4294901760
        %900 = vmatmul.mubr.f32.gmra.mrb[0].mxu0 %v899
        %v901 = vpop.f32.mrb[0].mxu0
        %v902 = vadd.f32 %v497, %v901
        %v903 = vpop.f32.mrb[0].mxu0
        %v904 = vadd.f32 %v499, %v903
        %905 = vmatprep.mubr.f32.mxu0 0.0
        %v906 = vand.u32 %v260, 4294901760
        %907 = vmatmul.mubr.f32.gmra.mrb[0].mxu0 %v906
        %v908 = vpop.f32.mrb[0].mxu0
        %v909 = vadd.f32 %v508, %v908
        %v910 = vpop.f32.mrb[0].mxu0
        %v911 = vadd.f32 %v510, %v910
        %912 = vmatprep.mubr.f32.mxu0 0.0
        %v913 = vand.u32 %v263, 4294901760
        %914 = vmatmul.mubr.f32.gmra.mrb[0].mxu0 %v913
        %v915 = vpop.f32.mrb[0].mxu0
        %v916 = vadd.f32 %v519, %v915
        %v917 = vpop.f32.mrb[0].mxu0
        %v918 = vadd.f32 %v521, %v917
        %919 = vmatprep.mubr.f32.mxu0 0.0
        %v920 = vand.u32 %v266, 4294901760
        %921 = vmatmul.mubr.f32.gmra.mrb[0].mxu0 %v920
        %v922 = vpop.f32.mrb[0].mxu0
        %v923 = vadd.f32 %v530, %v922
        %v924 = vpop.f32.mrb[0].mxu0
        %v925 = vadd.f32 %v532, %v924
        %926 = vmatprep.mubr.f32.mxu0 0.0
        %v927 = vand.u32 %v269, 4294901760
        %928 = vmatmul.mubr.f32.gmra.mrb[0].mxu0 %v927
        %v929 = vpop.f32.mrb[0].mxu0
        %v930 = vadd.f32 %v541, %v929
        %v931 = vpop.f32.mrb[0].mxu0
        %v932 = vadd.f32 %v543, %v931
        %933 = vmatprep.mubr.f32.mxu0 0.0
        %v934 = vand.u32 %v272, 4294901760
        %935 = vmatmul.mubr.f32.gmra.mrb[0].mxu0 %v934
        %v936 = vpop.f32.mrb[0].mxu0
        %v937 = vadd.f32 %v552, %v936
        %v938 = vpop.f32.mrb[0].mxu0
        %v939 = vadd.f32 %v554, %v938
        %940 = vmatprep.mubr.f32.mxu0 0.0
        %v941 = vand.u32 %v275, 4294901760
        %942 = vmatmul.mubr.f32.gmra.mrb[0].mxu0 %v941
        %v943 = vpop.f32.mrb[0].mxu0
        %v944 = vadd.f32 %v563, %v943
        %v945 = vpop.f32.mrb[0].mxu0
        %v946 = vadd.f32 %v565, %v945
        %947 = vmatprep.mubr.f32.mxu0 0.0
        %v948 = vand.u32 %v278, 4294901760
        %949 = vmatmul.mubr.f32.gmra.mrb[0].mxu0 %v948
        %v950 = vpop.f32.mrb[0].mxu0
        %v951 = vadd.f32 %v574, %v950
        %v952 = vpop.f32.mrb[0].mxu0
        %v953 = vadd.f32 %v576, %v952
        %954 = vmatprep.mubr.f32.mxu0 0.0
        %v955 = vand.u32 %v281, 4294901760
        %956 = vmatmul.mubr.f32.gmra.mrb[0].mxu0 %v955
        %v957 = vpop.f32.mrb[0].mxu0
        %v958 = vadd.f32 %v585, %v957
        %v959 = vpop.f32.mrb[0].mxu0
        %v960 = vadd.f32 %v587, %v959
        %961 = vmatprep.mubr.f32.mxu0 0.0
        %v962 = vand.u32 %v284, 4294901760
        %963 = vmatmul.mubr.f32.gmra.mrb[0].mxu0 %v962
        %v964 = vpop.f32.mrb[0].mxu0
        %v965 = vadd.f32 %v596, %v964
        %v966 = vpop.f32.mrb[0].mxu0
        %v967 = vadd.f32 %v598, %v966
        %968 = vmatprep.mubr.f32.mxu0 0.0
        %v969 = vand.u32 %v287, 4294901760
        %970 = vmatmul.mubr.f32.gmra.mrb[0].mxu0 %v969
        %v971 = vpop.f32.mrb[0].mxu0
        %v972 = vadd.f32 %v607, %v971
        %v973 = vpop.f32.mrb[0].mxu0
        %v974 = vadd.f32 %v609, %v973
        %975 = vmatprep.mubr.f32.mxu0 0.0
        %v976 = vand.u32 %v290, 4294901760
        %977 = vmatmul.mubr.f32.gmra.mrb[0].mxu0 %v976
        %v978 = vpop.f32.mrb[0].mxu0
        %v979 = vadd.f32 %v618, %v978
        %v980 = vpop.f32.mrb[0].mxu0
        %v981 = vadd.f32 %v620, %v980
        %982 = vmatprep.mubr.f32.mxu0 0.0
        %v983 = vand.u32 %v293, 4294901760
        %984 = vmatmul.mubr.f32.gmra.mrb[0].mxu0 %v983
        %v985 = vpop.f32.mrb[0].mxu0
        %v986 = vadd.f32 %v629, %v985
        %v987 = vpop.f32.mrb[0].mxu0
        %v988 = vadd.f32 %v631, %v987
        %989 = vmatprep.mubr.f32.mxu0 0.0
        %v990 = vand.u32 %v296, 4294901760
        %991 = vmatmul.mubr.f32.gmra.mrb[0].mxu0 %v990
        %v992 = vpop.f32.mrb[0].mxu0
        %v993 = vadd.f32 %v640, %v992
        %v994 = vpop.f32.mrb[0].mxu0
        %v995 = vadd.f32 %v642, %v994
        %996 = vmatprep.mubr.f32.mxu0 0.0
        %v997 = vand.u32 %v299, 4294901760
        %998 = vmatmul.mubr.f32.gmra.mrb[0].mxu0 %v997
        %v999 = vpop.f32.mrb[0].mxu0
        %v1000 = vadd.f32 %v651, %v999
        %v1001 = vpop.f32.mrb[0].mxu0
        %v1002 = vadd.f32 %v653, %v1001
        %1003 = vmatprep.mubr.f32.mxu0 0.0
        %v1004 = vand.u32 %v302, 4294901760
        %1005 = vmatmul.mubr.f32.gmra.mrb[0].mxu0 %v1004
        %v1006 = vpop.f32.mrb[0].mxu0
        %v1007 = vadd.f32 %v662, %v1006
        %v1008 = vpop.f32.mrb[0].mxu0
        %v1009 = vadd.f32 %v664, %v1008
        %1010 = vmatprep.mubr.f32.mxu0 0.0
        %v1011 = vand.u32 %v305, 4294901760
        %1012 = vmatmul.mubr.f32.gmra.mrb[0].mxu0 %v1011
        %v1013 = vpop.f32.mrb[0].mxu0
        %v1014 = vadd.f32 %v673, %v1013
        %v1015 = vpop.f32.mrb[0].mxu0
        %v1016 = vadd.f32 %v675, %v1015
        %1017 = vmatprep.mubr.f32.mxu0 0.0
        %v1018 = vand.u32 %v308, 4294901760
        %1019 = vmatmul.mubr.f32.gmra.mrb[0].mxu0 %v1018
        %v1020 = vpop.f32.mrb[0].mxu0
        %v1021 = vadd.f32 %v684, %v1020
        %v1022 = vpop.f32.mrb[0].mxu0
        %v1023 = vadd.f32 %v686, %v1022
        %1024 = vmatprep.mubr.f32.mxu0 0.0
        %v1025 = vand.u32 %v311, 4294901760
        %1026 = vmatmul.mubr.f32.gmra.mrb[0].mxu0 %v1025
        %v1027 = vpop.f32.mrb[0].mxu0
        %v1028 = vadd.f32 %v695, %v1027
        %v1029 = vpop.f32.mrb[0].mxu0
        %v1030 = vadd.f32 %v697, %v1029
        %1031 = vmatprep.mubr.f32.mxu0 0.0
        %v1032 = vand.u32 %v314, 4294901760
        %1033 = vmatmul.mubr.f32.gmra.mrb[0].mxu0 %v1032
        %v1034 = vpop.f32.mrb[0].mxu0
        %v1035 = vadd.f32 %v706, %v1034
        %v1036 = vpop.f32.mrb[0].mxu0
        %v1037 = vadd.f32 %v708, %v1036
        %1038 = vmatprep.mubr.f32.mxu0 0.0
        %v1039 = vand.u32 %v317, 4294901760
        %1040 = vmatmul.mubr.f32.gmra.mrb[0].mxu0 %v1039
        %v1041 = vpop.f32.mrb[0].mxu0
        %v1042 = vadd.f32 %v717, %v1041
        %v1043 = vpop.f32.mrb[0].mxu0
        %v1044 = vadd.f32 %v719, %v1043
        %1045 = vmatprep.mubr.f32.mxu0 0.0
        %v1046 = vand.u32 %v320, 4294901760
        %1047 = vmatmul.mubr.f32.gmra.mrb[0].mxu0 %v1046
        %v1048 = vpop.f32.mrb[0].mxu0
        %v1049 = vadd.f32 %v728, %v1048
        %v1050 = vpop.f32.mrb[0].mxu0
        %v1051 = vadd.f32 %v730, %v1050
        %1052 = vmatprep.mubr.f32.mxu0 0.0
        %v1053 = vand.u32 %v323, 4294901760
        %1054 = vmatmul.mubr.f32.gmra.mrb[0].mxu0 %v1053
        %v1055 = vpop.f32.mrb[0].mxu0
        %v1056 = vadd.f32 %v739, %v1055
        %v1057 = vpop.f32.mrb[0].mxu0
        %v1058 = vadd.f32 %v741, %v1057
        %1059 = vmatprep.mubr.f32.mxu0 0.0
        %v1060 = vand.u32 %v326, 4294901760
        %1061 = vmatmul.mubr.f32.gmra.mrb[0].mxu0 %v1060
        %v1062 = vpop.f32.mrb[0].mxu0
        %v1063 = vadd.f32 %v750, %v1062
        %v1064 = vpop.f32.mrb[0].mxu0
        %v1065 = vadd.f32 %v752, %v1064
        %1066 = vmatprep.mubr.f32.mxu0 0.0
        %v1067 = vand.u32 %v329, 4294901760
        %1068 = vmatmul.mubr.f32.gmra.mrb[0].mxu0 %v1067
        %v1069 = vpop.f32.mrb[0].mxu0
        %v1070 = vadd.f32 %v761, %v1069
        %v1071 = vpop.f32.mrb[0].mxu0
        %v1072 = vadd.f32 %v763, %v1071
        %1073 = vdwg.mxu0
        %v1074 = vand.u32 %v205, 4294901760
        %v1075 = vsub.f32 %v205, %v1074
        %1076 = vmatprep.subr.mxu0 %v1075
        %v1077 = vand.u32 %v204, 4294901760
        %v1078 = vsub.f32 %v204, %v1077
        %1079 = vmatpush1.msra.mxu0 %v1078
        %v1080 = vand.u32 %v336, 4294901760
        %v1081 = vsub.f32 %v336, %v1080
        %1082 = vmatprep.subr.mxu0 %v1081
        %v1083 = vand.u32 %v333, 4294901760
        %v1084 = vsub.f32 %v333, %v1083
        %1085 = vmatpush1.msra.mxu0 %v1084
        %1086 = vmatprep.subr.mxu0 0.0
        %1087 = vmatpush1.msra.mxu0 0.0
        %1088 = vmatprep.subr.mxu0 0.0
        %1089 = vmatpush1.msra.mxu0 0.0
        %1090 = vmatprep.subr.mxu0 0.0
        %1091 = vmatpush1.msra.mxu0 0.0
        %1092 = vmatprep.subr.mxu0 0.0
        %1093 = vmatpush1.msra.mxu0 0.0
        %1094 = vmatprep.subr.mxu0 0.0
        %1095 = vmatpush1.msra.mxu0 0.0
        %1096 = vmatprep.subr.mxu0 0.0
        %1097 = vmatpush1.msra.mxu0 0.0
        %1098 = vmatprep.subr.mxu0 0.0
        %1099 = vmatpush1.msra.mxu0 0.0
        %1100 = vmatprep.subr.mxu0 0.0
        %1101 = vmatpush1.msra.mxu0 0.0
        %1102 = vmatprep.subr.mxu0 0.0
        %1103 = vmatpush1.msra.mxu0 0.0
        %1104 = vmatprep.subr.mxu0 0.0
        %1105 = vmatpush1.msra.mxu0 0.0
        %1106 = vmatprep.subr.mxu0 0.0
        %1107 = vmatpush1.msra.mxu0 0.0
        %1108 = vmatprep.subr.mxu0 0.0
        %1109 = vmatpush1.msra.mxu0 0.0
        %1110 = vmatprep.subr.mxu0 0.0
        %1111 = vmatpush1.msra.mxu0 0.0
        %1112 = vmatprep.subr.mxu0 0.0
        %1113 = vmatpush1.msra.mxu0 0.0
        %1114 = vmatprep.subr.mxu0 0.0
        %1115 = vmatpush1.msra.mxu0 0.0
        %1116 = vmatprep.subr.mxu0 0.0
        %1117 = vmatpush1.msra.mxu0 0.0
        %1118 = vmatprep.subr.mxu0 0.0
        %1119 = vmatpush1.msra.mxu0 0.0
        %1120 = vmatprep.subr.mxu0 0.0
        %1121 = vmatpush1.msra.mxu0 0.0
        %1122 = vmatprep.subr.mxu0 0.0
        %1123 = vmatpush1.msra.mxu0 0.0
        %1124 = vmatprep.subr.mxu0 0.0
        %1125 = vmatpush1.msra.mxu0 0.0
        %1126 = vmatprep.subr.mxu0 0.0
        %1127 = vmatpush1.msra.mxu0 0.0
        %1128 = vmatprep.subr.mxu0 0.0
        %1129 = vmatpush1.msra.mxu0 0.0
        %1130 = vmatprep.subr.mxu0 0.0
        %1131 = vmatpush1.msra.mxu0 0.0
        %1132 = vmatprep.subr.mxu0 0.0
        %1133 = vmatpush1.msra.mxu0 0.0
        %1134 = vmatprep.subr.mxu0 0.0
        %1135 = vmatpush1.msra.mxu0 0.0
        %1136 = vmatprep.subr.mxu0 0.0
        %1137 = vmatpush1.msra.mxu0 0.0
        %1138 = vmatprep.subr.mxu0 0.0
        %1139 = vmatpush1.msra.mxu0 0.0
        %1140 = vmatprep.subr.mxu0 0.0
        %1141 = vmatpush1.msra.mxu0 0.0
        %1142 = vmatprep.subr.mxu0 0.0
        %1143 = vmatpush1.msra.mxu0 0.0
        %1144 = vmatprep.subr.mxu0 0.0
        %1145 = vmatpush1.msra.mxu0 0.0
        %1146 = vmatprep.mubr.f32.mxu0 0.0
        %v1147 = vand.u32 %v236, 4294901760
        %v1148 = vsub.f32 %v236, %v1147
        %1149 = vmatmul.mubr.f32.gmra.mrb[0].mxu0 %v1148
        %v1150 = vpop.f32.mrb[0].mxu0
        %v1151 = vadd.f32 %v853, %v1150
        %v1152 = vpop.f32.mrb[0].mxu0
        %v1153 = vadd.f32 %v855, %v1152
        %1154 = vmatprep.mubr.f32.mxu0 0.0
        %v1155 = vand.u32 %v239, 4294901760
        %v1156 = vsub.f32 %v239, %v1155
        %1157 = vmatmul.mubr.f32.gmra.mrb[0].mxu0 %v1156
        %v1158 = vpop.f32.mrb[0].mxu0
        %v1159 = vadd.f32 %v860, %v1158
        %v1160 = vpop.f32.mrb[0].mxu0
        %v1161 = vadd.f32 %v862, %v1160
        %1162 = vmatprep.mubr.f32.mxu0 0.0
        %v1163 = vand.u32 %v242, 4294901760
        %v1164 = vsub.f32 %v242, %v1163
        %1165 = vmatmul.mubr.f32.gmra.mrb[0].mxu0 %v1164
        %v1166 = vpop.f32.mrb[0].mxu0
        %v1167 = vadd.f32 %v867, %v1166
        %v1168 = vpop.f32.mrb[0].mxu0
        %v1169 = vadd.f32 %v869, %v1168
        %1170 = vmatprep.mubr.f32.mxu0 0.0
        %v1171 = vand.u32 %v245, 4294901760
        %v1172 = vsub.f32 %v245, %v1171
        %1173 = vmatmul.mubr.f32.gmra.mrb[0].mxu0 %v1172
        %v1174 = vpop.f32.mrb[0].mxu0
        %v1175 = vadd.f32 %v874, %v1174
        %v1176 = vpop.f32.mrb[0].mxu0
        %v1177 = vadd.f32 %v876, %v1176
        %1178 = vmatprep.mubr.f32.mxu0 0.0
        %v1179 = vand.u32 %v248, 4294901760
        %v1180 = vsub.f32 %v248, %v1179
        %1181 = vmatmul.mubr.f32.gmra.mrb[0].mxu0 %v1180
        %v1182 = vpop.f32.mrb[0].mxu0
        %v1183 = vadd.f32 %v881, %v1182
        %v1184 = vpop.f32.mrb[0].mxu0
        %v1185 = vadd.f32 %v883, %v1184
        %1186 = vmatprep.mubr.f32.mxu0 0.0
        %v1187 = vand.u32 %v251, 4294901760
        %v1188 = vsub.f32 %v251, %v1187
        %1189 = vmatmul.mubr.f32.gmra.mrb[0].mxu0 %v1188
        %v1190 = vpop.f32.mrb[0].mxu0
        %v1191 = vadd.f32 %v888, %v1190
        %v1192 = vpop.f32.mrb[0].mxu0
        %v1193 = vadd.f32 %v890, %v1192
        %1194 = vmatprep.mubr.f32.mxu0 0.0
        %v1195 = vand.u32 %v254, 4294901760
        %v1196 = vsub.f32 %v254, %v1195
        %1197 = vmatmul.mubr.f32.gmra.mrb[0].mxu0 %v1196
        %v1198 = vpop.f32.mrb[0].mxu0
        %v1199 = vadd.f32 %v895, %v1198
        %v1200 = vpop.f32.mrb[0].mxu0
        %v1201 = vadd.f32 %v897, %v1200
        %1202 = vmatprep.mubr.f32.mxu0 0.0
        %v1203 = vand.u32 %v257, 4294901760
        %v1204 = vsub.f32 %v257, %v1203
        %1205 = vmatmul.mubr.f32.gmra.mrb[0].mxu0 %v1204
        %v1206 = vpop.f32.mrb[0].mxu0
        %v1207 = vadd.f32 %v902, %v1206
        %v1208 = vpop.f32.mrb[0].mxu0
        %v1209 = vadd.f32 %v904, %v1208
        %1210 = vmatprep.mubr.f32.mxu0 0.0
        %v1211 = vand.u32 %v260, 4294901760
        %v1212 = vsub.f32 %v260, %v1211
        %1213 = vmatmul.mubr.f32.gmra.mrb[0].mxu0 %v1212
        %v1214 = vpop.f32.mrb[0].mxu0
        %v1215 = vadd.f32 %v909, %v1214
        %v1216 = vpop.f32.mrb[0].mxu0
        %v1217 = vadd.f32 %v911, %v1216
        %1218 = vmatprep.mubr.f32.mxu0 0.0
        %v1219 = vand.u32 %v263, 4294901760
        %v1220 = vsub.f32 %v263, %v1219
        %1221 = vmatmul.mubr.f32.gmra.mrb[0].mxu0 %v1220
        %v1222 = vpop.f32.mrb[0].mxu0
        %v1223 = vadd.f32 %v916, %v1222
        %v1224 = vpop.f32.mrb[0].mxu0
        %v1225 = vadd.f32 %v918, %v1224
        %1226 = vmatprep.mubr.f32.mxu0 0.0
        %v1227 = vand.u32 %v266, 4294901760
        %v1228 = vsub.f32 %v266, %v1227
        %1229 = vmatmul.mubr.f32.gmra.mrb[0].mxu0 %v1228
        %v1230 = vpop.f32.mrb[0].mxu0
        %v1231 = vadd.f32 %v923, %v1230
        %v1232 = vpop.f32.mrb[0].mxu0
        %v1233 = vadd.f32 %v925, %v1232
        %1234 = vmatprep.mubr.f32.mxu0 0.0
        %v1235 = vand.u32 %v269, 4294901760
        %v1236 = vsub.f32 %v269, %v1235
        %1237 = vmatmul.mubr.f32.gmra.mrb[0].mxu0 %v1236
        %v1238 = vpop.f32.mrb[0].mxu0
        %v1239 = vadd.f32 %v930, %v1238
        %v1240 = vpop.f32.mrb[0].mxu0
        %v1241 = vadd.f32 %v932, %v1240
        %1242 = vmatprep.mubr.f32.mxu0 0.0
        %v1243 = vand.u32 %v272, 4294901760
        %v1244 = vsub.f32 %v272, %v1243
        %1245 = vmatmul.mubr.f32.gmra.mrb[0].mxu0 %v1244
        %v1246 = vpop.f32.mrb[0].mxu0
        %v1247 = vadd.f32 %v937, %v1246
        %v1248 = vpop.f32.mrb[0].mxu0
        %v1249 = vadd.f32 %v939, %v1248
        %1250 = vmatprep.mubr.f32.mxu0 0.0
        %v1251 = vand.u32 %v275, 4294901760
        %v1252 = vsub.f32 %v275, %v1251
        %1253 = vmatmul.mubr.f32.gmra.mrb[0].mxu0 %v1252
        %v1254 = vpop.f32.mrb[0].mxu0
        %v1255 = vadd.f32 %v944, %v1254
        %v1256 = vpop.f32.mrb[0].mxu0
        %v1257 = vadd.f32 %v946, %v1256
        %1258 = vmatprep.mubr.f32.mxu0 0.0
        %v1259 = vand.u32 %v278, 4294901760
        %v1260 = vsub.f32 %v278, %v1259
        %1261 = vmatmul.mubr.f32.gmra.mrb[0].mxu0 %v1260
        %v1262 = vpop.f32.mrb[0].mxu0
        %v1263 = vadd.f32 %v951, %v1262
        %v1264 = vpop.f32.mrb[0].mxu0
        %v1265 = vadd.f32 %v953, %v1264
        %1266 = vmatprep.mubr.f32.mxu0 0.0
        %v1267 = vand.u32 %v281, 4294901760
        %v1268 = vsub.f32 %v281, %v1267
        %1269 = vmatmul.mubr.f32.gmra.mrb[0].mxu0 %v1268
        %v1270 = vpop.f32.mrb[0].mxu0
        %v1271 = vadd.f32 %v958, %v1270
        %v1272 = vpop.f32.mrb[0].mxu0
        %v1273 = vadd.f32 %v960, %v1272
        %1274 = vmatprep.mubr.f32.mxu0 0.0
        %v1275 = vand.u32 %v284, 4294901760
        %v1276 = vsub.f32 %v284, %v1275
        %1277 = vmatmul.mubr.f32.gmra.mrb[0].mxu0 %v1276
        %v1278 = vpop.f32.mrb[0].mxu0
        %v1279 = vadd.f32 %v965, %v1278
        %v1280 = vpop.f32.mrb[0].mxu0
        %v1281 = vadd.f32 %v967, %v1280
        %1282 = vmatprep.mubr.f32.mxu0 0.0
        %v1283 = vand.u32 %v287, 4294901760
        %v1284 = vsub.f32 %v287, %v1283
        %1285 = vmatmul.mubr.f32.gmra.mrb[0].mxu0 %v1284
        %v1286 = vpop.f32.mrb[0].mxu0
        %v1287 = vadd.f32 %v972, %v1286
        %v1288 = vpop.f32.mrb[0].mxu0
        %v1289 = vadd.f32 %v974, %v1288
        %1290 = vmatprep.mubr.f32.mxu0 0.0
        %v1291 = vand.u32 %v290, 4294901760
        %v1292 = vsub.f32 %v290, %v1291
        %1293 = vmatmul.mubr.f32.gmra.mrb[0].mxu0 %v1292
        %v1294 = vpop.f32.mrb[0].mxu0
        %v1295 = vadd.f32 %v979, %v1294
        %v1296 = vpop.f32.mrb[0].mxu0
        %v1297 = vadd.f32 %v981, %v1296
        %1298 = vmatprep.mubr.f32.mxu0 0.0
        %v1299 = vand.u32 %v293, 4294901760
        %v1300 = vsub.f32 %v293, %v1299
        %1301 = vmatmul.mubr.f32.gmra.mrb[0].mxu0 %v1300
        %v1302 = vpop.f32.mrb[0].mxu0
        %v1303 = vadd.f32 %v986, %v1302
        %v1304 = vpop.f32.mrb[0].mxu0
        %v1305 = vadd.f32 %v988, %v1304
        %1306 = vmatprep.mubr.f32.mxu0 0.0
        %v1307 = vand.u32 %v296, 4294901760
        %v1308 = vsub.f32 %v296, %v1307
        %1309 = vmatmul.mubr.f32.gmra.mrb[0].mxu0 %v1308
        %v1310 = vpop.f32.mrb[0].mxu0
        %v1311 = vadd.f32 %v993, %v1310
        %v1312 = vpop.f32.mrb[0].mxu0
        %v1313 = vadd.f32 %v995, %v1312
        %1314 = vmatprep.mubr.f32.mxu0 0.0
        %v1315 = vand.u32 %v299, 4294901760
        %v1316 = vsub.f32 %v299, %v1315
        %1317 = vmatmul.mubr.f32.gmra.mrb[0].mxu0 %v1316
        %v1318 = vpop.f32.mrb[0].mxu0
        %v1319 = vadd.f32 %v1000, %v1318
        %v1320 = vpop.f32.mrb[0].mxu0
        %v1321 = vadd.f32 %v1002, %v1320
        %1322 = vmatprep.mubr.f32.mxu0 0.0
        %v1323 = vand.u32 %v302, 4294901760
        %v1324 = vsub.f32 %v302, %v1323
        %1325 = vmatmul.mubr.f32.gmra.mrb[0].mxu0 %v1324
        %v1326 = vpop.f32.mrb[0].mxu0
        %v1327 = vadd.f32 %v1007, %v1326
        %v1328 = vpop.f32.mrb[0].mxu0
        %v1329 = vadd.f32 %v1009, %v1328
        %1330 = vmatprep.mubr.f32.mxu0 0.0
        %v1331 = vand.u32 %v305, 4294901760
        %v1332 = vsub.f32 %v305, %v1331
        %1333 = vmatmul.mubr.f32.gmra.mrb[0].mxu0 %v1332
        %v1334 = vpop.f32.mrb[0].mxu0
        %v1335 = vadd.f32 %v1014, %v1334
        %v1336 = vpop.f32.mrb[0].mxu0
        %v1337 = vadd.f32 %v1016, %v1336
        %1338 = vmatprep.mubr.f32.mxu0 0.0
        %v1339 = vand.u32 %v308, 4294901760
        %v1340 = vsub.f32 %v308, %v1339
        %1341 = vmatmul.mubr.f32.gmra.mrb[0].mxu0 %v1340
        %v1342 = vpop.f32.mrb[0].mxu0
        %v1343 = vadd.f32 %v1021, %v1342
        %v1344 = vpop.f32.mrb[0].mxu0
        %v1345 = vadd.f32 %v1023, %v1344
        %1346 = vmatprep.mubr.f32.mxu0 0.0
        %v1347 = vand.u32 %v311, 4294901760
        %v1348 = vsub.f32 %v311, %v1347
        %1349 = vmatmul.mubr.f32.gmra.mrb[0].mxu0 %v1348
        %v1350 = vpop.f32.mrb[0].mxu0
        %v1351 = vadd.f32 %v1028, %v1350
        %v1352 = vpop.f32.mrb[0].mxu0
        %v1353 = vadd.f32 %v1030, %v1352
        %1354 = vmatprep.mubr.f32.mxu0 0.0
        %v1355 = vand.u32 %v314, 4294901760
        %v1356 = vsub.f32 %v314, %v1355
        %1357 = vmatmul.mubr.f32.gmra.mrb[0].mxu0 %v1356
        %v1358 = vpop.f32.mrb[0].mxu0
        %v1359 = vadd.f32 %v1035, %v1358
        %v1360 = vpop.f32.mrb[0].mxu0
        %v1361 = vadd.f32 %v1037, %v1360
        %1362 = vmatprep.mubr.f32.mxu0 0.0
        %v1363 = vand.u32 %v317, 4294901760
        %v1364 = vsub.f32 %v317, %v1363
        %1365 = vmatmul.mubr.f32.gmra.mrb[0].mxu0 %v1364
        %v1366 = vpop.f32.mrb[0].mxu0
        %v1367 = vadd.f32 %v1042, %v1366
        %v1368 = vpop.f32.mrb[0].mxu0
        %v1369 = vadd.f32 %v1044, %v1368
        %1370 = vmatprep.mubr.f32.mxu0 0.0
        %v1371 = vand.u32 %v320, 4294901760
        %v1372 = vsub.f32 %v320, %v1371
        %1373 = vmatmul.mubr.f32.gmra.mrb[0].mxu0 %v1372
        %v1374 = vpop.f32.mrb[0].mxu0
        %v1375 = vadd.f32 %v1049, %v1374
        %v1376 = vpop.f32.mrb[0].mxu0
        %v1377 = vadd.f32 %v1051, %v1376
        %1378 = vmatprep.mubr.f32.mxu0 0.0
        %v1379 = vand.u32 %v323, 4294901760
        %v1380 = vsub.f32 %v323, %v1379
        %1381 = vmatmul.mubr.f32.gmra.mrb[0].mxu0 %v1380
        %v1382 = vpop.f32.mrb[0].mxu0
        %v1383 = vadd.f32 %v1056, %v1382
        %v1384 = vpop.f32.mrb[0].mxu0
        %v1385 = vadd.f32 %v1058, %v1384
        %1386 = vmatprep.mubr.f32.mxu0 0.0
        %v1387 = vand.u32 %v326, 4294901760
        %v1388 = vsub.f32 %v326, %v1387
        %1389 = vmatmul.mubr.f32.gmra.mrb[0].mxu0 %v1388
        %v1390 = vpop.f32.mrb[0].mxu0
        %v1391 = vadd.f32 %v1063, %v1390
        %v1392 = vpop.f32.mrb[0].mxu0
        %v1393 = vadd.f32 %v1065, %v1392
        %1394 = vmatprep.mubr.f32.mxu0 0.0
        %v1395 = vand.u32 %v329, 4294901760
        %v1396 = vsub.f32 %v329, %v1395
        %1397 = vmatmul.mubr.f32.gmra.mrb[0].mxu0 %v1396
        %v1398 = vpop.f32.mrb[0].mxu0
        %v1399 = vadd.f32 %v1070, %v1398
        %v1400 = vpop.f32.mrb[0].mxu0
        %v1401 = vadd.f32 %v1072, %v1400
        %1402 = vdwg.mxu0
        %v1403 = vand.u32 %v205, 4294901760
        %1404 = vmatprep.subr.mxu0 %v1403
        %v1405 = vand.u32 %v204, 4294901760
        %1406 = vmatpush1.msra.mxu0 %v1405
        %v1407 = vand.u32 %v336, 4294901760
        %1408 = vmatprep.subr.mxu0 %v1407
        %v1409 = vand.u32 %v333, 4294901760
        %1410 = vmatpush1.msra.mxu0 %v1409
        %1411 = vmatprep.subr.mxu0 0.0
        %1412 = vmatpush1.msra.mxu0 0.0
        %1413 = vmatprep.subr.mxu0 0.0
        %1414 = vmatpush1.msra.mxu0 0.0
        %1415 = vmatprep.subr.mxu0 0.0
        %1416 = vmatpush1.msra.mxu0 0.0
        %1417 = vmatprep.subr.mxu0 0.0
        %1418 = vmatpush1.msra.mxu0 0.0
        %1419 = vmatprep.subr.mxu0 0.0
        %1420 = vmatpush1.msra.mxu0 0.0
        %1421 = vmatprep.subr.mxu0 0.0
        %1422 = vmatpush1.msra.mxu0 0.0
        %1423 = vmatprep.subr.mxu0 0.0
        %1424 = vmatpush1.msra.mxu0 0.0
        %1425 = vmatprep.subr.mxu0 0.0
        %1426 = vmatpush1.msra.mxu0 0.0
        %1427 = vmatprep.subr.mxu0 0.0
        %1428 = vmatpush1.msra.mxu0 0.0
        %1429 = vmatprep.subr.mxu0 0.0
        %1430 = vmatpush1.msra.mxu0 0.0
        %1431 = vmatprep.subr.mxu0 0.0
        %1432 = vmatpush1.msra.mxu0 0.0
        %1433 = vmatprep.subr.mxu0 0.0
        %1434 = vmatpush1.msra.mxu0 0.0
        %1435 = vmatprep.subr.mxu0 0.0
        %1436 = vmatpush1.msra.mxu0 0.0
        %1437 = vmatprep.subr.mxu0 0.0
        %1438 = vmatpush1.msra.mxu0 0.0
        %1439 = vmatprep.subr.mxu0 0.0
        %1440 = vmatpush1.msra.mxu0 0.0
        %1441 = vmatprep.subr.mxu0 0.0
        %1442 = vmatpush1.msra.mxu0 0.0
        %1443 = vmatprep.subr.mxu0 0.0
        %1444 = vmatpush1.msra.mxu0 0.0
        %1445 = vmatprep.subr.mxu0 0.0
        %1446 = vmatpush1.msra.mxu0 0.0
        %1447 = vmatprep.subr.mxu0 0.0
        %1448 = vmatpush1.msra.mxu0 0.0
        %1449 = vmatprep.subr.mxu0 0.0
        %1450 = vmatpush1.msra.mxu0 0.0
        %1451 = vmatprep.subr.mxu0 0.0
        %1452 = vmatpush1.msra.mxu0 0.0
        %1453 = vmatprep.subr.mxu0 0.0
        %1454 = vmatpush1.msra.mxu0 0.0
        %1455 = vmatprep.subr.mxu0 0.0
        %1456 = vmatpush1.msra.mxu0 0.0
        %1457 = vmatprep.subr.mxu0 0.0
        %1458 = vmatpush1.msra.mxu0 0.0
        %1459 = vmatprep.subr.mxu0 0.0
        %1460 = vmatpush1.msra.mxu0 0.0
        %1461 = vmatprep.subr.mxu0 0.0
        %1462 = vmatpush1.msra.mxu0 0.0
        %1463 = vmatprep.subr.mxu0 0.0
        %1464 = vmatpush1.msra.mxu0 0.0
        %1465 = vmatprep.subr.mxu0 0.0
        %1466 = vmatpush1.msra.mxu0 0.0
        %1467 = vmatprep.subr.mxu0 0.0
        %1468 = vmatpush1.msra.mxu0 0.0
        %1469 = vmatprep.subr.mxu0 0.0
        %1470 = vmatpush1.msra.mxu0 0.0
        %1471 = vmatprep.mubr.f32.mxu0 0.0
        %v1472 = vand.u32 %v236, 4294901760
        %v1473 = vsub.f32 %v236, %v1472
        %v1474 = vand.u32 %v1473, 4294901760
        %1475 = vmatmul.mubr.f32.gmra.mrb[0].mxu0 %v1474
        %v1476 = vpop.f32.mrb[0].mxu0
        %v1477 = vadd.f32 %v1151, %v1476
        %v1478 = vpop.f32.mrb[0].mxu0
        %v1479 = vadd.f32 %v1153, %v1478
        %1480 = vmatprep.mubr.f32.mxu0 0.0
        %v1481 = vand.u32 %v239, 4294901760
        %v1482 = vsub.f32 %v239, %v1481
        %v1483 = vand.u32 %v1482, 4294901760
        %1484 = vmatmul.mubr.f32.gmra.mrb[0].mxu0 %v1483
        %v1485 = vpop.f32.mrb[0].mxu0
        %v1486 = vadd.f32 %v1159, %v1485
        %v1487 = vpop.f32.mrb[0].mxu0
        %v1488 = vadd.f32 %v1161, %v1487
        %1489 = vmatprep.mubr.f32.mxu0 0.0
        %v1490 = vand.u32 %v242, 4294901760
        %v1491 = vsub.f32 %v242, %v1490
        %v1492 = vand.u32 %v1491, 4294901760
        %1493 = vmatmul.mubr.f32.gmra.mrb[0].mxu0 %v1492
        %v1494 = vpop.f32.mrb[0].mxu0
        %v1495 = vadd.f32 %v1167, %v1494
        %v1496 = vpop.f32.mrb[0].mxu0
        %v1497 = vadd.f32 %v1169, %v1496
        %1498 = vmatprep.mubr.f32.mxu0 0.0
        %v1499 = vand.u32 %v245, 4294901760
        %v1500 = vsub.f32 %v245, %v1499
        %v1501 = vand.u32 %v1500, 4294901760
        %1502 = vmatmul.mubr.f32.gmra.mrb[0].mxu0 %v1501
        %v1503 = vpop.f32.mrb[0].mxu0
        %v1504 = vadd.f32 %v1175, %v1503
        %v1505 = vpop.f32.mrb[0].mxu0
        %v1506 = vadd.f32 %v1177, %v1505
        %1507 = vmatprep.mubr.f32.mxu0 0.0
        %v1508 = vand.u32 %v248, 4294901760
        %v1509 = vsub.f32 %v248, %v1508
        %v1510 = vand.u32 %v1509, 4294901760
        %1511 = vmatmul.mubr.f32.gmra.mrb[0].mxu0 %v1510
        %v1512 = vpop.f32.mrb[0].mxu0
        %v1513 = vadd.f32 %v1183, %v1512
        %v1514 = vpop.f32.mrb[0].mxu0
        %v1515 = vadd.f32 %v1185, %v1514
        %1516 = vmatprep.mubr.f32.mxu0 0.0
        %v1517 = vand.u32 %v251, 4294901760
        %v1518 = vsub.f32 %v251, %v1517
        %v1519 = vand.u32 %v1518, 4294901760
        %1520 = vmatmul.mubr.f32.gmra.mrb[0].mxu0 %v1519
        %v1521 = vpop.f32.mrb[0].mxu0
        %v1522 = vadd.f32 %v1191, %v1521
        %v1523 = vpop.f32.mrb[0].mxu0
        %v1524 = vadd.f32 %v1193, %v1523
        %1525 = vmatprep.mubr.f32.mxu0 0.0
        %v1526 = vand.u32 %v254, 4294901760
        %v1527 = vsub.f32 %v254, %v1526
        %v1528 = vand.u32 %v1527, 4294901760
        %1529 = vmatmul.mubr.f32.gmra.mrb[0].mxu0 %v1528
        %v1530 = vpop.f32.mrb[0].mxu0
        %v1531 = vadd.f32 %v1199, %v1530
        %v1532 = vpop.f32.mrb[0].mxu0
        %v1533 = vadd.f32 %v1201, %v1532
        %1534 = vmatprep.mubr.f32.mxu0 0.0
        %v1535 = vand.u32 %v257, 4294901760
        %v1536 = vsub.f32 %v257, %v1535
        %v1537 = vand.u32 %v1536, 4294901760
        %1538 = vmatmul.mubr.f32.gmra.mrb[0].mxu0 %v1537
        %v1539 = vpop.f32.mrb[0].mxu0
        %v1540 = vadd.f32 %v1207, %v1539
        %v1541 = vpop.f32.mrb[0].mxu0
        %v1542 = vadd.f32 %v1209, %v1541
        %1543 = vmatprep.mubr.f32.mxu0 0.0
        %v1544 = vand.u32 %v260, 4294901760
        %v1545 = vsub.f32 %v260, %v1544
        %v1546 = vand.u32 %v1545, 4294901760
        %1547 = vmatmul.mubr.f32.gmra.mrb[0].mxu0 %v1546
        %v1548 = vpop.f32.mrb[0].mxu0
        %v1549 = vadd.f32 %v1215, %v1548
        %v1550 = vpop.f32.mrb[0].mxu0
        %v1551 = vadd.f32 %v1217, %v1550
        %1552 = vmatprep.mubr.f32.mxu0 0.0
        %v1553 = vand.u32 %v263, 4294901760
        %v1554 = vsub.f32 %v263, %v1553
        %v1555 = vand.u32 %v1554, 4294901760
        %1556 = vmatmul.mubr.f32.gmra.mrb[0].mxu0 %v1555
        %v1557 = vpop.f32.mrb[0].mxu0
        %v1558 = vadd.f32 %v1223, %v1557
        %v1559 = vpop.f32.mrb[0].mxu0
        %v1560 = vadd.f32 %v1225, %v1559
        %1561 = vmatprep.mubr.f32.mxu0 0.0
        %v1562 = vand.u32 %v266, 4294901760
        %v1563 = vsub.f32 %v266, %v1562
        %v1564 = vand.u32 %v1563, 4294901760
        %1565 = vmatmul.mubr.f32.gmra.mrb[0].mxu0 %v1564
        %v1566 = vpop.f32.mrb[0].mxu0
        %v1567 = vadd.f32 %v1231, %v1566
        %v1568 = vpop.f32.mrb[0].mxu0
        %v1569 = vadd.f32 %v1233, %v1568
        %1570 = vmatprep.mubr.f32.mxu0 0.0
        %v1571 = vand.u32 %v269, 4294901760
        %v1572 = vsub.f32 %v269, %v1571
        %v1573 = vand.u32 %v1572, 4294901760
        %1574 = vmatmul.mubr.f32.gmra.mrb[0].mxu0 %v1573
        %v1575 = vpop.f32.mrb[0].mxu0
        %v1576 = vadd.f32 %v1239, %v1575
        %v1577 = vpop.f32.mrb[0].mxu0
        %v1578 = vadd.f32 %v1241, %v1577
        %1579 = vmatprep.mubr.f32.mxu0 0.0
        %v1580 = vand.u32 %v272, 4294901760
        %v1581 = vsub.f32 %v272, %v1580
        %v1582 = vand.u32 %v1581, 4294901760
        %1583 = vmatmul.mubr.f32.gmra.mrb[0].mxu0 %v1582
        %v1584 = vpop.f32.mrb[0].mxu0
        %v1585 = vadd.f32 %v1247, %v1584
        %v1586 = vpop.f32.mrb[0].mxu0
        %v1587 = vadd.f32 %v1249, %v1586
        %1588 = vmatprep.mubr.f32.mxu0 0.0
        %v1589 = vand.u32 %v275, 4294901760
        %v1590 = vsub.f32 %v275, %v1589
        %v1591 = vand.u32 %v1590, 4294901760
        %1592 = vmatmul.mubr.f32.gmra.mrb[0].mxu0 %v1591
        %v1593 = vpop.f32.mrb[0].mxu0
        %v1594 = vadd.f32 %v1255, %v1593
        %v1595 = vpop.f32.mrb[0].mxu0
        %v1596 = vadd.f32 %v1257, %v1595
        %1597 = vmatprep.mubr.f32.mxu0 0.0
        %v1598 = vand.u32 %v278, 4294901760
        %v1599 = vsub.f32 %v278, %v1598
        %v1600 = vand.u32 %v1599, 4294901760
        %1601 = vmatmul.mubr.f32.gmra.mrb[0].mxu0 %v1600
        %v1602 = vpop.f32.mrb[0].mxu0
        %v1603 = vadd.f32 %v1263, %v1602
        %v1604 = vpop.f32.mrb[0].mxu0
        %v1605 = vadd.f32 %v1265, %v1604
        %1606 = vmatprep.mubr.f32.mxu0 0.0
        %v1607 = vand.u32 %v281, 4294901760
        %v1608 = vsub.f32 %v281, %v1607
        %v1609 = vand.u32 %v1608, 4294901760
        %1610 = vmatmul.mubr.f32.gmra.mrb[0].mxu0 %v1609
        %v1611 = vpop.f32.mrb[0].mxu0
        %v1612 = vadd.f32 %v1271, %v1611
        %v1613 = vpop.f32.mrb[0].mxu0
        %v1614 = vadd.f32 %v1273, %v1613
        %1615 = vmatprep.mubr.f32.mxu0 0.0
        %v1616 = vand.u32 %v284, 4294901760
        %v1617 = vsub.f32 %v284, %v1616
        %v1618 = vand.u32 %v1617, 4294901760
        %1619 = vmatmul.mubr.f32.gmra.mrb[0].mxu0 %v1618
        %v1620 = vpop.f32.mrb[0].mxu0
        %v1621 = vadd.f32 %v1279, %v1620
        %v1622 = vpop.f32.mrb[0].mxu0
        %v1623 = vadd.f32 %v1281, %v1622
        %1624 = vmatprep.mubr.f32.mxu0 0.0
        %v1625 = vand.u32 %v287, 4294901760
        %v1626 = vsub.f32 %v287, %v1625
        %v1627 = vand.u32 %v1626, 4294901760
        %1628 = vmatmul.mubr.f32.gmra.mrb[0].mxu0 %v1627
        %v1629 = vpop.f32.mrb[0].mxu0
        %v1630 = vadd.f32 %v1287, %v1629
        %v1631 = vpop.f32.mrb[0].mxu0
        %v1632 = vadd.f32 %v1289, %v1631
        %1633 = vmatprep.mubr.f32.mxu0 0.0
        %v1634 = vand.u32 %v290, 4294901760
        %v1635 = vsub.f32 %v290, %v1634
        %v1636 = vand.u32 %v1635, 4294901760
        %1637 = vmatmul.mubr.f32.gmra.mrb[0].mxu0 %v1636
        %v1638 = vpop.f32.mrb[0].mxu0
        %v1639 = vadd.f32 %v1295, %v1638
        %v1640 = vpop.f32.mrb[0].mxu0
        %v1641 = vadd.f32 %v1297, %v1640
        %1642 = vmatprep.mubr.f32.mxu0 0.0
        %v1643 = vand.u32 %v293, 4294901760
        %v1644 = vsub.f32 %v293, %v1643
        %v1645 = vand.u32 %v1644, 4294901760
        %1646 = vmatmul.mubr.f32.gmra.mrb[0].mxu0 %v1645
        %v1647 = vpop.f32.mrb[0].mxu0
        %v1648 = vadd.f32 %v1303, %v1647
        %v1649 = vpop.f32.mrb[0].mxu0
        %v1650 = vadd.f32 %v1305, %v1649
        %1651 = vmatprep.mubr.f32.mxu0 0.0
        %v1652 = vand.u32 %v296, 4294901760
        %v1653 = vsub.f32 %v296, %v1652
        %v1654 = vand.u32 %v1653, 4294901760
        %1655 = vmatmul.mubr.f32.gmra.mrb[0].mxu0 %v1654
        %v1656 = vpop.f32.mrb[0].mxu0
        %v1657 = vadd.f32 %v1311, %v1656
        %v1658 = vpop.f32.mrb[0].mxu0
        %v1659 = vadd.f32 %v1313, %v1658
        %1660 = vmatprep.mubr.f32.mxu0 0.0
        %v1661 = vand.u32 %v299, 4294901760
        %v1662 = vsub.f32 %v299, %v1661
        %v1663 = vand.u32 %v1662, 4294901760
        %1664 = vmatmul.mubr.f32.gmra.mrb[0].mxu0 %v1663
        %v1665 = vpop.f32.mrb[0].mxu0
        %v1666 = vadd.f32 %v1319, %v1665
        %v1667 = vpop.f32.mrb[0].mxu0
        %v1668 = vadd.f32 %v1321, %v1667
        %1669 = vmatprep.mubr.f32.mxu0 0.0
        %v1670 = vand.u32 %v302, 4294901760
        %v1671 = vsub.f32 %v302, %v1670
        %v1672 = vand.u32 %v1671, 4294901760
        %1673 = vmatmul.mubr.f32.gmra.mrb[0].mxu0 %v1672
        %v1674 = vpop.f32.mrb[0].mxu0
        %v1675 = vadd.f32 %v1327, %v1674
        %v1676 = vpop.f32.mrb[0].mxu0
        %v1677 = vadd.f32 %v1329, %v1676
        %1678 = vmatprep.mubr.f32.mxu0 0.0
        %v1679 = vand.u32 %v305, 4294901760
        %v1680 = vsub.f32 %v305, %v1679
        %v1681 = vand.u32 %v1680, 4294901760
        %1682 = vmatmul.mubr.f32.gmra.mrb[0].mxu0 %v1681
        %v1683 = vpop.f32.mrb[0].mxu0
        %v1684 = vadd.f32 %v1335, %v1683
        %v1685 = vpop.f32.mrb[0].mxu0
        %v1686 = vadd.f32 %v1337, %v1685
        %1687 = vmatprep.mubr.f32.mxu0 0.0
        %v1688 = vand.u32 %v308, 4294901760
        %v1689 = vsub.f32 %v308, %v1688
        %v1690 = vand.u32 %v1689, 4294901760
        %1691 = vmatmul.mubr.f32.gmra.mrb[0].mxu0 %v1690
        %v1692 = vpop.f32.mrb[0].mxu0
        %v1693 = vadd.f32 %v1343, %v1692
        %v1694 = vpop.f32.mrb[0].mxu0
        %v1695 = vadd.f32 %v1345, %v1694
        %1696 = vmatprep.mubr.f32.mxu0 0.0
        %v1697 = vand.u32 %v311, 4294901760
        %v1698 = vsub.f32 %v311, %v1697
        %v1699 = vand.u32 %v1698, 4294901760
        %1700 = vmatmul.mubr.f32.gmra.mrb[0].mxu0 %v1699
        %v1701 = vpop.f32.mrb[0].mxu0
        %v1702 = vadd.f32 %v1351, %v1701
        %v1703 = vpop.f32.mrb[0].mxu0
        %v1704 = vadd.f32 %v1353, %v1703
        %1705 = vmatprep.mubr.f32.mxu0 0.0
        %v1706 = vand.u32 %v314, 4294901760
        %v1707 = vsub.f32 %v314, %v1706
        %v1708 = vand.u32 %v1707, 4294901760
        %1709 = vmatmul.mubr.f32.gmra.mrb[0].mxu0 %v1708
        %v1710 = vpop.f32.mrb[0].mxu0
        %v1711 = vadd.f32 %v1359, %v1710
        %v1712 = vpop.f32.mrb[0].mxu0
        %v1713 = vadd.f32 %v1361, %v1712
        %1714 = vmatprep.mubr.f32.mxu0 0.0
        %v1715 = vand.u32 %v317, 4294901760
        %v1716 = vsub.f32 %v317, %v1715
        %v1717 = vand.u32 %v1716, 4294901760
        %1718 = vmatmul.mubr.f32.gmra.mrb[0].mxu0 %v1717
        %v1719 = vpop.f32.mrb[0].mxu0
        %v1720 = vadd.f32 %v1367, %v1719
        %v1721 = vpop.f32.mrb[0].mxu0
        %v1722 = vadd.f32 %v1369, %v1721
        %1723 = vmatprep.mubr.f32.mxu0 0.0
        %v1724 = vand.u32 %v320, 4294901760
        %v1725 = vsub.f32 %v320, %v1724
        %v1726 = vand.u32 %v1725, 4294901760
        %1727 = vmatmul.mubr.f32.gmra.mrb[0].mxu0 %v1726
        %v1728 = vpop.f32.mrb[0].mxu0
        %v1729 = vadd.f32 %v1375, %v1728
        %v1730 = vpop.f32.mrb[0].mxu0
        %v1731 = vadd.f32 %v1377, %v1730
        %1732 = vmatprep.mubr.f32.mxu0 0.0
        %v1733 = vand.u32 %v323, 4294901760
        %v1734 = vsub.f32 %v323, %v1733
        %v1735 = vand.u32 %v1734, 4294901760
        %1736 = vmatmul.mubr.f32.gmra.mrb[0].mxu0 %v1735
        %v1737 = vpop.f32.mrb[0].mxu0
        %v1738 = vadd.f32 %v1383, %v1737
        %v1739 = vpop.f32.mrb[0].mxu0
        %v1740 = vadd.f32 %v1385, %v1739
        %1741 = vmatprep.mubr.f32.mxu0 0.0
        %v1742 = vand.u32 %v326, 4294901760
        %v1743 = vsub.f32 %v326, %v1742
        %v1744 = vand.u32 %v1743, 4294901760
        %1745 = vmatmul.mubr.f32.gmra.mrb[0].mxu0 %v1744
        %v1746 = vpop.f32.mrb[0].mxu0
        %v1747 = vadd.f32 %v1391, %v1746
        %v1748 = vpop.f32.mrb[0].mxu0
        %v1749 = vadd.f32 %v1393, %v1748
        %1750 = vmatprep.mubr.f32.mxu0 0.0
        %v1751 = vand.u32 %v329, 4294901760
        %v1752 = vsub.f32 %v329, %v1751
        %v1753 = vand.u32 %v1752, 4294901760
        %1754 = vmatmul.mubr.f32.gmra.mrb[0].mxu0 %v1753
        %v1755 = vpop.f32.mrb[0].mxu0
        %v1756 = vadd.f32 %v1399, %v1755
        %v1757 = vpop.f32.mrb[0].mxu0
        %v1758 = vadd.f32 %v1401, %v1757
        %1759 = vdwg.mxu0
        %v1760 = vand.u32 %v205, 4294901760
        %v1761 = vsub.f32 %v205, %v1760
        %v1762 = vand.u32 %v1761, 4294901760
        %1763 = vmatprep.subr.mxu0 %v1762
        %v1764 = vand.u32 %v204, 4294901760
        %v1765 = vsub.f32 %v204, %v1764
        %v1766 = vand.u32 %v1765, 4294901760
        %1767 = vmatpush1.msra.mxu0 %v1766
        %v1768 = vand.u32 %v336, 4294901760
        %v1769 = vsub.f32 %v336, %v1768
        %v1770 = vand.u32 %v1769, 4294901760
        %1771 = vmatprep.subr.mxu0 %v1770
        %v1772 = vand.u32 %v333, 4294901760
        %v1773 = vsub.f32 %v333, %v1772
        %v1774 = vand.u32 %v1773, 4294901760
        %1775 = vmatpush1.msra.mxu0 %v1774
        %1776 = vmatprep.subr.mxu0 0.0
        %1777 = vmatpush1.msra.mxu0 0.0
        %1778 = vmatprep.subr.mxu0 0.0
        %1779 = vmatpush1.msra.mxu0 0.0
        %1780 = vmatprep.subr.mxu0 0.0
        %1781 = vmatpush1.msra.mxu0 0.0
        %1782 = vmatprep.subr.mxu0 0.0
        %1783 = vmatpush1.msra.mxu0 0.0
        %1784 = vmatprep.subr.mxu0 0.0
        %1785 = vmatpush1.msra.mxu0 0.0
        %1786 = vmatprep.subr.mxu0 0.0
        %1787 = vmatpush1.msra.mxu0 0.0
        %1788 = vmatprep.subr.mxu0 0.0
        %1789 = vmatpush1.msra.mxu0 0.0
        %1790 = vmatprep.subr.mxu0 0.0
        %1791 = vmatpush1.msra.mxu0 0.0
        %1792 = vmatprep.subr.mxu0 0.0
        %1793 = vmatpush1.msra.mxu0 0.0
        %1794 = vmatprep.subr.mxu0 0.0
        %1795 = vmatpush1.msra.mxu0 0.0
        %1796 = vmatprep.subr.mxu0 0.0
        %1797 = vmatpush1.msra.mxu0 0.0
        %1798 = vmatprep.subr.mxu0 0.0
        %1799 = vmatpush1.msra.mxu0 0.0
        %1800 = vmatprep.subr.mxu0 0.0
        %1801 = vmatpush1.msra.mxu0 0.0
        %1802 = vmatprep.subr.mxu0 0.0
        %1803 = vmatpush1.msra.mxu0 0.0
        %1804 = vmatprep.subr.mxu0 0.0
        %1805 = vmatpush1.msra.mxu0 0.0
        %1806 = vmatprep.subr.mxu0 0.0
        %1807 = vmatpush1.msra.mxu0 0.0
        %1808 = vmatprep.subr.mxu0 0.0
        %1809 = vmatpush1.msra.mxu0 0.0
        %1810 = vmatprep.subr.mxu0 0.0
        %1811 = vmatpush1.msra.mxu0 0.0
        %1812 = vmatprep.subr.mxu0 0.0
        %1813 = vmatpush1.msra.mxu0 0.0
        %1814 = vmatprep.subr.mxu0 0.0
        %1815 = vmatpush1.msra.mxu0 0.0
        %1816 = vmatprep.subr.mxu0 0.0
        %1817 = vmatpush1.msra.mxu0 0.0
        %1818 = vmatprep.subr.mxu0 0.0
        %1819 = vmatpush1.msra.mxu0 0.0
        %1820 = vmatprep.subr.mxu0 0.0
        %1821 = vmatpush1.msra.mxu0 0.0
        %1822 = vmatprep.subr.mxu0 0.0
        %1823 = vmatpush1.msra.mxu0 0.0
        %1824 = vmatprep.subr.mxu0 0.0
        %1825 = vmatpush1.msra.mxu0 0.0
        %1826 = vmatprep.subr.mxu0 0.0
        %1827 = vmatpush1.msra.mxu0 0.0
        %1828 = vmatprep.subr.mxu0 0.0
        %1829 = vmatpush1.msra.mxu0 0.0
        %1830 = vmatprep.subr.mxu0 0.0
        %1831 = vmatpush1.msra.mxu0 0.0
        %1832 = vmatprep.subr.mxu0 0.0
        %1833 = vmatpush1.msra.mxu0 0.0
        %1834 = vmatprep.subr.mxu0 0.0
        %1835 = vmatpush1.msra.mxu0 0.0
        %1836 = vmatprep.mubr.f32.mxu0 0.0
        %v1837 = vand.u32 %v236, 4294901760
        %1838 = vmatmul.mubr.f32.gmra.mrb[0].mxu0 %v1837
        %v1839 = vpop.f32.mrb[0].mxu0
        %v1840 = vadd.f32 %v1477, %v1839
        %v1841 = vpop.f32.mrb[0].mxu0
        %v1842 = vadd.f32 %v1479, %v1841
        %1843 = vmatprep.mubr.f32.mxu0 0.0
        %v1844 = vand.u32 %v239, 4294901760
        %1845 = vmatmul.mubr.f32.gmra.mrb[0].mxu0 %v1844
        %v1846 = vpop.f32.mrb[0].mxu0
        %v1847 = vadd.f32 %v1486, %v1846
        %v1848 = vpop.f32.mrb[0].mxu0
        %v1849 = vadd.f32 %v1488, %v1848
        %1850 = vmatprep.mubr.f32.mxu0 0.0
        %v1851 = vand.u32 %v242, 4294901760
        %1852 = vmatmul.mubr.f32.gmra.mrb[0].mxu0 %v1851
        %v1853 = vpop.f32.mrb[0].mxu0
        %v1854 = vadd.f32 %v1495, %v1853
        %v1855 = vpop.f32.mrb[0].mxu0
        %v1856 = vadd.f32 %v1497, %v1855
        %1857 = vmatprep.mubr.f32.mxu0 0.0
        %v1858 = vand.u32 %v245, 4294901760
        %1859 = vmatmul.mubr.f32.gmra.mrb[0].mxu0 %v1858
        %v1860 = vpop.f32.mrb[0].mxu0
        %v1861 = vadd.f32 %v1504, %v1860
        %v1862 = vpop.f32.mrb[0].mxu0
        %v1863 = vadd.f32 %v1506, %v1862
        %1864 = vmatprep.mubr.f32.mxu0 0.0
        %v1865 = vand.u32 %v248, 4294901760
        %1866 = vmatmul.mubr.f32.gmra.mrb[0].mxu0 %v1865
        %v1867 = vpop.f32.mrb[0].mxu0
        %v1868 = vadd.f32 %v1513, %v1867
        %v1869 = vpop.f32.mrb[0].mxu0
        %v1870 = vadd.f32 %v1515, %v1869
        %1871 = vmatprep.mubr.f32.mxu0 0.0
        %v1872 = vand.u32 %v251, 4294901760
        %1873 = vmatmul.mubr.f32.gmra.mrb[0].mxu0 %v1872
        %v1874 = vpop.f32.mrb[0].mxu0
        %v1875 = vadd.f32 %v1522, %v1874
        %v1876 = vpop.f32.mrb[0].mxu0
        %v1877 = vadd.f32 %v1524, %v1876
        %1878 = vmatprep.mubr.f32.mxu0 0.0
        %v1879 = vand.u32 %v254, 4294901760
        %1880 = vmatmul.mubr.f32.gmra.mrb[0].mxu0 %v1879
        %v1881 = vpop.f32.mrb[0].mxu0
        %v1882 = vadd.f32 %v1531, %v1881
        %v1883 = vpop.f32.mrb[0].mxu0
        %v1884 = vadd.f32 %v1533, %v1883
        %1885 = vmatprep.mubr.f32.mxu0 0.0
        %v1886 = vand.u32 %v257, 4294901760
        %1887 = vmatmul.mubr.f32.gmra.mrb[0].mxu0 %v1886
        %v1888 = vpop.f32.mrb[0].mxu0
        %v1889 = vadd.f32 %v1540, %v1888
        %v1890 = vpop.f32.mrb[0].mxu0
        %v1891 = vadd.f32 %v1542, %v1890
        %1892 = vmatprep.mubr.f32.mxu0 0.0
        %v1893 = vand.u32 %v260, 4294901760
        %1894 = vmatmul.mubr.f32.gmra.mrb[0].mxu0 %v1893
        %v1895 = vpop.f32.mrb[0].mxu0
        %v1896 = vadd.f32 %v1549, %v1895
        %v1897 = vpop.f32.mrb[0].mxu0
        %v1898 = vadd.f32 %v1551, %v1897
        %1899 = vmatprep.mubr.f32.mxu0 0.0
        %v1900 = vand.u32 %v263, 4294901760
        %1901 = vmatmul.mubr.f32.gmra.mrb[0].mxu0 %v1900
        %v1902 = vpop.f32.mrb[0].mxu0
        %v1903 = vadd.f32 %v1558, %v1902
        %v1904 = vpop.f32.mrb[0].mxu0
        %v1905 = vadd.f32 %v1560, %v1904
        %1906 = vmatprep.mubr.f32.mxu0 0.0
        %v1907 = vand.u32 %v266, 4294901760
        %1908 = vmatmul.mubr.f32.gmra.mrb[0].mxu0 %v1907
        %v1909 = vpop.f32.mrb[0].mxu0
        %v1910 = vadd.f32 %v1567, %v1909
        %v1911 = vpop.f32.mrb[0].mxu0
        %v1912 = vadd.f32 %v1569, %v1911
        %1913 = vmatprep.mubr.f32.mxu0 0.0
        %v1914 = vand.u32 %v269, 4294901760
        %1915 = vmatmul.mubr.f32.gmra.mrb[0].mxu0 %v1914
        %v1916 = vpop.f32.mrb[0].mxu0
        %v1917 = vadd.f32 %v1576, %v1916
        %v1918 = vpop.f32.mrb[0].mxu0
        %v1919 = vadd.f32 %v1578, %v1918
        %1920 = vmatprep.mubr.f32.mxu0 0.0
        %v1921 = vand.u32 %v272, 4294901760
        %1922 = vmatmul.mubr.f32.gmra.mrb[0].mxu0 %v1921
        %v1923 = vpop.f32.mrb[0].mxu0
        %v1924 = vadd.f32 %v1585, %v1923
        %v1925 = vpop.f32.mrb[0].mxu0
        %v1926 = vadd.f32 %v1587, %v1925
        %1927 = vmatprep.mubr.f32.mxu0 0.0
        %v1928 = vand.u32 %v275, 4294901760
        %1929 = vmatmul.mubr.f32.gmra.mrb[0].mxu0 %v1928
        %v1930 = vpop.f32.mrb[0].mxu0
        %v1931 = vadd.f32 %v1594, %v1930
        %v1932 = vpop.f32.mrb[0].mxu0
        %v1933 = vadd.f32 %v1596, %v1932
        %1934 = vmatprep.mubr.f32.mxu0 0.0
        %v1935 = vand.u32 %v278, 4294901760
        %1936 = vmatmul.mubr.f32.gmra.mrb[0].mxu0 %v1935
        %v1937 = vpop.f32.mrb[0].mxu0
        %v1938 = vadd.f32 %v1603, %v1937
        %v1939 = vpop.f32.mrb[0].mxu0
        %v1940 = vadd.f32 %v1605, %v1939
        %1941 = vmatprep.mubr.f32.mxu0 0.0
        %v1942 = vand.u32 %v281, 4294901760
        %1943 = vmatmul.mubr.f32.gmra.mrb[0].mxu0 %v1942
        %v1944 = vpop.f32.mrb[0].mxu0
        %v1945 = vadd.f32 %v1612, %v1944
        %v1946 = vpop.f32.mrb[0].mxu0
        %v1947 = vadd.f32 %v1614, %v1946
        %1948 = vmatprep.mubr.f32.mxu0 0.0
        %v1949 = vand.u32 %v284, 4294901760
        %1950 = vmatmul.mubr.f32.gmra.mrb[0].mxu0 %v1949
        %v1951 = vpop.f32.mrb[0].mxu0
        %v1952 = vadd.f32 %v1621, %v1951
        %v1953 = vpop.f32.mrb[0].mxu0
        %v1954 = vadd.f32 %v1623, %v1953
        %1955 = vmatprep.mubr.f32.mxu0 0.0
        %v1956 = vand.u32 %v287, 4294901760
        %1957 = vmatmul.mubr.f32.gmra.mrb[0].mxu0 %v1956
        %v1958 = vpop.f32.mrb[0].mxu0
        %v1959 = vadd.f32 %v1630, %v1958
        %v1960 = vpop.f32.mrb[0].mxu0
        %v1961 = vadd.f32 %v1632, %v1960
        %1962 = vmatprep.mubr.f32.mxu0 0.0
        %v1963 = vand.u32 %v290, 4294901760
        %1964 = vmatmul.mubr.f32.gmra.mrb[0].mxu0 %v1963
        %v1965 = vpop.f32.mrb[0].mxu0
        %v1966 = vadd.f32 %v1639, %v1965
        %v1967 = vpop.f32.mrb[0].mxu0
        %v1968 = vadd.f32 %v1641, %v1967
        %1969 = vmatprep.mubr.f32.mxu0 0.0
        %v1970 = vand.u32 %v293, 4294901760
        %1971 = vmatmul.mubr.f32.gmra.mrb[0].mxu0 %v1970
        %v1972 = vpop.f32.mrb[0].mxu0
        %v1973 = vadd.f32 %v1648, %v1972
        %v1974 = vpop.f32.mrb[0].mxu0
        %v1975 = vadd.f32 %v1650, %v1974
        %1976 = vmatprep.mubr.f32.mxu0 0.0
        %v1977 = vand.u32 %v296, 4294901760
        %1978 = vmatmul.mubr.f32.gmra.mrb[0].mxu0 %v1977
        %v1979 = vpop.f32.mrb[0].mxu0
        %v1980 = vadd.f32 %v1657, %v1979
        %v1981 = vpop.f32.mrb[0].mxu0
        %v1982 = vadd.f32 %v1659, %v1981
        %1983 = vmatprep.mubr.f32.mxu0 0.0
        %v1984 = vand.u32 %v299, 4294901760
        %1985 = vmatmul.mubr.f32.gmra.mrb[0].mxu0 %v1984
        %v1986 = vpop.f32.mrb[0].mxu0
        %v1987 = vadd.f32 %v1666, %v1986
        %v1988 = vpop.f32.mrb[0].mxu0
        %v1989 = vadd.f32 %v1668, %v1988
        %1990 = vmatprep.mubr.f32.mxu0 0.0
        %v1991 = vand.u32 %v302, 4294901760
        %1992 = vmatmul.mubr.f32.gmra.mrb[0].mxu0 %v1991
        %v1993 = vpop.f32.mrb[0].mxu0
        %v1994 = vadd.f32 %v1675, %v1993
        %v1995 = vpop.f32.mrb[0].mxu0
        %v1996 = vadd.f32 %v1677, %v1995
        %1997 = vmatprep.mubr.f32.mxu0 0.0
        %v1998 = vand.u32 %v305, 4294901760
        %1999 = vmatmul.mubr.f32.gmra.mrb[0].mxu0 %v1998
        %v2000 = vpop.f32.mrb[0].mxu0
        %v2001 = vadd.f32 %v1684, %v2000
        %v2002 = vpop.f32.mrb[0].mxu0
        %v2003 = vadd.f32 %v1686, %v2002
        %2004 = vmatprep.mubr.f32.mxu0 0.0
        %v2005 = vand.u32 %v308, 4294901760
        %2006 = vmatmul.mubr.f32.gmra.mrb[0].mxu0 %v2005
        %v2007 = vpop.f32.mrb[0].mxu0
        %v2008 = vadd.f32 %v1693, %v2007
        %v2009 = vpop.f32.mrb[0].mxu0
        %v2010 = vadd.f32 %v1695, %v2009
        %2011 = vmatprep.mubr.f32.mxu0 0.0
        %v2012 = vand.u32 %v311, 4294901760
        %2013 = vmatmul.mubr.f32.gmra.mrb[0].mxu0 %v2012
        %v2014 = vpop.f32.mrb[0].mxu0
        %v2015 = vadd.f32 %v1702, %v2014
        %v2016 = vpop.f32.mrb[0].mxu0
        %v2017 = vadd.f32 %v1704, %v2016
        %2018 = vmatprep.mubr.f32.mxu0 0.0
        %v2019 = vand.u32 %v314, 4294901760
        %2020 = vmatmul.mubr.f32.gmra.mrb[0].mxu0 %v2019
        %v2021 = vpop.f32.mrb[0].mxu0
        %v2022 = vadd.f32 %v1711, %v2021
        %v2023 = vpop.f32.mrb[0].mxu0
        %v2024 = vadd.f32 %v1713, %v2023
        %2025 = vmatprep.mubr.f32.mxu0 0.0
        %v2026 = vand.u32 %v317, 4294901760
        %2027 = vmatmul.mubr.f32.gmra.mrb[0].mxu0 %v2026
        %v2028 = vpop.f32.mrb[0].mxu0
        %v2029 = vadd.f32 %v1720, %v2028
        %v2030 = vpop.f32.mrb[0].mxu0
        %v2031 = vadd.f32 %v1722, %v2030
        %2032 = vmatprep.mubr.f32.mxu0 0.0
        %v2033 = vand.u32 %v320, 4294901760
        %2034 = vmatmul.mubr.f32.gmra.mrb[0].mxu0 %v2033
        %v2035 = vpop.f32.mrb[0].mxu0
        %v2036 = vadd.f32 %v1729, %v2035
        %v2037 = vpop.f32.mrb[0].mxu0
        %v2038 = vadd.f32 %v1731, %v2037
        %2039 = vmatprep.mubr.f32.mxu0 0.0
        %v2040 = vand.u32 %v323, 4294901760
        %2041 = vmatmul.mubr.f32.gmra.mrb[0].mxu0 %v2040
        %v2042 = vpop.f32.mrb[0].mxu0
        %v2043 = vadd.f32 %v1738, %v2042
        %v2044 = vpop.f32.mrb[0].mxu0
        %v2045 = vadd.f32 %v1740, %v2044
        %2046 = vmatprep.mubr.f32.mxu0 0.0
        %v2047 = vand.u32 %v326, 4294901760
        %2048 = vmatmul.mubr.f32.gmra.mrb[0].mxu0 %v2047
        %v2049 = vpop.f32.mrb[0].mxu0
        %v2050 = vadd.f32 %v1747, %v2049
        %v2051 = vpop.f32.mrb[0].mxu0
        %v2052 = vadd.f32 %v1749, %v2051
        %2053 = vmatprep.mubr.f32.mxu0 0.0
        %v2054 = vand.u32 %v329, 4294901760
        %2055 = vmatmul.mubr.f32.gmra.mrb[0].mxu0 %v2054
        %v2056 = vpop.f32.mrb[0].mxu0
        %v2057 = vadd.f32 %v1756, %v2056
        %v2058 = vpop.f32.mrb[0].mxu0
        %v2059 = vadd.f32 %v1758, %v2058
        %2060 = vdwg.mxu0
        %v2061 = vand.u32 %v205, 4294901760
        %2062 = vmatprep.subr.mxu0 %v2061
        %v2063 = vand.u32 %v204, 4294901760
        %2064 = vmatpush1.msra.mxu0 %v2063
        %v2065 = vand.u32 %v336, 4294901760
        %2066 = vmatprep.subr.mxu0 %v2065
        %v2067 = vand.u32 %v333, 4294901760
        %2068 = vmatpush1.msra.mxu0 %v2067
        %2069 = vmatprep.subr.mxu0 0.0
        %2070 = vmatpush1.msra.mxu0 0.0
        %2071 = vmatprep.subr.mxu0 0.0
        %2072 = vmatpush1.msra.mxu0 0.0
        %2073 = vmatprep.subr.mxu0 0.0
        %2074 = vmatpush1.msra.mxu0 0.0
        %2075 = vmatprep.subr.mxu0 0.0
        %2076 = vmatpush1.msra.mxu0 0.0
        %2077 = vmatprep.subr.mxu0 0.0
        %2078 = vmatpush1.msra.mxu0 0.0
        %2079 = vmatprep.subr.mxu0 0.0
        %2080 = vmatpush1.msra.mxu0 0.0
        %2081 = vmatprep.subr.mxu0 0.0
        %2082 = vmatpush1.msra.mxu0 0.0
        %2083 = vmatprep.subr.mxu0 0.0
        %2084 = vmatpush1.msra.mxu0 0.0
        %2085 = vmatprep.subr.mxu0 0.0
        %2086 = vmatpush1.msra.mxu0 0.0
        %2087 = vmatprep.subr.mxu0 0.0
        %2088 = vmatpush1.msra.mxu0 0.0
        %2089 = vmatprep.subr.mxu0 0.0
        %2090 = vmatpush1.msra.mxu0 0.0
        %2091 = vmatprep.subr.mxu0 0.0
        %2092 = vmatpush1.msra.mxu0 0.0
        %2093 = vmatprep.subr.mxu0 0.0
        %2094 = vmatpush1.msra.mxu0 0.0
        %2095 = vmatprep.subr.mxu0 0.0
        %2096 = vmatpush1.msra.mxu0 0.0
        %2097 = vmatprep.subr.mxu0 0.0
        %2098 = vmatpush1.msra.mxu0 0.0
        %2099 = vmatprep.subr.mxu0 0.0
        %2100 = vmatpush1.msra.mxu0 0.0
        %2101 = vmatprep.subr.mxu0 0.0
        %2102 = vmatpush1.msra.mxu0 0.0
        %2103 = vmatprep.subr.mxu0 0.0
        %2104 = vmatpush1.msra.mxu0 0.0
        %2105 = vmatprep.subr.mxu0 0.0
        %2106 = vmatpush1.msra.mxu0 0.0
        %2107 = vmatprep.subr.mxu0 0.0
        %2108 = vmatpush1.msra.mxu0 0.0
        %2109 = vmatprep.subr.mxu0 0.0
        %2110 = vmatpush1.msra.mxu0 0.0
        %2111 = vmatprep.subr.mxu0 0.0
        %2112 = vmatpush1.msra.mxu0 0.0
        %2113 = vmatprep.subr.mxu0 0.0
        %2114 = vmatpush1.msra.mxu0 0.0
        %2115 = vmatprep.subr.mxu0 0.0
        %2116 = vmatpush1.msra.mxu0 0.0
        %2117 = vmatprep.subr.mxu0 0.0
        %2118 = vmatpush1.msra.mxu0 0.0
        %2119 = vmatprep.subr.mxu0 0.0
        %2120 = vmatpush1.msra.mxu0 0.0
        %2121 = vmatprep.subr.mxu0 0.0
        %2122 = vmatpush1.msra.mxu0 0.0
        %2123 = vmatprep.subr.mxu0 0.0
        %2124 = vmatpush1.msra.mxu0 0.0
        %2125 = vmatprep.subr.mxu0 0.0
        %2126 = vmatpush1.msra.mxu0 0.0
        %2127 = vmatprep.subr.mxu0 0.0
        %2128 = vmatpush1.msra.mxu0 0.0
        %2129 = vmatprep.mubr.f32.mxu0 0.0
        %v2130 = vand.u32 %v236, 4294901760
        %2131 = vmatmul.mubr.f32.gmra.mrb[0].mxu0 %v2130
        %v2132 = vpop.f32.mrb[0].mxu0
        %v2133 = vadd.f32 %v1840, %v2132
        %v2134 = vpop.f32.mrb[0].mxu0
        %v2135 = vadd.f32 %v1842, %v2134
        %2136 = vmatprep.mubr.f32.mxu0 0.0
        %v2137 = vand.u32 %v239, 4294901760
        %2138 = vmatmul.mubr.f32.gmra.mrb[0].mxu0 %v2137
        %v2139 = vpop.f32.mrb[0].mxu0
        %v2140 = vadd.f32 %v1847, %v2139
        %v2141 = vpop.f32.mrb[0].mxu0
        %v2142 = vadd.f32 %v1849, %v2141
        %2143 = vmatprep.mubr.f32.mxu0 0.0
        %v2144 = vand.u32 %v242, 4294901760
        %2145 = vmatmul.mubr.f32.gmra.mrb[0].mxu0 %v2144
        %v2146 = vpop.f32.mrb[0].mxu0
        %v2147 = vadd.f32 %v1854, %v2146
        %v2148 = vpop.f32.mrb[0].mxu0
        %v2149 = vadd.f32 %v1856, %v2148
        %2150 = vmatprep.mubr.f32.mxu0 0.0
        %v2151 = vand.u32 %v245, 4294901760
        %2152 = vmatmul.mubr.f32.gmra.mrb[0].mxu0 %v2151
        %v2153 = vpop.f32.mrb[0].mxu0
        %v2154 = vadd.f32 %v1861, %v2153
        %v2155 = vpop.f32.mrb[0].mxu0
        %v2156 = vadd.f32 %v1863, %v2155
        %2157 = vmatprep.mubr.f32.mxu0 0.0
        %v2158 = vand.u32 %v248, 4294901760
        %2159 = vmatmul.mubr.f32.gmra.mrb[0].mxu0 %v2158
        %v2160 = vpop.f32.mrb[0].mxu0
        %v2161 = vadd.f32 %v1868, %v2160
        %v2162 = vpop.f32.mrb[0].mxu0
        %v2163 = vadd.f32 %v1870, %v2162
        %2164 = vmatprep.mubr.f32.mxu0 0.0
        %v2165 = vand.u32 %v251, 4294901760
        %2166 = vmatmul.mubr.f32.gmra.mrb[0].mxu0 %v2165
        %v2167 = vpop.f32.mrb[0].mxu0
        %v2168 = vadd.f32 %v1875, %v2167
        %v2169 = vpop.f32.mrb[0].mxu0
        %v2170 = vadd.f32 %v1877, %v2169
        %2171 = vmatprep.mubr.f32.mxu0 0.0
        %v2172 = vand.u32 %v254, 4294901760
        %2173 = vmatmul.mubr.f32.gmra.mrb[0].mxu0 %v2172
        %v2174 = vpop.f32.mrb[0].mxu0
        %v2175 = vadd.f32 %v1882, %v2174
        %v2176 = vpop.f32.mrb[0].mxu0
        %v2177 = vadd.f32 %v1884, %v2176
        %2178 = vmatprep.mubr.f32.mxu0 0.0
        %v2179 = vand.u32 %v257, 4294901760
        %2180 = vmatmul.mubr.f32.gmra.mrb[0].mxu0 %v2179
        %v2181 = vpop.f32.mrb[0].mxu0
        %v2182 = vadd.f32 %v1889, %v2181
        %v2183 = vpop.f32.mrb[0].mxu0
        %v2184 = vadd.f32 %v1891, %v2183
        %2185 = vmatprep.mubr.f32.mxu0 0.0
        %v2186 = vand.u32 %v260, 4294901760
        %2187 = vmatmul.mubr.f32.gmra.mrb[0].mxu0 %v2186
        %v2188 = vpop.f32.mrb[0].mxu0
        %v2189 = vadd.f32 %v1896, %v2188
        %v2190 = vpop.f32.mrb[0].mxu0
        %v2191 = vadd.f32 %v1898, %v2190
        %2192 = vmatprep.mubr.f32.mxu0 0.0
        %v2193 = vand.u32 %v263, 4294901760
        %2194 = vmatmul.mubr.f32.gmra.mrb[0].mxu0 %v2193
        %v2195 = vpop.f32.mrb[0].mxu0
        %v2196 = vadd.f32 %v1903, %v2195
        %v2197 = vpop.f32.mrb[0].mxu0
        %v2198 = vadd.f32 %v1905, %v2197
        %2199 = vmatprep.mubr.f32.mxu0 0.0
        %v2200 = vand.u32 %v266, 4294901760
        %2201 = vmatmul.mubr.f32.gmra.mrb[0].mxu0 %v2200
        %v2202 = vpop.f32.mrb[0].mxu0
        %v2203 = vadd.f32 %v1910, %v2202
        %v2204 = vpop.f32.mrb[0].mxu0
        %v2205 = vadd.f32 %v1912, %v2204
        %2206 = vmatprep.mubr.f32.mxu0 0.0
        %v2207 = vand.u32 %v269, 4294901760
        %2208 = vmatmul.mubr.f32.gmra.mrb[0].mxu0 %v2207
        %v2209 = vpop.f32.mrb[0].mxu0
        %v2210 = vadd.f32 %v1917, %v2209
        %v2211 = vpop.f32.mrb[0].mxu0
        %v2212 = vadd.f32 %v1919, %v2211
        %2213 = vmatprep.mubr.f32.mxu0 0.0
        %v2214 = vand.u32 %v272, 4294901760
        %2215 = vmatmul.mubr.f32.gmra.mrb[0].mxu0 %v2214
        %v2216 = vpop.f32.mrb[0].mxu0
        %v2217 = vadd.f32 %v1924, %v2216
        %v2218 = vpop.f32.mrb[0].mxu0
        %v2219 = vadd.f32 %v1926, %v2218
        %2220 = vmatprep.mubr.f32.mxu0 0.0
        %v2221 = vand.u32 %v275, 4294901760
        %2222 = vmatmul.mubr.f32.gmra.mrb[0].mxu0 %v2221
        %v2223 = vpop.f32.mrb[0].mxu0
        %v2224 = vadd.f32 %v1931, %v2223
        %v2225 = vpop.f32.mrb[0].mxu0
        %v2226 = vadd.f32 %v1933, %v2225
        %2227 = vmatprep.mubr.f32.mxu0 0.0
        %v2228 = vand.u32 %v278, 4294901760
        %2229 = vmatmul.mubr.f32.gmra.mrb[0].mxu0 %v2228
        %v2230 = vpop.f32.mrb[0].mxu0
        %v2231 = vadd.f32 %v1938, %v2230
        %v2232 = vpop.f32.mrb[0].mxu0
        %v2233 = vadd.f32 %v1940, %v2232
        %2234 = vmatprep.mubr.f32.mxu0 0.0
        %v2235 = vand.u32 %v281, 4294901760
        %2236 = vmatmul.mubr.f32.gmra.mrb[0].mxu0 %v2235
        %v2237 = vpop.f32.mrb[0].mxu0
        %v2238 = vadd.f32 %v1945, %v2237
        %v2239 = vpop.f32.mrb[0].mxu0
        %v2240 = vadd.f32 %v1947, %v2239
        %2241 = vmatprep.mubr.f32.mxu0 0.0
        %v2242 = vand.u32 %v284, 4294901760
        %2243 = vmatmul.mubr.f32.gmra.mrb[0].mxu0 %v2242
        %v2244 = vpop.f32.mrb[0].mxu0
        %v2245 = vadd.f32 %v1952, %v2244
        %v2246 = vpop.f32.mrb[0].mxu0
        %v2247 = vadd.f32 %v1954, %v2246
        %2248 = vmatprep.mubr.f32.mxu0 0.0
        %v2249 = vand.u32 %v287, 4294901760
        %2250 = vmatmul.mubr.f32.gmra.mrb[0].mxu0 %v2249
        %v2251 = vpop.f32.mrb[0].mxu0
        %v2252 = vadd.f32 %v1959, %v2251
        %v2253 = vpop.f32.mrb[0].mxu0
        %v2254 = vadd.f32 %v1961, %v2253
        %2255 = vmatprep.mubr.f32.mxu0 0.0
        %v2256 = vand.u32 %v290, 4294901760
        %2257 = vmatmul.mubr.f32.gmra.mrb[0].mxu0 %v2256
        %v2258 = vpop.f32.mrb[0].mxu0
        %v2259 = vadd.f32 %v1966, %v2258
        %v2260 = vpop.f32.mrb[0].mxu0
        %v2261 = vadd.f32 %v1968, %v2260
        %2262 = vmatprep.mubr.f32.mxu0 0.0
        %v2263 = vand.u32 %v293, 4294901760
        %2264 = vmatmul.mubr.f32.gmra.mrb[0].mxu0 %v2263
        %v2265 = vpop.f32.mrb[0].mxu0
        %v2266 = vadd.f32 %v1973, %v2265
        %v2267 = vpop.f32.mrb[0].mxu0
        %v2268 = vadd.f32 %v1975, %v2267
        %2269 = vmatprep.mubr.f32.mxu0 0.0
        %v2270 = vand.u32 %v296, 4294901760
        %2271 = vmatmul.mubr.f32.gmra.mrb[0].mxu0 %v2270
        %v2272 = vpop.f32.mrb[0].mxu0
        %v2273 = vadd.f32 %v1980, %v2272
        %v2274 = vpop.f32.mrb[0].mxu0
        %v2275 = vadd.f32 %v1982, %v2274
        %2276 = vmatprep.mubr.f32.mxu0 0.0
        %v2277 = vand.u32 %v299, 4294901760
        %2278 = vmatmul.mubr.f32.gmra.mrb[0].mxu0 %v2277
        %v2279 = vpop.f32.mrb[0].mxu0
        %v2280 = vadd.f32 %v1987, %v2279
        %v2281 = vpop.f32.mrb[0].mxu0
        %v2282 = vadd.f32 %v1989, %v2281
        %2283 = vmatprep.mubr.f32.mxu0 0.0
        %v2284 = vand.u32 %v302, 4294901760
        %2285 = vmatmul.mubr.f32.gmra.mrb[0].mxu0 %v2284
        %v2286 = vpop.f32.mrb[0].mxu0
        %v2287 = vadd.f32 %v1994, %v2286
        %v2288 = vpop.f32.mrb[0].mxu0
        %v2289 = vadd.f32 %v1996, %v2288
        %2290 = vmatprep.mubr.f32.mxu0 0.0
        %v2291 = vand.u32 %v305, 4294901760
        %2292 = vmatmul.mubr.f32.gmra.mrb[0].mxu0 %v2291
        %v2293 = vpop.f32.mrb[0].mxu0
        %v2294 = vadd.f32 %v2001, %v2293
        %v2295 = vpop.f32.mrb[0].mxu0
        %v2296 = vadd.f32 %v2003, %v2295
        %2297 = vmatprep.mubr.f32.mxu0 0.0
        %v2298 = vand.u32 %v308, 4294901760
        %2299 = vmatmul.mubr.f32.gmra.mrb[0].mxu0 %v2298
        %v2300 = vpop.f32.mrb[0].mxu0
        %v2301 = vadd.f32 %v2008, %v2300
        %v2302 = vpop.f32.mrb[0].mxu0
        %v2303 = vadd.f32 %v2010, %v2302
        %2304 = vmatprep.mubr.f32.mxu0 0.0
        %v2305 = vand.u32 %v311, 4294901760
        %2306 = vmatmul.mubr.f32.gmra.mrb[0].mxu0 %v2305
        %v2307 = vpop.f32.mrb[0].mxu0
        %v2308 = vadd.f32 %v2015, %v2307
        %v2309 = vpop.f32.mrb[0].mxu0
        %v2310 = vadd.f32 %v2017, %v2309
        %2311 = vmatprep.mubr.f32.mxu0 0.0
        %v2312 = vand.u32 %v314, 4294901760
        %2313 = vmatmul.mubr.f32.gmra.mrb[0].mxu0 %v2312
        %v2314 = vpop.f32.mrb[0].mxu0
        %v2315 = vadd.f32 %v2022, %v2314
        %v2316 = vpop.f32.mrb[0].mxu0
        %v2317 = vadd.f32 %v2024, %v2316
        %2318 = vmatprep.mubr.f32.mxu0 0.0
        %v2319 = vand.u32 %v317, 4294901760
        %2320 = vmatmul.mubr.f32.gmra.mrb[0].mxu0 %v2319
        %v2321 = vpop.f32.mrb[0].mxu0
        %v2322 = vadd.f32 %v2029, %v2321
        %v2323 = vpop.f32.mrb[0].mxu0
        %v2324 = vadd.f32 %v2031, %v2323
        %2325 = vmatprep.mubr.f32.mxu0 0.0
        %v2326 = vand.u32 %v320, 4294901760
        %2327 = vmatmul.mubr.f32.gmra.mrb[0].mxu0 %v2326
        %v2328 = vpop.f32.mrb[0].mxu0
        %v2329 = vadd.f32 %v2036, %v2328
        %v2330 = vpop.f32.mrb[0].mxu0
        %v2331 = vadd.f32 %v2038, %v2330
        %2332 = vmatprep.mubr.f32.mxu0 0.0
        %v2333 = vand.u32 %v323, 4294901760
        %2334 = vmatmul.mubr.f32.gmra.mrb[0].mxu0 %v2333
        %v2335 = vpop.f32.mrb[0].mxu0
        %v2336 = vadd.f32 %v2043, %v2335
        %v2337 = vpop.f32.mrb[0].mxu0
        %v2338 = vadd.f32 %v2045, %v2337
        %2339 = vmatprep.mubr.f32.mxu0 0.0
        %v2340 = vand.u32 %v326, 4294901760
        %2341 = vmatmul.mubr.f32.gmra.mrb[0].mxu0 %v2340
        %v2342 = vpop.f32.mrb[0].mxu0
        %v2343 = vadd.f32 %v2050, %v2342
        %v2344 = vpop.f32.mrb[0].mxu0
        %v2345 = vadd.f32 %v2052, %v2344
        %2346 = vmatprep.mubr.f32.mxu0 0.0
        %v2347 = vand.u32 %v329, 4294901760
        %2348 = vmatmul.mubr.f32.gmra.mrb[0].mxu0 %v2347
        %v2349 = vpop.f32.mrb[0].mxu0
        %v2350 = vadd.f32 %v2057, %v2349
        %v2351 = vpop.f32.mrb[0].mxu0
        %v2352 = vadd.f32 %v2059, %v2351
        %2353 = vdwg.mxu0
        %v2354 = vand.u32 %v207, 4294901760
        %2355 = vmatprep.subr.mxu0 %v2354
        %v2356 = vand.u32 %v206, 4294901760
        %2357 = vmatpush1.msra.mxu0 %v2356
        %v2358 = vand.u32 %v342, 4294901760
        %2359 = vmatprep.subr.mxu0 %v2358
        %v2360 = vand.u32 %v339, 4294901760
        %2361 = vmatpush1.msra.mxu0 %v2360
        %2362 = vmatprep.subr.mxu0 0.0
        %2363 = vmatpush1.msra.mxu0 0.0
        %2364 = vmatprep.subr.mxu0 0.0
        %2365 = vmatpush1.msra.mxu0 0.0
        %2366 = vmatprep.subr.mxu0 0.0
        %2367 = vmatpush1.msra.mxu0 0.0
        %2368 = vmatprep.subr.mxu0 0.0
        %2369 = vmatpush1.msra.mxu0 0.0
        %2370 = vmatprep.subr.mxu0 0.0
        %2371 = vmatpush1.msra.mxu0 0.0
        %2372 = vmatprep.subr.mxu0 0.0
        %2373 = vmatpush1.msra.mxu0 0.0
        %2374 = vmatprep.subr.mxu0 0.0
        %2375 = vmatpush1.msra.mxu0 0.0
        %2376 = vmatprep.subr.mxu0 0.0
        %2377 = vmatpush1.msra.mxu0 0.0
        %2378 = vmatprep.subr.mxu0 0.0
        %2379 = vmatpush1.msra.mxu0 0.0
        %2380 = vmatprep.subr.mxu0 0.0
        %2381 = vmatpush1.msra.mxu0 0.0
        %2382 = vmatprep.subr.mxu0 0.0
        %2383 = vmatpush1.msra.mxu0 0.0
        %2384 = vmatprep.subr.mxu0 0.0
        %2385 = vmatpush1.msra.mxu0 0.0
        %2386 = vmatprep.subr.mxu0 0.0
        %2387 = vmatpush1.msra.mxu0 0.0
        %2388 = vmatprep.subr.mxu0 0.0
        %2389 = vmatpush1.msra.mxu0 0.0
        %2390 = vmatprep.subr.mxu0 0.0
        %2391 = vmatpush1.msra.mxu0 0.0
        %2392 = vmatprep.subr.mxu0 0.0
        %2393 = vmatpush1.msra.mxu0 0.0
        %2394 = vmatprep.subr.mxu0 0.0
        %2395 = vmatpush1.msra.mxu0 0.0
        %2396 = vmatprep.subr.mxu0 0.0
        %2397 = vmatpush1.msra.mxu0 0.0
        %2398 = vmatprep.subr.mxu0 0.0
        %2399 = vmatpush1.msra.mxu0 0.0
        %2400 = vmatprep.subr.mxu0 0.0
        %2401 = vmatpush1.msra.mxu0 0.0
        %2402 = vmatprep.subr.mxu0 0.0
        %2403 = vmatpush1.msra.mxu0 0.0
        %2404 = vmatprep.subr.mxu0 0.0
        %2405 = vmatpush1.msra.mxu0 0.0
        %2406 = vmatprep.subr.mxu0 0.0
        %2407 = vmatpush1.msra.mxu0 0.0
        %2408 = vmatprep.subr.mxu0 0.0
        %2409 = vmatpush1.msra.mxu0 0.0
        %2410 = vmatprep.subr.mxu0 0.0
        %2411 = vmatpush1.msra.mxu0 0.0
        %2412 = vmatprep.subr.mxu0 0.0
        %2413 = vmatpush1.msra.mxu0 0.0
        %2414 = vmatprep.subr.mxu0 0.0
        %2415 = vmatpush1.msra.mxu0 0.0
        %2416 = vmatprep.subr.mxu0 0.0
        %2417 = vmatpush1.msra.mxu0 0.0
        %2418 = vmatprep.subr.mxu0 0.0
        %2419 = vmatpush1.msra.mxu0 0.0
        %2420 = vmatprep.subr.mxu0 0.0
        %2421 = vmatpush1.msra.mxu0 0.0
        %2422 = vmatprep.mubr.f32.mxu0 0.0
        %v2423 = vand.u32 %v236, 4294901760
        %v2424 = vsub.f32 %v236, %v2423
        %v2425 = vand.u32 %v2424, 4294901760
        %v2426 = vsub.f32 %v2424, %v2425
        %v2427 = vand.u32 %v2426, 4294901760
        %2428 = vmatmul.mubr.f32.gmra.mrb[0].mxu0 %v2427
        %v2429 = vpop.f32.mrb[0].mxu0
        %v2430 = vadd.f32 %v225, %v2429
        %v2431 = vpop.f32.mrb[0].mxu0
        %v2432 = vadd.f32 %v229, %v2431
        %2433 = vmatprep.mubr.f32.mxu0 0.0
        %v2434 = vand.u32 %v239, 4294901760
        %v2435 = vsub.f32 %v239, %v2434
        %v2436 = vand.u32 %v2435, 4294901760
        %v2437 = vsub.f32 %v2435, %v2436
        %v2438 = vand.u32 %v2437, 4294901760
        %2439 = vmatmul.mubr.f32.gmra.mrb[0].mxu0 %v2438
        %v2440 = vpop.f32.mrb[0].mxu0
        %v2441 = vadd.f32 %v225, %v2440
        %v2442 = vpop.f32.mrb[0].mxu0
        %v2443 = vadd.f32 %v229, %v2442
        %2444 = vmatprep.mubr.f32.mxu0 0.0
        %v2445 = vand.u32 %v242, 4294901760
        %v2446 = vsub.f32 %v242, %v2445
        %v2447 = vand.u32 %v2446, 4294901760
        %v2448 = vsub.f32 %v2446, %v2447
        %v2449 = vand.u32 %v2448, 4294901760
        %2450 = vmatmul.mubr.f32.gmra.mrb[0].mxu0 %v2449
        %v2451 = vpop.f32.mrb[0].mxu0
        %v2452 = vadd.f32 %v225, %v2451
        %v2453 = vpop.f32.mrb[0].mxu0
        %v2454 = vadd.f32 %v229, %v2453
        %2455 = vmatprep.mubr.f32.mxu0 0.0
        %v2456 = vand.u32 %v245, 4294901760
        %v2457 = vsub.f32 %v245, %v2456
        %v2458 = vand.u32 %v2457, 4294901760
        %v2459 = vsub.f32 %v2457, %v2458
        %v2460 = vand.u32 %v2459, 4294901760
        %2461 = vmatmul.mubr.f32.gmra.mrb[0].mxu0 %v2460
        %v2462 = vpop.f32.mrb[0].mxu0
        %v2463 = vadd.f32 %v225, %v2462
        %v2464 = vpop.f32.mrb[0].mxu0
        %v2465 = vadd.f32 %v229, %v2464
        %2466 = vmatprep.mubr.f32.mxu0 0.0
        %v2467 = vand.u32 %v248, 4294901760
        %v2468 = vsub.f32 %v248, %v2467
        %v2469 = vand.u32 %v2468, 4294901760
        %v2470 = vsub.f32 %v2468, %v2469
        %v2471 = vand.u32 %v2470, 4294901760
        %2472 = vmatmul.mubr.f32.gmra.mrb[0].mxu0 %v2471
        %v2473 = vpop.f32.mrb[0].mxu0
        %v2474 = vadd.f32 %v225, %v2473
        %v2475 = vpop.f32.mrb[0].mxu0
        %v2476 = vadd.f32 %v229, %v2475
        %2477 = vmatprep.mubr.f32.mxu0 0.0
        %v2478 = vand.u32 %v251, 4294901760
        %v2479 = vsub.f32 %v251, %v2478
        %v2480 = vand.u32 %v2479, 4294901760
        %v2481 = vsub.f32 %v2479, %v2480
        %v2482 = vand.u32 %v2481, 4294901760
        %2483 = vmatmul.mubr.f32.gmra.mrb[0].mxu0 %v2482
        %v2484 = vpop.f32.mrb[0].mxu0
        %v2485 = vadd.f32 %v225, %v2484
        %v2486 = vpop.f32.mrb[0].mxu0
        %v2487 = vadd.f32 %v229, %v2486
        %2488 = vmatprep.mubr.f32.mxu0 0.0
        %v2489 = vand.u32 %v254, 4294901760
        %v2490 = vsub.f32 %v254, %v2489
        %v2491 = vand.u32 %v2490, 4294901760
        %v2492 = vsub.f32 %v2490, %v2491
        %v2493 = vand.u32 %v2492, 4294901760
        %2494 = vmatmul.mubr.f32.gmra.mrb[0].mxu0 %v2493
        %v2495 = vpop.f32.mrb[0].mxu0
        %v2496 = vadd.f32 %v225, %v2495
        %v2497 = vpop.f32.mrb[0].mxu0
        %v2498 = vadd.f32 %v229, %v2497
        %2499 = vmatprep.mubr.f32.mxu0 0.0
        %v2500 = vand.u32 %v257, 4294901760
        %v2501 = vsub.f32 %v257, %v2500
        %v2502 = vand.u32 %v2501, 4294901760
        %v2503 = vsub.f32 %v2501, %v2502
        %v2504 = vand.u32 %v2503, 4294901760
        %2505 = vmatmul.mubr.f32.gmra.mrb[0].mxu0 %v2504
        %v2506 = vpop.f32.mrb[0].mxu0
        %v2507 = vadd.f32 %v225, %v2506
        %v2508 = vpop.f32.mrb[0].mxu0
        %v2509 = vadd.f32 %v229, %v2508
        %2510 = vmatprep.mubr.f32.mxu0 0.0
        %v2511 = vand.u32 %v260, 4294901760
        %v2512 = vsub.f32 %v260, %v2511
        %v2513 = vand.u32 %v2512, 4294901760
        %v2514 = vsub.f32 %v2512, %v2513
        %v2515 = vand.u32 %v2514, 4294901760
        %2516 = vmatmul.mubr.f32.gmra.mrb[0].mxu0 %v2515
        %v2517 = vpop.f32.mrb[0].mxu0
        %v2518 = vadd.f32 %v225, %v2517
        %v2519 = vpop.f32.mrb[0].mxu0
        %v2520 = vadd.f32 %v229, %v2519
        %2521 = vmatprep.mubr.f32.mxu0 0.0
        %v2522 = vand.u32 %v263, 4294901760
        %v2523 = vsub.f32 %v263, %v2522
        %v2524 = vand.u32 %v2523, 4294901760
        %v2525 = vsub.f32 %v2523, %v2524
        %v2526 = vand.u32 %v2525, 4294901760
        %2527 = vmatmul.mubr.f32.gmra.mrb[0].mxu0 %v2526
        %v2528 = vpop.f32.mrb[0].mxu0
        %v2529 = vadd.f32 %v225, %v2528
        %v2530 = vpop.f32.mrb[0].mxu0
        %v2531 = vadd.f32 %v229, %v2530
        %2532 = vmatprep.mubr.f32.mxu0 0.0
        %v2533 = vand.u32 %v266, 4294901760
        %v2534 = vsub.f32 %v266, %v2533
        %v2535 = vand.u32 %v2534, 4294901760
        %v2536 = vsub.f32 %v2534, %v2535
        %v2537 = vand.u32 %v2536, 4294901760
        %2538 = vmatmul.mubr.f32.gmra.mrb[0].mxu0 %v2537
        %v2539 = vpop.f32.mrb[0].mxu0
        %v2540 = vadd.f32 %v225, %v2539
        %v2541 = vpop.f32.mrb[0].mxu0
        %v2542 = vadd.f32 %v229, %v2541
        %2543 = vmatprep.mubr.f32.mxu0 0.0
        %v2544 = vand.u32 %v269, 4294901760
        %v2545 = vsub.f32 %v269, %v2544
        %v2546 = vand.u32 %v2545, 4294901760
        %v2547 = vsub.f32 %v2545, %v2546
        %v2548 = vand.u32 %v2547, 4294901760
        %2549 = vmatmul.mubr.f32.gmra.mrb[0].mxu0 %v2548
        %v2550 = vpop.f32.mrb[0].mxu0
        %v2551 = vadd.f32 %v225, %v2550
        %v2552 = vpop.f32.mrb[0].mxu0
        %v2553 = vadd.f32 %v229, %v2552
        %2554 = vmatprep.mubr.f32.mxu0 0.0
        %v2555 = vand.u32 %v272, 4294901760
        %v2556 = vsub.f32 %v272, %v2555
        %v2557 = vand.u32 %v2556, 4294901760
        %v2558 = vsub.f32 %v2556, %v2557
        %v2559 = vand.u32 %v2558, 4294901760
        %2560 = vmatmul.mubr.f32.gmra.mrb[0].mxu0 %v2559
        %v2561 = vpop.f32.mrb[0].mxu0
        %v2562 = vadd.f32 %v225, %v2561
        %v2563 = vpop.f32.mrb[0].mxu0
        %v2564 = vadd.f32 %v229, %v2563
        %2565 = vmatprep.mubr.f32.mxu0 0.0
        %v2566 = vand.u32 %v275, 4294901760
        %v2567 = vsub.f32 %v275, %v2566
        %v2568 = vand.u32 %v2567, 4294901760
        %v2569 = vsub.f32 %v2567, %v2568
        %v2570 = vand.u32 %v2569, 4294901760
        %2571 = vmatmul.mubr.f32.gmra.mrb[0].mxu0 %v2570
        %v2572 = vpop.f32.mrb[0].mxu0
        %v2573 = vadd.f32 %v225, %v2572
        %v2574 = vpop.f32.mrb[0].mxu0
        %v2575 = vadd.f32 %v229, %v2574
        %2576 = vmatprep.mubr.f32.mxu0 0.0
        %v2577 = vand.u32 %v278, 4294901760
        %v2578 = vsub.f32 %v278, %v2577
        %v2579 = vand.u32 %v2578, 4294901760
        %v2580 = vsub.f32 %v2578, %v2579
        %v2581 = vand.u32 %v2580, 4294901760
        %2582 = vmatmul.mubr.f32.gmra.mrb[0].mxu0 %v2581
        %v2583 = vpop.f32.mrb[0].mxu0
        %v2584 = vadd.f32 %v225, %v2583
        %v2585 = vpop.f32.mrb[0].mxu0
        %v2586 = vadd.f32 %v229, %v2585
        %2587 = vmatprep.mubr.f32.mxu0 0.0
        %v2588 = vand.u32 %v281, 4294901760
        %v2589 = vsub.f32 %v281, %v2588
        %v2590 = vand.u32 %v2589, 4294901760
        %v2591 = vsub.f32 %v2589, %v2590
        %v2592 = vand.u32 %v2591, 4294901760
        %2593 = vmatmul.mubr.f32.gmra.mrb[0].mxu0 %v2592
        %v2594 = vpop.f32.mrb[0].mxu0
        %v2595 = vadd.f32 %v225, %v2594
        %v2596 = vpop.f32.mrb[0].mxu0
        %v2597 = vadd.f32 %v229, %v2596
        %2598 = vmatprep.mubr.f32.mxu0 0.0
        %v2599 = vand.u32 %v284, 4294901760
        %v2600 = vsub.f32 %v284, %v2599
        %v2601 = vand.u32 %v2600, 4294901760
        %v2602 = vsub.f32 %v2600, %v2601
        %v2603 = vand.u32 %v2602, 4294901760
        %2604 = vmatmul.mubr.f32.gmra.mrb[0].mxu0 %v2603
        %v2605 = vpop.f32.mrb[0].mxu0
        %v2606 = vadd.f32 %v225, %v2605
        %v2607 = vpop.f32.mrb[0].mxu0
        %v2608 = vadd.f32 %v229, %v2607
        %2609 = vmatprep.mubr.f32.mxu0 0.0
        %v2610 = vand.u32 %v287, 4294901760
        %v2611 = vsub.f32 %v287, %v2610
        %v2612 = vand.u32 %v2611, 4294901760
        %v2613 = vsub.f32 %v2611, %v2612
        %v2614 = vand.u32 %v2613, 4294901760
        %2615 = vmatmul.mubr.f32.gmra.mrb[0].mxu0 %v2614
        %v2616 = vpop.f32.mrb[0].mxu0
        %v2617 = vadd.f32 %v225, %v2616
        %v2618 = vpop.f32.mrb[0].mxu0
        %v2619 = vadd.f32 %v229, %v2618
        %2620 = vmatprep.mubr.f32.mxu0 0.0
        %v2621 = vand.u32 %v290, 4294901760
        %v2622 = vsub.f32 %v290, %v2621
        %v2623 = vand.u32 %v2622, 4294901760
        %v2624 = vsub.f32 %v2622, %v2623
        %v2625 = vand.u32 %v2624, 4294901760
        %2626 = vmatmul.mubr.f32.gmra.mrb[0].mxu0 %v2625
        %v2627 = vpop.f32.mrb[0].mxu0
        %v2628 = vadd.f32 %v225, %v2627
        %v2629 = vpop.f32.mrb[0].mxu0
        %v2630 = vadd.f32 %v229, %v2629
        %2631 = vmatprep.mubr.f32.mxu0 0.0
        %v2632 = vand.u32 %v293, 4294901760
        %v2633 = vsub.f32 %v293, %v2632
        %v2634 = vand.u32 %v2633, 4294901760
        %v2635 = vsub.f32 %v2633, %v2634
        %v2636 = vand.u32 %v2635, 4294901760
        %2637 = vmatmul.mubr.f32.gmra.mrb[0].mxu0 %v2636
        %v2638 = vpop.f32.mrb[0].mxu0
        %v2639 = vadd.f32 %v225, %v2638
        %v2640 = vpop.f32.mrb[0].mxu0
        %v2641 = vadd.f32 %v229, %v2640
        %2642 = vmatprep.mubr.f32.mxu0 0.0
        %v2643 = vand.u32 %v296, 4294901760
        %v2644 = vsub.f32 %v296, %v2643
        %v2645 = vand.u32 %v2644, 4294901760
        %v2646 = vsub.f32 %v2644, %v2645
        %v2647 = vand.u32 %v2646, 4294901760
        %2648 = vmatmul.mubr.f32.gmra.mrb[0].mxu0 %v2647
        %v2649 = vpop.f32.mrb[0].mxu0
        %v2650 = vadd.f32 %v225, %v2649
        %v2651 = vpop.f32.mrb[0].mxu0
        %v2652 = vadd.f32 %v229, %v2651
        %2653 = vmatprep.mubr.f32.mxu0 0.0
        %v2654 = vand.u32 %v299, 4294901760
        %v2655 = vsub.f32 %v299, %v2654
        %v2656 = vand.u32 %v2655, 4294901760
        %v2657 = vsub.f32 %v2655, %v2656
        %v2658 = vand.u32 %v2657, 4294901760
        %2659 = vmatmul.mubr.f32.gmra.mrb[0].mxu0 %v2658
        %v2660 = vpop.f32.mrb[0].mxu0
        %v2661 = vadd.f32 %v225, %v2660
        %v2662 = vpop.f32.mrb[0].mxu0
        %v2663 = vadd.f32 %v229, %v2662
        %2664 = vmatprep.mubr.f32.mxu0 0.0
        %v2665 = vand.u32 %v302, 4294901760
        %v2666 = vsub.f32 %v302, %v2665
        %v2667 = vand.u32 %v2666, 4294901760
        %v2668 = vsub.f32 %v2666, %v2667
        %v2669 = vand.u32 %v2668, 4294901760
        %2670 = vmatmul.mubr.f32.gmra.mrb[0].mxu0 %v2669
        %v2671 = vpop.f32.mrb[0].mxu0
        %v2672 = vadd.f32 %v225, %v2671
        %v2673 = vpop.f32.mrb[0].mxu0
        %v2674 = vadd.f32 %v229, %v2673
        %2675 = vmatprep.mubr.f32.mxu0 0.0
        %v2676 = vand.u32 %v305, 4294901760
        %v2677 = vsub.f32 %v305, %v2676
        %v2678 = vand.u32 %v2677, 4294901760
        %v2679 = vsub.f32 %v2677, %v2678
        %v2680 = vand.u32 %v2679, 4294901760
        %2681 = vmatmul.mubr.f32.gmra.mrb[0].mxu0 %v2680
        %v2682 = vpop.f32.mrb[0].mxu0
        %v2683 = vadd.f32 %v225, %v2682
        %v2684 = vpop.f32.mrb[0].mxu0
        %v2685 = vadd.f32 %v229, %v2684
        %2686 = vmatprep.mubr.f32.mxu0 0.0
        %v2687 = vand.u32 %v308, 4294901760
        %v2688 = vsub.f32 %v308, %v2687
        %v2689 = vand.u32 %v2688, 4294901760
        %v2690 = vsub.f32 %v2688, %v2689
        %v2691 = vand.u32 %v2690, 4294901760
        %2692 = vmatmul.mubr.f32.gmra.mrb[0].mxu0 %v2691
        %v2693 = vpop.f32.mrb[0].mxu0
        %v2694 = vadd.f32 %v225, %v2693
        %v2695 = vpop.f32.mrb[0].mxu0
        %v2696 = vadd.f32 %v229, %v2695
        %2697 = vmatprep.mubr.f32.mxu0 0.0
        %v2698 = vand.u32 %v311, 4294901760
        %v2699 = vsub.f32 %v311, %v2698
        %v2700 = vand.u32 %v2699, 4294901760
        %v2701 = vsub.f32 %v2699, %v2700
        %v2702 = vand.u32 %v2701, 4294901760
        %2703 = vmatmul.mubr.f32.gmra.mrb[0].mxu0 %v2702
        %v2704 = vpop.f32.mrb[0].mxu0
        %v2705 = vadd.f32 %v225, %v2704
        %v2706 = vpop.f32.mrb[0].mxu0
        %v2707 = vadd.f32 %v229, %v2706
        %2708 = vmatprep.mubr.f32.mxu0 0.0
        %v2709 = vand.u32 %v314, 4294901760
        %v2710 = vsub.f32 %v314, %v2709
        %v2711 = vand.u32 %v2710, 4294901760
        %v2712 = vsub.f32 %v2710, %v2711
        %v2713 = vand.u32 %v2712, 4294901760
        %2714 = vmatmul.mubr.f32.gmra.mrb[0].mxu0 %v2713
        %v2715 = vpop.f32.mrb[0].mxu0
        %v2716 = vadd.f32 %v225, %v2715
        %v2717 = vpop.f32.mrb[0].mxu0
        %v2718 = vadd.f32 %v229, %v2717
        %2719 = vmatprep.mubr.f32.mxu0 0.0
        %v2720 = vand.u32 %v317, 4294901760
        %v2721 = vsub.f32 %v317, %v2720
        %v2722 = vand.u32 %v2721, 4294901760
        %v2723 = vsub.f32 %v2721, %v2722
        %v2724 = vand.u32 %v2723, 4294901760
        %2725 = vmatmul.mubr.f32.gmra.mrb[0].mxu0 %v2724
        %v2726 = vpop.f32.mrb[0].mxu0
        %v2727 = vadd.f32 %v225, %v2726
        %v2728 = vpop.f32.mrb[0].mxu0
        %v2729 = vadd.f32 %v229, %v2728
        %2730 = vmatprep.mubr.f32.mxu0 0.0
        %v2731 = vand.u32 %v320, 4294901760
        %v2732 = vsub.f32 %v320, %v2731
        %v2733 = vand.u32 %v2732, 4294901760
        %v2734 = vsub.f32 %v2732, %v2733
        %v2735 = vand.u32 %v2734, 4294901760
        %2736 = vmatmul.mubr.f32.gmra.mrb[0].mxu0 %v2735
        %v2737 = vpop.f32.mrb[0].mxu0
        %v2738 = vadd.f32 %v225, %v2737
        %v2739 = vpop.f32.mrb[0].mxu0
        %v2740 = vadd.f32 %v229, %v2739
        %2741 = vmatprep.mubr.f32.mxu0 0.0
        %v2742 = vand.u32 %v323, 4294901760
        %v2743 = vsub.f32 %v323, %v2742
        %v2744 = vand.u32 %v2743, 4294901760
        %v2745 = vsub.f32 %v2743, %v2744
        %v2746 = vand.u32 %v2745, 4294901760
        %2747 = vmatmul.mubr.f32.gmra.mrb[0].mxu0 %v2746
        %v2748 = vpop.f32.mrb[0].mxu0
        %v2749 = vadd.f32 %v225, %v2748
        %v2750 = vpop.f32.mrb[0].mxu0
        %v2751 = vadd.f32 %v229, %v2750
        %2752 = vmatprep.mubr.f32.mxu0 0.0
        %v2753 = vand.u32 %v326, 4294901760
        %v2754 = vsub.f32 %v326, %v2753
        %v2755 = vand.u32 %v2754, 4294901760
        %v2756 = vsub.f32 %v2754, %v2755
        %v2757 = vand.u32 %v2756, 4294901760
        %2758 = vmatmul.mubr.f32.gmra.mrb[0].mxu0 %v2757
        %v2759 = vpop.f32.mrb[0].mxu0
        %v2760 = vadd.f32 %v225, %v2759
        %v2761 = vpop.f32.mrb[0].mxu0
        %v2762 = vadd.f32 %v229, %v2761
        %2763 = vmatprep.mubr.f32.mxu0 0.0
        %v2764 = vand.u32 %v329, 4294901760
        %v2765 = vsub.f32 %v329, %v2764
        %v2766 = vand.u32 %v2765, 4294901760
        %v2767 = vsub.f32 %v2765, %v2766
        %v2768 = vand.u32 %v2767, 4294901760
        %2769 = vmatmul.mubr.f32.gmra.mrb[0].mxu0 %v2768
        %v2770 = vpop.f32.mrb[0].mxu0
        %v2771 = vadd.f32 %v225, %v2770
        %v2772 = vpop.f32.mrb[0].mxu0
        %v2773 = vadd.f32 %v229, %v2772
        %2774 = vdwg.mxu0
        %v2775 = vand.u32 %v207, 4294901760
        %v2776 = vsub.f32 %v207, %v2775
        %v2777 = vand.u32 %v2776, 4294901760
        %v2778 = vsub.f32 %v2776, %v2777
        %v2779 = vand.u32 %v2778, 4294901760
        %2780 = vmatprep.subr.mxu0 %v2779
        %v2781 = vand.u32 %v206, 4294901760
        %v2782 = vsub.f32 %v206, %v2781
        %v2783 = vand.u32 %v2782, 4294901760
        %v2784 = vsub.f32 %v2782, %v2783
        %v2785 = vand.u32 %v2784, 4294901760
        %2786 = vmatpush1.msra.mxu0 %v2785
        %v2787 = vand.u32 %v342, 4294901760
        %v2788 = vsub.f32 %v342, %v2787
        %v2789 = vand.u32 %v2788, 4294901760
        %v2790 = vsub.f32 %v2788, %v2789
        %v2791 = vand.u32 %v2790, 4294901760
        %2792 = vmatprep.subr.mxu0 %v2791
        %v2793 = vand.u32 %v339, 4294901760
        %v2794 = vsub.f32 %v339, %v2793
        %v2795 = vand.u32 %v2794, 4294901760
        %v2796 = vsub.f32 %v2794, %v2795
        %v2797 = vand.u32 %v2796, 4294901760
        %2798 = vmatpush1.msra.mxu0 %v2797
        %2799 = vmatprep.subr.mxu0 0.0
        %2800 = vmatpush1.msra.mxu0 0.0
        %2801 = vmatprep.subr.mxu0 0.0
        %2802 = vmatpush1.msra.mxu0 0.0
        %2803 = vmatprep.subr.mxu0 0.0
        %2804 = vmatpush1.msra.mxu0 0.0
        %2805 = vmatprep.subr.mxu0 0.0
        %2806 = vmatpush1.msra.mxu0 0.0
        %2807 = vmatprep.subr.mxu0 0.0
        %2808 = vmatpush1.msra.mxu0 0.0
        %2809 = vmatprep.subr.mxu0 0.0
        %2810 = vmatpush1.msra.mxu0 0.0
        %2811 = vmatprep.subr.mxu0 0.0
        %2812 = vmatpush1.msra.mxu0 0.0
        %2813 = vmatprep.subr.mxu0 0.0
        %2814 = vmatpush1.msra.mxu0 0.0
        %2815 = vmatprep.subr.mxu0 0.0
        %2816 = vmatpush1.msra.mxu0 0.0
        %2817 = vmatprep.subr.mxu0 0.0
        %2818 = vmatpush1.msra.mxu0 0.0
        %2819 = vmatprep.subr.mxu0 0.0
        %2820 = vmatpush1.msra.mxu0 0.0
        %2821 = vmatprep.subr.mxu0 0.0
        %2822 = vmatpush1.msra.mxu0 0.0
        %2823 = vmatprep.subr.mxu0 0.0
        %2824 = vmatpush1.msra.mxu0 0.0
        %2825 = vmatprep.subr.mxu0 0.0
        %2826 = vmatpush1.msra.mxu0 0.0
        %2827 = vmatprep.subr.mxu0 0.0
        %2828 = vmatpush1.msra.mxu0 0.0
        %2829 = vmatprep.subr.mxu0 0.0
        %2830 = vmatpush1.msra.mxu0 0.0
        %2831 = vmatprep.subr.mxu0 0.0
        %2832 = vmatpush1.msra.mxu0 0.0
        %2833 = vmatprep.subr.mxu0 0.0
        %2834 = vmatpush1.msra.mxu0 0.0
        %2835 = vmatprep.subr.mxu0 0.0
        %2836 = vmatpush1.msra.mxu0 0.0
        %2837 = vmatprep.subr.mxu0 0.0
        %2838 = vmatpush1.msra.mxu0 0.0
        %2839 = vmatprep.subr.mxu0 0.0
        %2840 = vmatpush1.msra.mxu0 0.0
        %2841 = vmatprep.subr.mxu0 0.0
        %2842 = vmatpush1.msra.mxu0 0.0
        %2843 = vmatprep.subr.mxu0 0.0
        %2844 = vmatpush1.msra.mxu0 0.0
        %2845 = vmatprep.subr.mxu0 0.0
        %2846 = vmatpush1.msra.mxu0 0.0
        %2847 = vmatprep.subr.mxu0 0.0
        %2848 = vmatpush1.msra.mxu0 0.0
        %2849 = vmatprep.subr.mxu0 0.0
        %2850 = vmatpush1.msra.mxu0 0.0
        %2851 = vmatprep.subr.mxu0 0.0
        %2852 = vmatpush1.msra.mxu0 0.0
        %2853 = vmatprep.subr.mxu0 0.0
        %2854 = vmatpush1.msra.mxu0 0.0
        %2855 = vmatprep.subr.mxu0 0.0
        %2856 = vmatpush1.msra.mxu0 0.0
        %2857 = vmatprep.subr.mxu0 0.0
        %2858 = vmatpush1.msra.mxu0 0.0
        %2859 = vmatprep.mubr.f32.mxu0 0.0
        %v2860 = vand.u32 %v236, 4294901760
        %2861 = vmatmul.mubr.f32.gmra.mrb[0].mxu0 %v2860
        %v2862 = vpop.f32.mrb[0].mxu0
        %v2863 = vadd.f32 %v2430, %v2862
        %v2864 = vpop.f32.mrb[0].mxu0
        %v2865 = vadd.f32 %v2432, %v2864
        %2866 = vmatprep.mubr.f32.mxu0 0.0
        %v2867 = vand.u32 %v239, 4294901760
        %2868 = vmatmul.mubr.f32.gmra.mrb[0].mxu0 %v2867
        %v2869 = vpop.f32.mrb[0].mxu0
        %v2870 = vadd.f32 %v2441, %v2869
        %v2871 = vpop.f32.mrb[0].mxu0
        %v2872 = vadd.f32 %v2443, %v2871
        %2873 = vmatprep.mubr.f32.mxu0 0.0
        %v2874 = vand.u32 %v242, 4294901760
        %2875 = vmatmul.mubr.f32.gmra.mrb[0].mxu0 %v2874
        %v2876 = vpop.f32.mrb[0].mxu0
        %v2877 = vadd.f32 %v2452, %v2876
        %v2878 = vpop.f32.mrb[0].mxu0
        %v2879 = vadd.f32 %v2454, %v2878
        %2880 = vmatprep.mubr.f32.mxu0 0.0
        %v2881 = vand.u32 %v245, 4294901760
        %2882 = vmatmul.mubr.f32.gmra.mrb[0].mxu0 %v2881
        %v2883 = vpop.f32.mrb[0].mxu0
        %v2884 = vadd.f32 %v2463, %v2883
        %v2885 = vpop.f32.mrb[0].mxu0
        %v2886 = vadd.f32 %v2465, %v2885
        %2887 = vmatprep.mubr.f32.mxu0 0.0
        %v2888 = vand.u32 %v248, 4294901760
        %2889 = vmatmul.mubr.f32.gmra.mrb[0].mxu0 %v2888
        %v2890 = vpop.f32.mrb[0].mxu0
        %v2891 = vadd.f32 %v2474, %v2890
        %v2892 = vpop.f32.mrb[0].mxu0
        %v2893 = vadd.f32 %v2476, %v2892
        %2894 = vmatprep.mubr.f32.mxu0 0.0
        %v2895 = vand.u32 %v251, 4294901760
        %2896 = vmatmul.mubr.f32.gmra.mrb[0].mxu0 %v2895
        %v2897 = vpop.f32.mrb[0].mxu0
        %v2898 = vadd.f32 %v2485, %v2897
        %v2899 = vpop.f32.mrb[0].mxu0
        %v2900 = vadd.f32 %v2487, %v2899
        %2901 = vmatprep.mubr.f32.mxu0 0.0
        %v2902 = vand.u32 %v254, 4294901760
        %2903 = vmatmul.mubr.f32.gmra.mrb[0].mxu0 %v2902
        %v2904 = vpop.f32.mrb[0].mxu0
        %v2905 = vadd.f32 %v2496, %v2904
        %v2906 = vpop.f32.mrb[0].mxu0
        %v2907 = vadd.f32 %v2498, %v2906
        %2908 = vmatprep.mubr.f32.mxu0 0.0
        %v2909 = vand.u32 %v257, 4294901760
        %2910 = vmatmul.mubr.f32.gmra.mrb[0].mxu0 %v2909
        %v2911 = vpop.f32.mrb[0].mxu0
        %v2912 = vadd.f32 %v2507, %v2911
        %v2913 = vpop.f32.mrb[0].mxu0
        %v2914 = vadd.f32 %v2509, %v2913
        %2915 = vmatprep.mubr.f32.mxu0 0.0
        %v2916 = vand.u32 %v260, 4294901760
        %2917 = vmatmul.mubr.f32.gmra.mrb[0].mxu0 %v2916
        %v2918 = vpop.f32.mrb[0].mxu0
        %v2919 = vadd.f32 %v2518, %v2918
        %v2920 = vpop.f32.mrb[0].mxu0
        %v2921 = vadd.f32 %v2520, %v2920
        %2922 = vmatprep.mubr.f32.mxu0 0.0
        %v2923 = vand.u32 %v263, 4294901760
        %2924 = vmatmul.mubr.f32.gmra.mrb[0].mxu0 %v2923
        %v2925 = vpop.f32.mrb[0].mxu0
        %v2926 = vadd.f32 %v2529, %v2925
        %v2927 = vpop.f32.mrb[0].mxu0
        %v2928 = vadd.f32 %v2531, %v2927
        %2929 = vmatprep.mubr.f32.mxu0 0.0
        %v2930 = vand.u32 %v266, 4294901760
        %2931 = vmatmul.mubr.f32.gmra.mrb[0].mxu0 %v2930
        %v2932 = vpop.f32.mrb[0].mxu0
        %v2933 = vadd.f32 %v2540, %v2932
        %v2934 = vpop.f32.mrb[0].mxu0
        %v2935 = vadd.f32 %v2542, %v2934
        %2936 = vmatprep.mubr.f32.mxu0 0.0
        %v2937 = vand.u32 %v269, 4294901760
        %2938 = vmatmul.mubr.f32.gmra.mrb[0].mxu0 %v2937
        %v2939 = vpop.f32.mrb[0].mxu0
        %v2940 = vadd.f32 %v2551, %v2939
        %v2941 = vpop.f32.mrb[0].mxu0
        %v2942 = vadd.f32 %v2553, %v2941
        %2943 = vmatprep.mubr.f32.mxu0 0.0
        %v2944 = vand.u32 %v272, 4294901760
        %2945 = vmatmul.mubr.f32.gmra.mrb[0].mxu0 %v2944
        %v2946 = vpop.f32.mrb[0].mxu0
        %v2947 = vadd.f32 %v2562, %v2946
        %v2948 = vpop.f32.mrb[0].mxu0
        %v2949 = vadd.f32 %v2564, %v2948
        %2950 = vmatprep.mubr.f32.mxu0 0.0
        %v2951 = vand.u32 %v275, 4294901760
        %2952 = vmatmul.mubr.f32.gmra.mrb[0].mxu0 %v2951
        %v2953 = vpop.f32.mrb[0].mxu0
        %v2954 = vadd.f32 %v2573, %v2953
        %v2955 = vpop.f32.mrb[0].mxu0
        %v2956 = vadd.f32 %v2575, %v2955
        %2957 = vmatprep.mubr.f32.mxu0 0.0
        %v2958 = vand.u32 %v278, 4294901760
        %2959 = vmatmul.mubr.f32.gmra.mrb[0].mxu0 %v2958
        %v2960 = vpop.f32.mrb[0].mxu0
        %v2961 = vadd.f32 %v2584, %v2960
        %v2962 = vpop.f32.mrb[0].mxu0
        %v2963 = vadd.f32 %v2586, %v2962
        %2964 = vmatprep.mubr.f32.mxu0 0.0
        %v2965 = vand.u32 %v281, 4294901760
        %2966 = vmatmul.mubr.f32.gmra.mrb[0].mxu0 %v2965
        %v2967 = vpop.f32.mrb[0].mxu0
        %v2968 = vadd.f32 %v2595, %v2967
        %v2969 = vpop.f32.mrb[0].mxu0
        %v2970 = vadd.f32 %v2597, %v2969
        %2971 = vmatprep.mubr.f32.mxu0 0.0
        %v2972 = vand.u32 %v284, 4294901760
        %2973 = vmatmul.mubr.f32.gmra.mrb[0].mxu0 %v2972
        %v2974 = vpop.f32.mrb[0].mxu0
        %v2975 = vadd.f32 %v2606, %v2974
        %v2976 = vpop.f32.mrb[0].mxu0
        %v2977 = vadd.f32 %v2608, %v2976
        %2978 = vmatprep.mubr.f32.mxu0 0.0
        %v2979 = vand.u32 %v287, 4294901760
        %2980 = vmatmul.mubr.f32.gmra.mrb[0].mxu0 %v2979
        %v2981 = vpop.f32.mrb[0].mxu0
        %v2982 = vadd.f32 %v2617, %v2981
        %v2983 = vpop.f32.mrb[0].mxu0
        %v2984 = vadd.f32 %v2619, %v2983
        %2985 = vmatprep.mubr.f32.mxu0 0.0
        %v2986 = vand.u32 %v290, 4294901760
        %2987 = vmatmul.mubr.f32.gmra.mrb[0].mxu0 %v2986
        %v2988 = vpop.f32.mrb[0].mxu0
        %v2989 = vadd.f32 %v2628, %v2988
        %v2990 = vpop.f32.mrb[0].mxu0
        %v2991 = vadd.f32 %v2630, %v2990
        %2992 = vmatprep.mubr.f32.mxu0 0.0
        %v2993 = vand.u32 %v293, 4294901760
        %2994 = vmatmul.mubr.f32.gmra.mrb[0].mxu0 %v2993
        %v2995 = vpop.f32.mrb[0].mxu0
        %v2996 = vadd.f32 %v2639, %v2995
        %v2997 = vpop.f32.mrb[0].mxu0
        %v2998 = vadd.f32 %v2641, %v2997
        %2999 = vmatprep.mubr.f32.mxu0 0.0
        %v3000 = vand.u32 %v296, 4294901760
        %3001 = vmatmul.mubr.f32.gmra.mrb[0].mxu0 %v3000
        %v3002 = vpop.f32.mrb[0].mxu0
        %v3003 = vadd.f32 %v2650, %v3002
        %v3004 = vpop.f32.mrb[0].mxu0
        %v3005 = vadd.f32 %v2652, %v3004
        %3006 = vmatprep.mubr.f32.mxu0 0.0
        %v3007 = vand.u32 %v299, 4294901760
        %3008 = vmatmul.mubr.f32.gmra.mrb[0].mxu0 %v3007
        %v3009 = vpop.f32.mrb[0].mxu0
        %v3010 = vadd.f32 %v2661, %v3009
        %v3011 = vpop.f32.mrb[0].mxu0
        %v3012 = vadd.f32 %v2663, %v3011
        %3013 = vmatprep.mubr.f32.mxu0 0.0
        %v3014 = vand.u32 %v302, 4294901760
        %3015 = vmatmul.mubr.f32.gmra.mrb[0].mxu0 %v3014
        %v3016 = vpop.f32.mrb[0].mxu0
        %v3017 = vadd.f32 %v2672, %v3016
        %v3018 = vpop.f32.mrb[0].mxu0
        %v3019 = vadd.f32 %v2674, %v3018
        %3020 = vmatprep.mubr.f32.mxu0 0.0
        %v3021 = vand.u32 %v305, 4294901760
        %3022 = vmatmul.mubr.f32.gmra.mrb[0].mxu0 %v3021
        %v3023 = vpop.f32.mrb[0].mxu0
        %v3024 = vadd.f32 %v2683, %v3023
        %v3025 = vpop.f32.mrb[0].mxu0
        %v3026 = vadd.f32 %v2685, %v3025
        %3027 = vmatprep.mubr.f32.mxu0 0.0
        %v3028 = vand.u32 %v308, 4294901760
        %3029 = vmatmul.mubr.f32.gmra.mrb[0].mxu0 %v3028
        %v3030 = vpop.f32.mrb[0].mxu0
        %v3031 = vadd.f32 %v2694, %v3030
        %v3032 = vpop.f32.mrb[0].mxu0
        %v3033 = vadd.f32 %v2696, %v3032
        %3034 = vmatprep.mubr.f32.mxu0 0.0
        %v3035 = vand.u32 %v311, 4294901760
        %3036 = vmatmul.mubr.f32.gmra.mrb[0].mxu0 %v3035
        %v3037 = vpop.f32.mrb[0].mxu0
        %v3038 = vadd.f32 %v2705, %v3037
        %v3039 = vpop.f32.mrb[0].mxu0
        %v3040 = vadd.f32 %v2707, %v3039
        %3041 = vmatprep.mubr.f32.mxu0 0.0
        %v3042 = vand.u32 %v314, 4294901760
        %3043 = vmatmul.mubr.f32.gmra.mrb[0].mxu0 %v3042
        %v3044 = vpop.f32.mrb[0].mxu0
        %v3045 = vadd.f32 %v2716, %v3044
        %v3046 = vpop.f32.mrb[0].mxu0
        %v3047 = vadd.f32 %v2718, %v3046
        %3048 = vmatprep.mubr.f32.mxu0 0.0
        %v3049 = vand.u32 %v317, 4294901760
        %3050 = vmatmul.mubr.f32.gmra.mrb[0].mxu0 %v3049
        %v3051 = vpop.f32.mrb[0].mxu0
        %v3052 = vadd.f32 %v2727, %v3051
        %v3053 = vpop.f32.mrb[0].mxu0
        %v3054 = vadd.f32 %v2729, %v3053
        %3055 = vmatprep.mubr.f32.mxu0 0.0
        %v3056 = vand.u32 %v320, 4294901760
        %3057 = vmatmul.mubr.f32.gmra.mrb[0].mxu0 %v3056
        %v3058 = vpop.f32.mrb[0].mxu0
        %v3059 = vadd.f32 %v2738, %v3058
        %v3060 = vpop.f32.mrb[0].mxu0
        %v3061 = vadd.f32 %v2740, %v3060
        %3062 = vmatprep.mubr.f32.mxu0 0.0
        %v3063 = vand.u32 %v323, 4294901760
        %3064 = vmatmul.mubr.f32.gmra.mrb[0].mxu0 %v3063
        %v3065 = vpop.f32.mrb[0].mxu0
        %v3066 = vadd.f32 %v2749, %v3065
        %v3067 = vpop.f32.mrb[0].mxu0
        %v3068 = vadd.f32 %v2751, %v3067
        %3069 = vmatprep.mubr.f32.mxu0 0.0
        %v3070 = vand.u32 %v326, 4294901760
        %3071 = vmatmul.mubr.f32.gmra.mrb[0].mxu0 %v3070
        %v3072 = vpop.f32.mrb[0].mxu0
        %v3073 = vadd.f32 %v2760, %v3072
        %v3074 = vpop.f32.mrb[0].mxu0
        %v3075 = vadd.f32 %v2762, %v3074
        %3076 = vmatprep.mubr.f32.mxu0 0.0
        %v3077 = vand.u32 %v329, 4294901760
        %3078 = vmatmul.mubr.f32.gmra.mrb[0].mxu0 %v3077
        %v3079 = vpop.f32.mrb[0].mxu0
        %v3080 = vadd.f32 %v2771, %v3079
        %v3081 = vpop.f32.mrb[0].mxu0
        %v3082 = vadd.f32 %v2773, %v3081
        %3083 = vdwg.mxu0
        %v3084 = vand.u32 %v207, 4294901760
        %v3085 = vsub.f32 %v207, %v3084
        %3086 = vmatprep.subr.mxu0 %v3085
        %v3087 = vand.u32 %v206, 4294901760
        %v3088 = vsub.f32 %v206, %v3087
        %3089 = vmatpush1.msra.mxu0 %v3088
        %v3090 = vand.u32 %v342, 4294901760
        %v3091 = vsub.f32 %v342, %v3090
        %3092 = vmatprep.subr.mxu0 %v3091
        %v3093 = vand.u32 %v339, 4294901760
        %v3094 = vsub.f32 %v339, %v3093
        %3095 = vmatpush1.msra.mxu0 %v3094
        %3096 = vmatprep.subr.mxu0 0.0
        %3097 = vmatpush1.msra.mxu0 0.0
        %3098 = vmatprep.subr.mxu0 0.0
        %3099 = vmatpush1.msra.mxu0 0.0
        %3100 = vmatprep.subr.mxu0 0.0
        %3101 = vmatpush1.msra.mxu0 0.0
        %3102 = vmatprep.subr.mxu0 0.0
        %3103 = vmatpush1.msra.mxu0 0.0
        %3104 = vmatprep.subr.mxu0 0.0
        %3105 = vmatpush1.msra.mxu0 0.0
        %3106 = vmatprep.subr.mxu0 0.0
        %3107 = vmatpush1.msra.mxu0 0.0
        %3108 = vmatprep.subr.mxu0 0.0
        %3109 = vmatpush1.msra.mxu0 0.0
        %3110 = vmatprep.subr.mxu0 0.0
        %3111 = vmatpush1.msra.mxu0 0.0
        %3112 = vmatprep.subr.mxu0 0.0
        %3113 = vmatpush1.msra.mxu0 0.0
        %3114 = vmatprep.subr.mxu0 0.0
        %3115 = vmatpush1.msra.mxu0 0.0
        %3116 = vmatprep.subr.mxu0 0.0
        %3117 = vmatpush1.msra.mxu0 0.0
        %3118 = vmatprep.subr.mxu0 0.0
        %3119 = vmatpush1.msra.mxu0 0.0
        %3120 = vmatprep.subr.mxu0 0.0
        %3121 = vmatpush1.msra.mxu0 0.0
        %3122 = vmatprep.subr.mxu0 0.0
        %3123 = vmatpush1.msra.mxu0 0.0
        %3124 = vmatprep.subr.mxu0 0.0
        %3125 = vmatpush1.msra.mxu0 0.0
        %3126 = vmatprep.subr.mxu0 0.0
        %3127 = vmatpush1.msra.mxu0 0.0
        %3128 = vmatprep.subr.mxu0 0.0
        %3129 = vmatpush1.msra.mxu0 0.0
        %3130 = vmatprep.subr.mxu0 0.0
        %3131 = vmatpush1.msra.mxu0 0.0
        %3132 = vmatprep.subr.mxu0 0.0
        %3133 = vmatpush1.msra.mxu0 0.0
        %3134 = vmatprep.subr.mxu0 0.0
        %3135 = vmatpush1.msra.mxu0 0.0
        %3136 = vmatprep.subr.mxu0 0.0
        %3137 = vmatpush1.msra.mxu0 0.0
        %3138 = vmatprep.subr.mxu0 0.0
        %3139 = vmatpush1.msra.mxu0 0.0
        %3140 = vmatprep.subr.mxu0 0.0
        %3141 = vmatpush1.msra.mxu0 0.0
        %3142 = vmatprep.subr.mxu0 0.0
        %3143 = vmatpush1.msra.mxu0 0.0
        %3144 = vmatprep.subr.mxu0 0.0
        %3145 = vmatpush1.msra.mxu0 0.0
        %3146 = vmatprep.subr.mxu0 0.0
        %3147 = vmatpush1.msra.mxu0 0.0
        %3148 = vmatprep.subr.mxu0 0.0
        %3149 = vmatpush1.msra.mxu0 0.0
        %3150 = vmatprep.subr.mxu0 0.0
        %3151 = vmatpush1.msra.mxu0 0.0
        %3152 = vmatprep.subr.mxu0 0.0
        %3153 = vmatpush1.msra.mxu0 0.0
        %3154 = vmatprep.subr.mxu0 0.0
        %3155 = vmatpush1.msra.mxu0 0.0
        %3156 = vmatprep.mubr.f32.mxu0 0.0
        %v3157 = vand.u32 %v236, 4294901760
        %v3158 = vsub.f32 %v236, %v3157
        %3159 = vmatmul.mubr.f32.gmra.mrb[0].mxu0 %v3158
        %v3160 = vpop.f32.mrb[0].mxu0
        %v3161 = vadd.f32 %v2863, %v3160
        %v3162 = vpop.f32.mrb[0].mxu0
        %v3163 = vadd.f32 %v2865, %v3162
        %3164 = vmatprep.mubr.f32.mxu0 0.0
        %v3165 = vand.u32 %v239, 4294901760
        %v3166 = vsub.f32 %v239, %v3165
        %3167 = vmatmul.mubr.f32.gmra.mrb[0].mxu0 %v3166
        %v3168 = vpop.f32.mrb[0].mxu0
        %v3169 = vadd.f32 %v2870, %v3168
        %v3170 = vpop.f32.mrb[0].mxu0
        %v3171 = vadd.f32 %v2872, %v3170
        %3172 = vmatprep.mubr.f32.mxu0 0.0
        %v3173 = vand.u32 %v242, 4294901760
        %v3174 = vsub.f32 %v242, %v3173
        %3175 = vmatmul.mubr.f32.gmra.mrb[0].mxu0 %v3174
        %v3176 = vpop.f32.mrb[0].mxu0
        %v3177 = vadd.f32 %v2877, %v3176
        %v3178 = vpop.f32.mrb[0].mxu0
        %v3179 = vadd.f32 %v2879, %v3178
        %3180 = vmatprep.mubr.f32.mxu0 0.0
        %v3181 = vand.u32 %v245, 4294901760
        %v3182 = vsub.f32 %v245, %v3181
        %3183 = vmatmul.mubr.f32.gmra.mrb[0].mxu0 %v3182
        %v3184 = vpop.f32.mrb[0].mxu0
        %v3185 = vadd.f32 %v2884, %v3184
        %v3186 = vpop.f32.mrb[0].mxu0
        %v3187 = vadd.f32 %v2886, %v3186
        %3188 = vmatprep.mubr.f32.mxu0 0.0
        %v3189 = vand.u32 %v248, 4294901760
        %v3190 = vsub.f32 %v248, %v3189
        %3191 = vmatmul.mubr.f32.gmra.mrb[0].mxu0 %v3190
        %v3192 = vpop.f32.mrb[0].mxu0
        %v3193 = vadd.f32 %v2891, %v3192
        %v3194 = vpop.f32.mrb[0].mxu0
        %v3195 = vadd.f32 %v2893, %v3194
        %3196 = vmatprep.mubr.f32.mxu0 0.0
        %v3197 = vand.u32 %v251, 4294901760
        %v3198 = vsub.f32 %v251, %v3197
        %3199 = vmatmul.mubr.f32.gmra.mrb[0].mxu0 %v3198
        %v3200 = vpop.f32.mrb[0].mxu0
        %v3201 = vadd.f32 %v2898, %v3200
        %v3202 = vpop.f32.mrb[0].mxu0
        %v3203 = vadd.f32 %v2900, %v3202
        %3204 = vmatprep.mubr.f32.mxu0 0.0
        %v3205 = vand.u32 %v254, 4294901760
        %v3206 = vsub.f32 %v254, %v3205
        %3207 = vmatmul.mubr.f32.gmra.mrb[0].mxu0 %v3206
        %v3208 = vpop.f32.mrb[0].mxu0
        %v3209 = vadd.f32 %v2905, %v3208
        %v3210 = vpop.f32.mrb[0].mxu0
        %v3211 = vadd.f32 %v2907, %v3210
        %3212 = vmatprep.mubr.f32.mxu0 0.0
        %v3213 = vand.u32 %v257, 4294901760
        %v3214 = vsub.f32 %v257, %v3213
        %3215 = vmatmul.mubr.f32.gmra.mrb[0].mxu0 %v3214
        %v3216 = vpop.f32.mrb[0].mxu0
        %v3217 = vadd.f32 %v2912, %v3216
        %v3218 = vpop.f32.mrb[0].mxu0
        %v3219 = vadd.f32 %v2914, %v3218
        %3220 = vmatprep.mubr.f32.mxu0 0.0
        %v3221 = vand.u32 %v260, 4294901760
        %v3222 = vsub.f32 %v260, %v3221
        %3223 = vmatmul.mubr.f32.gmra.mrb[0].mxu0 %v3222
        %v3224 = vpop.f32.mrb[0].mxu0
        %v3225 = vadd.f32 %v2919, %v3224
        %v3226 = vpop.f32.mrb[0].mxu0
        %v3227 = vadd.f32 %v2921, %v3226
        %3228 = vmatprep.mubr.f32.mxu0 0.0
        %v3229 = vand.u32 %v263, 4294901760
        %v3230 = vsub.f32 %v263, %v3229
        %3231 = vmatmul.mubr.f32.gmra.mrb[0].mxu0 %v3230
        %v3232 = vpop.f32.mrb[0].mxu0
        %v3233 = vadd.f32 %v2926, %v3232
        %v3234 = vpop.f32.mrb[0].mxu0
        %v3235 = vadd.f32 %v2928, %v3234
        %3236 = vmatprep.mubr.f32.mxu0 0.0
        %v3237 = vand.u32 %v266, 4294901760
        %v3238 = vsub.f32 %v266, %v3237
        %3239 = vmatmul.mubr.f32.gmra.mrb[0].mxu0 %v3238
        %v3240 = vpop.f32.mrb[0].mxu0
        %v3241 = vadd.f32 %v2933, %v3240
        %v3242 = vpop.f32.mrb[0].mxu0
        %v3243 = vadd.f32 %v2935, %v3242
        %3244 = vmatprep.mubr.f32.mxu0 0.0
        %v3245 = vand.u32 %v269, 4294901760
        %v3246 = vsub.f32 %v269, %v3245
        %3247 = vmatmul.mubr.f32.gmra.mrb[0].mxu0 %v3246
        %v3248 = vpop.f32.mrb[0].mxu0
        %v3249 = vadd.f32 %v2940, %v3248
        %v3250 = vpop.f32.mrb[0].mxu0
        %v3251 = vadd.f32 %v2942, %v3250
        %3252 = vmatprep.mubr.f32.mxu0 0.0
        %v3253 = vand.u32 %v272, 4294901760
        %v3254 = vsub.f32 %v272, %v3253
        %3255 = vmatmul.mubr.f32.gmra.mrb[0].mxu0 %v3254
        %v3256 = vpop.f32.mrb[0].mxu0
        %v3257 = vadd.f32 %v2947, %v3256
        %v3258 = vpop.f32.mrb[0].mxu0
        %v3259 = vadd.f32 %v2949, %v3258
        %3260 = vmatprep.mubr.f32.mxu0 0.0
        %v3261 = vand.u32 %v275, 4294901760
        %v3262 = vsub.f32 %v275, %v3261
        %3263 = vmatmul.mubr.f32.gmra.mrb[0].mxu0 %v3262
        %v3264 = vpop.f32.mrb[0].mxu0
        %v3265 = vadd.f32 %v2954, %v3264
        %v3266 = vpop.f32.mrb[0].mxu0
        %v3267 = vadd.f32 %v2956, %v3266
        %3268 = vmatprep.mubr.f32.mxu0 0.0
        %v3269 = vand.u32 %v278, 4294901760
        %v3270 = vsub.f32 %v278, %v3269
        %3271 = vmatmul.mubr.f32.gmra.mrb[0].mxu0 %v3270
        %v3272 = vpop.f32.mrb[0].mxu0
        %v3273 = vadd.f32 %v2961, %v3272
        %v3274 = vpop.f32.mrb[0].mxu0
        %v3275 = vadd.f32 %v2963, %v3274
        %3276 = vmatprep.mubr.f32.mxu0 0.0
        %v3277 = vand.u32 %v281, 4294901760
        %v3278 = vsub.f32 %v281, %v3277
        %3279 = vmatmul.mubr.f32.gmra.mrb[0].mxu0 %v3278
        %v3280 = vpop.f32.mrb[0].mxu0
        %v3281 = vadd.f32 %v2968, %v3280
        %v3282 = vpop.f32.mrb[0].mxu0
        %v3283 = vadd.f32 %v2970, %v3282
        %3284 = vmatprep.mubr.f32.mxu0 0.0
        %v3285 = vand.u32 %v284, 4294901760
        %v3286 = vsub.f32 %v284, %v3285
        %3287 = vmatmul.mubr.f32.gmra.mrb[0].mxu0 %v3286
        %v3288 = vpop.f32.mrb[0].mxu0
        %v3289 = vadd.f32 %v2975, %v3288
        %v3290 = vpop.f32.mrb[0].mxu0
        %v3291 = vadd.f32 %v2977, %v3290
        %3292 = vmatprep.mubr.f32.mxu0 0.0
        %v3293 = vand.u32 %v287, 4294901760
        %v3294 = vsub.f32 %v287, %v3293
        %3295 = vmatmul.mubr.f32.gmra.mrb[0].mxu0 %v3294
        %v3296 = vpop.f32.mrb[0].mxu0
        %v3297 = vadd.f32 %v2982, %v3296
        %v3298 = vpop.f32.mrb[0].mxu0
        %v3299 = vadd.f32 %v2984, %v3298
        %3300 = vmatprep.mubr.f32.mxu0 0.0
        %v3301 = vand.u32 %v290, 4294901760
        %v3302 = vsub.f32 %v290, %v3301
        %3303 = vmatmul.mubr.f32.gmra.mrb[0].mxu0 %v3302
        %v3304 = vpop.f32.mrb[0].mxu0
        %v3305 = vadd.f32 %v2989, %v3304
        %v3306 = vpop.f32.mrb[0].mxu0
        %v3307 = vadd.f32 %v2991, %v3306
        %3308 = vmatprep.mubr.f32.mxu0 0.0
        %v3309 = vand.u32 %v293, 4294901760
        %v3310 = vsub.f32 %v293, %v3309
        %3311 = vmatmul.mubr.f32.gmra.mrb[0].mxu0 %v3310
        %v3312 = vpop.f32.mrb[0].mxu0
        %v3313 = vadd.f32 %v2996, %v3312
        %v3314 = vpop.f32.mrb[0].mxu0
        %v3315 = vadd.f32 %v2998, %v3314
        %3316 = vmatprep.mubr.f32.mxu0 0.0
        %v3317 = vand.u32 %v296, 4294901760
        %v3318 = vsub.f32 %v296, %v3317
        %3319 = vmatmul.mubr.f32.gmra.mrb[0].mxu0 %v3318
        %v3320 = vpop.f32.mrb[0].mxu0
        %v3321 = vadd.f32 %v3003, %v3320
        %v3322 = vpop.f32.mrb[0].mxu0
        %v3323 = vadd.f32 %v3005, %v3322
        %3324 = vmatprep.mubr.f32.mxu0 0.0
        %v3325 = vand.u32 %v299, 4294901760
        %v3326 = vsub.f32 %v299, %v3325
        %3327 = vmatmul.mubr.f32.gmra.mrb[0].mxu0 %v3326
        %v3328 = vpop.f32.mrb[0].mxu0
        %v3329 = vadd.f32 %v3010, %v3328
        %v3330 = vpop.f32.mrb[0].mxu0
        %v3331 = vadd.f32 %v3012, %v3330
        %3332 = vmatprep.mubr.f32.mxu0 0.0
        %v3333 = vand.u32 %v302, 4294901760
        %v3334 = vsub.f32 %v302, %v3333
        %3335 = vmatmul.mubr.f32.gmra.mrb[0].mxu0 %v3334
        %v3336 = vpop.f32.mrb[0].mxu0
        %v3337 = vadd.f32 %v3017, %v3336
        %v3338 = vpop.f32.mrb[0].mxu0
        %v3339 = vadd.f32 %v3019, %v3338
        %3340 = vmatprep.mubr.f32.mxu0 0.0
        %v3341 = vand.u32 %v305, 4294901760
        %v3342 = vsub.f32 %v305, %v3341
        %3343 = vmatmul.mubr.f32.gmra.mrb[0].mxu0 %v3342
        %v3344 = vpop.f32.mrb[0].mxu0
        %v3345 = vadd.f32 %v3024, %v3344
        %v3346 = vpop.f32.mrb[0].mxu0
        %v3347 = vadd.f32 %v3026, %v3346
        %3348 = vmatprep.mubr.f32.mxu0 0.0
        %v3349 = vand.u32 %v308, 4294901760
        %v3350 = vsub.f32 %v308, %v3349
        %3351 = vmatmul.mubr.f32.gmra.mrb[0].mxu0 %v3350
        %v3352 = vpop.f32.mrb[0].mxu0
        %v3353 = vadd.f32 %v3031, %v3352
        %v3354 = vpop.f32.mrb[0].mxu0
        %v3355 = vadd.f32 %v3033, %v3354
        %3356 = vmatprep.mubr.f32.mxu0 0.0
        %v3357 = vand.u32 %v311, 4294901760
        %v3358 = vsub.f32 %v311, %v3357
        %3359 = vmatmul.mubr.f32.gmra.mrb[0].mxu0 %v3358
        %v3360 = vpop.f32.mrb[0].mxu0
        %v3361 = vadd.f32 %v3038, %v3360
        %v3362 = vpop.f32.mrb[0].mxu0
        %v3363 = vadd.f32 %v3040, %v3362
        %3364 = vmatprep.mubr.f32.mxu0 0.0
        %v3365 = vand.u32 %v314, 4294901760
        %v3366 = vsub.f32 %v314, %v3365
        %3367 = vmatmul.mubr.f32.gmra.mrb[0].mxu0 %v3366
        %v3368 = vpop.f32.mrb[0].mxu0
        %v3369 = vadd.f32 %v3045, %v3368
        %v3370 = vpop.f32.mrb[0].mxu0
        %v3371 = vadd.f32 %v3047, %v3370
        %3372 = vmatprep.mubr.f32.mxu0 0.0
        %v3373 = vand.u32 %v317, 4294901760
        %v3374 = vsub.f32 %v317, %v3373
        %3375 = vmatmul.mubr.f32.gmra.mrb[0].mxu0 %v3374
        %v3376 = vpop.f32.mrb[0].mxu0
        %v3377 = vadd.f32 %v3052, %v3376
        %v3378 = vpop.f32.mrb[0].mxu0
        %v3379 = vadd.f32 %v3054, %v3378
        %3380 = vmatprep.mubr.f32.mxu0 0.0
        %v3381 = vand.u32 %v320, 4294901760
        %v3382 = vsub.f32 %v320, %v3381
        %3383 = vmatmul.mubr.f32.gmra.mrb[0].mxu0 %v3382
        %v3384 = vpop.f32.mrb[0].mxu0
        %v3385 = vadd.f32 %v3059, %v3384
        %v3386 = vpop.f32.mrb[0].mxu0
        %v3387 = vadd.f32 %v3061, %v3386
        %3388 = vmatprep.mubr.f32.mxu0 0.0
        %v3389 = vand.u32 %v323, 4294901760
        %v3390 = vsub.f32 %v323, %v3389
        %3391 = vmatmul.mubr.f32.gmra.mrb[0].mxu0 %v3390
        %v3392 = vpop.f32.mrb[0].mxu0
        %v3393 = vadd.f32 %v3066, %v3392
        %v3394 = vpop.f32.mrb[0].mxu0
        %v3395 = vadd.f32 %v3068, %v3394
        %3396 = vmatprep.mubr.f32.mxu0 0.0
        %v3397 = vand.u32 %v326, 4294901760
        %v3398 = vsub.f32 %v326, %v3397
        %3399 = vmatmul.mubr.f32.gmra.mrb[0].mxu0 %v3398
        %v3400 = vpop.f32.mrb[0].mxu0
        %v3401 = vadd.f32 %v3073, %v3400
        %v3402 = vpop.f32.mrb[0].mxu0
        %v3403 = vadd.f32 %v3075, %v3402
        %3404 = vmatprep.mubr.f32.mxu0 0.0
        %v3405 = vand.u32 %v329, 4294901760
        %v3406 = vsub.f32 %v329, %v3405
        %3407 = vmatmul.mubr.f32.gmra.mrb[0].mxu0 %v3406
        %v3408 = vpop.f32.mrb[0].mxu0
        %v3409 = vadd.f32 %v3080, %v3408
        %v3410 = vpop.f32.mrb[0].mxu0
        %v3411 = vadd.f32 %v3082, %v3410
        %3412 = vdwg.mxu0
        %v3413 = vand.u32 %v207, 4294901760
        %3414 = vmatprep.subr.mxu0 %v3413
        %v3415 = vand.u32 %v206, 4294901760
        %3416 = vmatpush1.msra.mxu0 %v3415
        %v3417 = vand.u32 %v342, 4294901760
        %3418 = vmatprep.subr.mxu0 %v3417
        %v3419 = vand.u32 %v339, 4294901760
        %3420 = vmatpush1.msra.mxu0 %v3419
        %3421 = vmatprep.subr.mxu0 0.0
        %3422 = vmatpush1.msra.mxu0 0.0
        %3423 = vmatprep.subr.mxu0 0.0
        %3424 = vmatpush1.msra.mxu0 0.0
        %3425 = vmatprep.subr.mxu0 0.0
        %3426 = vmatpush1.msra.mxu0 0.0
        %3427 = vmatprep.subr.mxu0 0.0
        %3428 = vmatpush1.msra.mxu0 0.0
        %3429 = vmatprep.subr.mxu0 0.0
        %3430 = vmatpush1.msra.mxu0 0.0
        %3431 = vmatprep.subr.mxu0 0.0
        %3432 = vmatpush1.msra.mxu0 0.0
        %3433 = vmatprep.subr.mxu0 0.0
        %3434 = vmatpush1.msra.mxu0 0.0
        %3435 = vmatprep.subr.mxu0 0.0
        %3436 = vmatpush1.msra.mxu0 0.0
        %3437 = vmatprep.subr.mxu0 0.0
        %3438 = vmatpush1.msra.mxu0 0.0
        %3439 = vmatprep.subr.mxu0 0.0
        %3440 = vmatpush1.msra.mxu0 0.0
        %3441 = vmatprep.subr.mxu0 0.0
        %3442 = vmatpush1.msra.mxu0 0.0
        %3443 = vmatprep.subr.mxu0 0.0
        %3444 = vmatpush1.msra.mxu0 0.0
        %3445 = vmatprep.subr.mxu0 0.0
        %3446 = vmatpush1.msra.mxu0 0.0
        %3447 = vmatprep.subr.mxu0 0.0
        %3448 = vmatpush1.msra.mxu0 0.0
        %3449 = vmatprep.subr.mxu0 0.0
        %3450 = vmatpush1.msra.mxu0 0.0
        %3451 = vmatprep.subr.mxu0 0.0
        %3452 = vmatpush1.msra.mxu0 0.0
        %3453 = vmatprep.subr.mxu0 0.0
        %3454 = vmatpush1.msra.mxu0 0.0
        %3455 = vmatprep.subr.mxu0 0.0
        %3456 = vmatpush1.msra.mxu0 0.0
        %3457 = vmatprep.subr.mxu0 0.0
        %3458 = vmatpush1.msra.mxu0 0.0
        %3459 = vmatprep.subr.mxu0 0.0
        %3460 = vmatpush1.msra.mxu0 0.0
        %3461 = vmatprep.subr.mxu0 0.0
        %3462 = vmatpush1.msra.mxu0 0.0
        %3463 = vmatprep.subr.mxu0 0.0
        %3464 = vmatpush1.msra.mxu0 0.0
        %3465 = vmatprep.subr.mxu0 0.0
        %3466 = vmatpush1.msra.mxu0 0.0
        %3467 = vmatprep.subr.mxu0 0.0
        %3468 = vmatpush1.msra.mxu0 0.0
        %3469 = vmatprep.subr.mxu0 0.0
        %3470 = vmatpush1.msra.mxu0 0.0
        %3471 = vmatprep.subr.mxu0 0.0
        %3472 = vmatpush1.msra.mxu0 0.0
        %3473 = vmatprep.subr.mxu0 0.0
        %3474 = vmatpush1.msra.mxu0 0.0
        %3475 = vmatprep.subr.mxu0 0.0
        %3476 = vmatpush1.msra.mxu0 0.0
        %3477 = vmatprep.subr.mxu0 0.0
        %3478 = vmatpush1.msra.mxu0 0.0
        %3479 = vmatprep.subr.mxu0 0.0
        %3480 = vmatpush1.msra.mxu0 0.0
        %3481 = vmatprep.mubr.f32.mxu0 0.0
        %v3482 = vand.u32 %v236, 4294901760
        %v3483 = vsub.f32 %v236, %v3482
        %v3484 = vand.u32 %v3483, 4294901760
        %3485 = vmatmul.mubr.f32.gmra.mrb[0].mxu0 %v3484
        %v3486 = vpop.f32.mrb[0].mxu0
        %v3487 = vadd.f32 %v3161, %v3486
        %v3488 = vpop.f32.mrb[0].mxu0
        %v3489 = vadd.f32 %v3163, %v3488
        %3490 = vmatprep.mubr.f32.mxu0 0.0
        %v3491 = vand.u32 %v239, 4294901760
        %v3492 = vsub.f32 %v239, %v3491
        %v3493 = vand.u32 %v3492, 4294901760
        %3494 = vmatmul.mubr.f32.gmra.mrb[0].mxu0 %v3493
        %v3495 = vpop.f32.mrb[0].mxu0
        %v3496 = vadd.f32 %v3169, %v3495
        %v3497 = vpop.f32.mrb[0].mxu0
        %v3498 = vadd.f32 %v3171, %v3497
        %3499 = vmatprep.mubr.f32.mxu0 0.0
        %v3500 = vand.u32 %v242, 4294901760
        %v3501 = vsub.f32 %v242, %v3500
        %v3502 = vand.u32 %v3501, 4294901760
        %3503 = vmatmul.mubr.f32.gmra.mrb[0].mxu0 %v3502
        %v3504 = vpop.f32.mrb[0].mxu0
        %v3505 = vadd.f32 %v3177, %v3504
        %v3506 = vpop.f32.mrb[0].mxu0
        %v3507 = vadd.f32 %v3179, %v3506
        %3508 = vmatprep.mubr.f32.mxu0 0.0
        %v3509 = vand.u32 %v245, 4294901760
        %v3510 = vsub.f32 %v245, %v3509
        %v3511 = vand.u32 %v3510, 4294901760
        %3512 = vmatmul.mubr.f32.gmra.mrb[0].mxu0 %v3511
        %v3513 = vpop.f32.mrb[0].mxu0
        %v3514 = vadd.f32 %v3185, %v3513
        %v3515 = vpop.f32.mrb[0].mxu0
        %v3516 = vadd.f32 %v3187, %v3515
        %3517 = vmatprep.mubr.f32.mxu0 0.0
        %v3518 = vand.u32 %v248, 4294901760
        %v3519 = vsub.f32 %v248, %v3518
        %v3520 = vand.u32 %v3519, 4294901760
        %3521 = vmatmul.mubr.f32.gmra.mrb[0].mxu0 %v3520
        %v3522 = vpop.f32.mrb[0].mxu0
        %v3523 = vadd.f32 %v3193, %v3522
        %v3524 = vpop.f32.mrb[0].mxu0
        %v3525 = vadd.f32 %v3195, %v3524
        %3526 = vmatprep.mubr.f32.mxu0 0.0
        %v3527 = vand.u32 %v251, 4294901760
        %v3528 = vsub.f32 %v251, %v3527
        %v3529 = vand.u32 %v3528, 4294901760
        %3530 = vmatmul.mubr.f32.gmra.mrb[0].mxu0 %v3529
        %v3531 = vpop.f32.mrb[0].mxu0
        %v3532 = vadd.f32 %v3201, %v3531
        %v3533 = vpop.f32.mrb[0].mxu0
        %v3534 = vadd.f32 %v3203, %v3533
        %3535 = vmatprep.mubr.f32.mxu0 0.0
        %v3536 = vand.u32 %v254, 4294901760
        %v3537 = vsub.f32 %v254, %v3536
        %v3538 = vand.u32 %v3537, 4294901760
        %3539 = vmatmul.mubr.f32.gmra.mrb[0].mxu0 %v3538
        %v3540 = vpop.f32.mrb[0].mxu0
        %v3541 = vadd.f32 %v3209, %v3540
        %v3542 = vpop.f32.mrb[0].mxu0
        %v3543 = vadd.f32 %v3211, %v3542
        %3544 = vmatprep.mubr.f32.mxu0 0.0
        %v3545 = vand.u32 %v257, 4294901760
        %v3546 = vsub.f32 %v257, %v3545
        %v3547 = vand.u32 %v3546, 4294901760
        %3548 = vmatmul.mubr.f32.gmra.mrb[0].mxu0 %v3547
        %v3549 = vpop.f32.mrb[0].mxu0
        %v3550 = vadd.f32 %v3217, %v3549
        %v3551 = vpop.f32.mrb[0].mxu0
        %v3552 = vadd.f32 %v3219, %v3551
        %3553 = vmatprep.mubr.f32.mxu0 0.0
        %v3554 = vand.u32 %v260, 4294901760
        %v3555 = vsub.f32 %v260, %v3554
        %v3556 = vand.u32 %v3555, 4294901760
        %3557 = vmatmul.mubr.f32.gmra.mrb[0].mxu0 %v3556
        %v3558 = vpop.f32.mrb[0].mxu0
        %v3559 = vadd.f32 %v3225, %v3558
        %v3560 = vpop.f32.mrb[0].mxu0
        %v3561 = vadd.f32 %v3227, %v3560
        %3562 = vmatprep.mubr.f32.mxu0 0.0
        %v3563 = vand.u32 %v263, 4294901760
        %v3564 = vsub.f32 %v263, %v3563
        %v3565 = vand.u32 %v3564, 4294901760
        %3566 = vmatmul.mubr.f32.gmra.mrb[0].mxu0 %v3565
        %v3567 = vpop.f32.mrb[0].mxu0
        %v3568 = vadd.f32 %v3233, %v3567
        %v3569 = vpop.f32.mrb[0].mxu0
        %v3570 = vadd.f32 %v3235, %v3569
        %3571 = vmatprep.mubr.f32.mxu0 0.0
        %v3572 = vand.u32 %v266, 4294901760
        %v3573 = vsub.f32 %v266, %v3572
        %v3574 = vand.u32 %v3573, 4294901760
        %3575 = vmatmul.mubr.f32.gmra.mrb[0].mxu0 %v3574
        %v3576 = vpop.f32.mrb[0].mxu0
        %v3577 = vadd.f32 %v3241, %v3576
        %v3578 = vpop.f32.mrb[0].mxu0
        %v3579 = vadd.f32 %v3243, %v3578
        %3580 = vmatprep.mubr.f32.mxu0 0.0
        %v3581 = vand.u32 %v269, 4294901760
        %v3582 = vsub.f32 %v269, %v3581
        %v3583 = vand.u32 %v3582, 4294901760
        %3584 = vmatmul.mubr.f32.gmra.mrb[0].mxu0 %v3583
        %v3585 = vpop.f32.mrb[0].mxu0
        %v3586 = vadd.f32 %v3249, %v3585
        %v3587 = vpop.f32.mrb[0].mxu0
        %v3588 = vadd.f32 %v3251, %v3587
        %3589 = vmatprep.mubr.f32.mxu0 0.0
        %v3590 = vand.u32 %v272, 4294901760
        %v3591 = vsub.f32 %v272, %v3590
        %v3592 = vand.u32 %v3591, 4294901760
        %3593 = vmatmul.mubr.f32.gmra.mrb[0].mxu0 %v3592
        %v3594 = vpop.f32.mrb[0].mxu0
        %v3595 = vadd.f32 %v3257, %v3594
        %v3596 = vpop.f32.mrb[0].mxu0
        %v3597 = vadd.f32 %v3259, %v3596
        %3598 = vmatprep.mubr.f32.mxu0 0.0
        %v3599 = vand.u32 %v275, 4294901760
        %v3600 = vsub.f32 %v275, %v3599
        %v3601 = vand.u32 %v3600, 4294901760
        %3602 = vmatmul.mubr.f32.gmra.mrb[0].mxu0 %v3601
        %v3603 = vpop.f32.mrb[0].mxu0
        %v3604 = vadd.f32 %v3265, %v3603
        %v3605 = vpop.f32.mrb[0].mxu0
        %v3606 = vadd.f32 %v3267, %v3605
        %3607 = vmatprep.mubr.f32.mxu0 0.0
        %v3608 = vand.u32 %v278, 4294901760
        %v3609 = vsub.f32 %v278, %v3608
        %v3610 = vand.u32 %v3609, 4294901760
        %3611 = vmatmul.mubr.f32.gmra.mrb[0].mxu0 %v3610
        %v3612 = vpop.f32.mrb[0].mxu0
        %v3613 = vadd.f32 %v3273, %v3612
        %v3614 = vpop.f32.mrb[0].mxu0
        %v3615 = vadd.f32 %v3275, %v3614
        %3616 = vmatprep.mubr.f32.mxu0 0.0
        %v3617 = vand.u32 %v281, 4294901760
        %v3618 = vsub.f32 %v281, %v3617
        %v3619 = vand.u32 %v3618, 4294901760
        %3620 = vmatmul.mubr.f32.gmra.mrb[0].mxu0 %v3619
        %v3621 = vpop.f32.mrb[0].mxu0
        %v3622 = vadd.f32 %v3281, %v3621
        %v3623 = vpop.f32.mrb[0].mxu0
        %v3624 = vadd.f32 %v3283, %v3623
        %3625 = vmatprep.mubr.f32.mxu0 0.0
        %v3626 = vand.u32 %v284, 4294901760
        %v3627 = vsub.f32 %v284, %v3626
        %v3628 = vand.u32 %v3627, 4294901760
        %3629 = vmatmul.mubr.f32.gmra.mrb[0].mxu0 %v3628
        %v3630 = vpop.f32.mrb[0].mxu0
        %v3631 = vadd.f32 %v3289, %v3630
        %v3632 = vpop.f32.mrb[0].mxu0
        %v3633 = vadd.f32 %v3291, %v3632
        %3634 = vmatprep.mubr.f32.mxu0 0.0
        %v3635 = vand.u32 %v287, 4294901760
        %v3636 = vsub.f32 %v287, %v3635
        %v3637 = vand.u32 %v3636, 4294901760
        %3638 = vmatmul.mubr.f32.gmra.mrb[0].mxu0 %v3637
        %v3639 = vpop.f32.mrb[0].mxu0
        %v3640 = vadd.f32 %v3297, %v3639
        %v3641 = vpop.f32.mrb[0].mxu0
        %v3642 = vadd.f32 %v3299, %v3641
        %3643 = vmatprep.mubr.f32.mxu0 0.0
        %v3644 = vand.u32 %v290, 4294901760
        %v3645 = vsub.f32 %v290, %v3644
        %v3646 = vand.u32 %v3645, 4294901760
        %3647 = vmatmul.mubr.f32.gmra.mrb[0].mxu0 %v3646
        %v3648 = vpop.f32.mrb[0].mxu0
        %v3649 = vadd.f32 %v3305, %v3648
        %v3650 = vpop.f32.mrb[0].mxu0
        %v3651 = vadd.f32 %v3307, %v3650
        %3652 = vmatprep.mubr.f32.mxu0 0.0
        %v3653 = vand.u32 %v293, 4294901760
        %v3654 = vsub.f32 %v293, %v3653
        %v3655 = vand.u32 %v3654, 4294901760
        %3656 = vmatmul.mubr.f32.gmra.mrb[0].mxu0 %v3655
        %v3657 = vpop.f32.mrb[0].mxu0
        %v3658 = vadd.f32 %v3313, %v3657
        %v3659 = vpop.f32.mrb[0].mxu0
        %v3660 = vadd.f32 %v3315, %v3659
        %3661 = vmatprep.mubr.f32.mxu0 0.0
        %v3662 = vand.u32 %v296, 4294901760
        %v3663 = vsub.f32 %v296, %v3662
        %v3664 = vand.u32 %v3663, 4294901760
        %3665 = vmatmul.mubr.f32.gmra.mrb[0].mxu0 %v3664
        %v3666 = vpop.f32.mrb[0].mxu0
        %v3667 = vadd.f32 %v3321, %v3666
        %v3668 = vpop.f32.mrb[0].mxu0
        %v3669 = vadd.f32 %v3323, %v3668
        %3670 = vmatprep.mubr.f32.mxu0 0.0
        %v3671 = vand.u32 %v299, 4294901760
        %v3672 = vsub.f32 %v299, %v3671
        %v3673 = vand.u32 %v3672, 4294901760
        %3674 = vmatmul.mubr.f32.gmra.mrb[0].mxu0 %v3673
        %v3675 = vpop.f32.mrb[0].mxu0
        %v3676 = vadd.f32 %v3329, %v3675
        %v3677 = vpop.f32.mrb[0].mxu0
        %v3678 = vadd.f32 %v3331, %v3677
        %3679 = vmatprep.mubr.f32.mxu0 0.0
        %v3680 = vand.u32 %v302, 4294901760
        %v3681 = vsub.f32 %v302, %v3680
        %v3682 = vand.u32 %v3681, 4294901760
        %3683 = vmatmul.mubr.f32.gmra.mrb[0].mxu0 %v3682
        %v3684 = vpop.f32.mrb[0].mxu0
        %v3685 = vadd.f32 %v3337, %v3684
        %v3686 = vpop.f32.mrb[0].mxu0
        %v3687 = vadd.f32 %v3339, %v3686
        %3688 = vmatprep.mubr.f32.mxu0 0.0
        %v3689 = vand.u32 %v305, 4294901760
        %v3690 = vsub.f32 %v305, %v3689
        %v3691 = vand.u32 %v3690, 4294901760
        %3692 = vmatmul.mubr.f32.gmra.mrb[0].mxu0 %v3691
        %v3693 = vpop.f32.mrb[0].mxu0
        %v3694 = vadd.f32 %v3345, %v3693
        %v3695 = vpop.f32.mrb[0].mxu0
        %v3696 = vadd.f32 %v3347, %v3695
        %3697 = vmatprep.mubr.f32.mxu0 0.0
        %v3698 = vand.u32 %v308, 4294901760
        %v3699 = vsub.f32 %v308, %v3698
        %v3700 = vand.u32 %v3699, 4294901760
        %3701 = vmatmul.mubr.f32.gmra.mrb[0].mxu0 %v3700
        %v3702 = vpop.f32.mrb[0].mxu0
        %v3703 = vadd.f32 %v3353, %v3702
        %v3704 = vpop.f32.mrb[0].mxu0
        %v3705 = vadd.f32 %v3355, %v3704
        %3706 = vmatprep.mubr.f32.mxu0 0.0
        %v3707 = vand.u32 %v311, 4294901760
        %v3708 = vsub.f32 %v311, %v3707
        %v3709 = vand.u32 %v3708, 4294901760
        %3710 = vmatmul.mubr.f32.gmra.mrb[0].mxu0 %v3709
        %v3711 = vpop.f32.mrb[0].mxu0
        %v3712 = vadd.f32 %v3361, %v3711
        %v3713 = vpop.f32.mrb[0].mxu0
        %v3714 = vadd.f32 %v3363, %v3713
        %3715 = vmatprep.mubr.f32.mxu0 0.0
        %v3716 = vand.u32 %v314, 4294901760
        %v3717 = vsub.f32 %v314, %v3716
        %v3718 = vand.u32 %v3717, 4294901760
        %3719 = vmatmul.mubr.f32.gmra.mrb[0].mxu0 %v3718
        %v3720 = vpop.f32.mrb[0].mxu0
        %v3721 = vadd.f32 %v3369, %v3720
        %v3722 = vpop.f32.mrb[0].mxu0
        %v3723 = vadd.f32 %v3371, %v3722
        %3724 = vmatprep.mubr.f32.mxu0 0.0
        %v3725 = vand.u32 %v317, 4294901760
        %v3726 = vsub.f32 %v317, %v3725
        %v3727 = vand.u32 %v3726, 4294901760
        %3728 = vmatmul.mubr.f32.gmra.mrb[0].mxu0 %v3727
        %v3729 = vpop.f32.mrb[0].mxu0
        %v3730 = vadd.f32 %v3377, %v3729
        %v3731 = vpop.f32.mrb[0].mxu0
        %v3732 = vadd.f32 %v3379, %v3731
        %3733 = vmatprep.mubr.f32.mxu0 0.0
        %v3734 = vand.u32 %v320, 4294901760
        %v3735 = vsub.f32 %v320, %v3734
        %v3736 = vand.u32 %v3735, 4294901760
        %3737 = vmatmul.mubr.f32.gmra.mrb[0].mxu0 %v3736
        %v3738 = vpop.f32.mrb[0].mxu0
        %v3739 = vadd.f32 %v3385, %v3738
        %v3740 = vpop.f32.mrb[0].mxu0
        %v3741 = vadd.f32 %v3387, %v3740
        %3742 = vmatprep.mubr.f32.mxu0 0.0
        %v3743 = vand.u32 %v323, 4294901760
        %v3744 = vsub.f32 %v323, %v3743
        %v3745 = vand.u32 %v3744, 4294901760
        %3746 = vmatmul.mubr.f32.gmra.mrb[0].mxu0 %v3745
        %v3747 = vpop.f32.mrb[0].mxu0
        %v3748 = vadd.f32 %v3393, %v3747
        %v3749 = vpop.f32.mrb[0].mxu0
        %v3750 = vadd.f32 %v3395, %v3749
        %3751 = vmatprep.mubr.f32.mxu0 0.0
        %v3752 = vand.u32 %v326, 4294901760
        %v3753 = vsub.f32 %v326, %v3752
        %v3754 = vand.u32 %v3753, 4294901760
        %3755 = vmatmul.mubr.f32.gmra.mrb[0].mxu0 %v3754
        %v3756 = vpop.f32.mrb[0].mxu0
        %v3757 = vadd.f32 %v3401, %v3756
        %v3758 = vpop.f32.mrb[0].mxu0
        %v3759 = vadd.f32 %v3403, %v3758
        %3760 = vmatprep.mubr.f32.mxu0 0.0
        %v3761 = vand.u32 %v329, 4294901760
        %v3762 = vsub.f32 %v329, %v3761
        %v3763 = vand.u32 %v3762, 4294901760
        %3764 = vmatmul.mubr.f32.gmra.mrb[0].mxu0 %v3763
        %v3765 = vpop.f32.mrb[0].mxu0
        %v3766 = vadd.f32 %v3409, %v3765
        %v3767 = vpop.f32.mrb[0].mxu0
        %v3768 = vadd.f32 %v3411, %v3767
        %3769 = vdwg.mxu0
        %v3770 = vand.u32 %v207, 4294901760
        %v3771 = vsub.f32 %v207, %v3770
        %v3772 = vand.u32 %v3771, 4294901760
        %3773 = vmatprep.subr.mxu0 %v3772
        %v3774 = vand.u32 %v206, 4294901760
        %v3775 = vsub.f32 %v206, %v3774
        %v3776 = vand.u32 %v3775, 4294901760
        %3777 = vmatpush1.msra.mxu0 %v3776
        %v3778 = vand.u32 %v342, 4294901760
        %v3779 = vsub.f32 %v342, %v3778
        %v3780 = vand.u32 %v3779, 4294901760
        %3781 = vmatprep.subr.mxu0 %v3780
        %v3782 = vand.u32 %v339, 4294901760
        %v3783 = vsub.f32 %v339, %v3782
        %v3784 = vand.u32 %v3783, 4294901760
        %3785 = vmatpush1.msra.mxu0 %v3784
        %3786 = vmatprep.subr.mxu0 0.0
        %3787 = vmatpush1.msra.mxu0 0.0
        %3788 = vmatprep.subr.mxu0 0.0
        %3789 = vmatpush1.msra.mxu0 0.0
        %3790 = vmatprep.subr.mxu0 0.0
        %3791 = vmatpush1.msra.mxu0 0.0
        %3792 = vmatprep.subr.mxu0 0.0
        %3793 = vmatpush1.msra.mxu0 0.0
        %3794 = vmatprep.subr.mxu0 0.0
        %3795 = vmatpush1.msra.mxu0 0.0
        %3796 = vmatprep.subr.mxu0 0.0
        %3797 = vmatpush1.msra.mxu0 0.0
        %3798 = vmatprep.subr.mxu0 0.0
        %3799 = vmatpush1.msra.mxu0 0.0
        %3800 = vmatprep.subr.mxu0 0.0
        %3801 = vmatpush1.msra.mxu0 0.0
        %3802 = vmatprep.subr.mxu0 0.0
        %3803 = vmatpush1.msra.mxu0 0.0
        %3804 = vmatprep.subr.mxu0 0.0
        %3805 = vmatpush1.msra.mxu0 0.0
        %3806 = vmatprep.subr.mxu0 0.0
        %3807 = vmatpush1.msra.mxu0 0.0
        %3808 = vmatprep.subr.mxu0 0.0
        %3809 = vmatpush1.msra.mxu0 0.0
        %3810 = vmatprep.subr.mxu0 0.0
        %3811 = vmatpush1.msra.mxu0 0.0
        %3812 = vmatprep.subr.mxu0 0.0
        %3813 = vmatpush1.msra.mxu0 0.0
        %3814 = vmatprep.subr.mxu0 0.0
        %3815 = vmatpush1.msra.mxu0 0.0
        %3816 = vmatprep.subr.mxu0 0.0
        %3817 = vmatpush1.msra.mxu0 0.0
        %3818 = vmatprep.subr.mxu0 0.0
        %3819 = vmatpush1.msra.mxu0 0.0
        %3820 = vmatprep.subr.mxu0 0.0
        %3821 = vmatpush1.msra.mxu0 0.0
        %3822 = vmatprep.subr.mxu0 0.0
        %3823 = vmatpush1.msra.mxu0 0.0
        %3824 = vmatprep.subr.mxu0 0.0
        %3825 = vmatpush1.msra.mxu0 0.0
        %3826 = vmatprep.subr.mxu0 0.0
        %3827 = vmatpush1.msra.mxu0 0.0
        %3828 = vmatprep.subr.mxu0 0.0
        %3829 = vmatpush1.msra.mxu0 0.0
        %3830 = vmatprep.subr.mxu0 0.0
        %3831 = vmatpush1.msra.mxu0 0.0
        %3832 = vmatprep.subr.mxu0 0.0
        %3833 = vmatpush1.msra.mxu0 0.0
        %3834 = vmatprep.subr.mxu0 0.0
        %3835 = vmatpush1.msra.mxu0 0.0
        %3836 = vmatprep.subr.mxu0 0.0
        %3837 = vmatpush1.msra.mxu0 0.0
        %3838 = vmatprep.subr.mxu0 0.0
        %3839 = vmatpush1.msra.mxu0 0.0
        %3840 = vmatprep.subr.mxu0 0.0
        %3841 = vmatpush1.msra.mxu0 0.0
        %3842 = vmatprep.subr.mxu0 0.0
        %3843 = vmatpush1.msra.mxu0 0.0
        %3844 = vmatprep.subr.mxu0 0.0
        %3845 = vmatpush1.msra.mxu0 0.0
        %3846 = vmatprep.mubr.f32.mxu0 0.0
        %v3847 = vand.u32 %v236, 4294901760
        %3848 = vmatmul.mubr.f32.gmra.mrb[0].mxu0 %v3847
        %v3849 = vpop.f32.mrb[0].mxu0
        %v3850 = vadd.f32 %v3487, %v3849
        %v3851 = vpop.f32.mrb[0].mxu0
        %v3852 = vadd.f32 %v3489, %v3851
        %3853 = vmatprep.mubr.f32.mxu0 0.0
        %v3854 = vand.u32 %v239, 4294901760
        %3855 = vmatmul.mubr.f32.gmra.mrb[0].mxu0 %v3854
        %v3856 = vpop.f32.mrb[0].mxu0
        %v3857 = vadd.f32 %v3496, %v3856
        %v3858 = vpop.f32.mrb[0].mxu0
        %v3859 = vadd.f32 %v3498, %v3858
        %3860 = vmatprep.mubr.f32.mxu0 0.0
        %v3861 = vand.u32 %v242, 4294901760
        %3862 = vmatmul.mubr.f32.gmra.mrb[0].mxu0 %v3861
        %v3863 = vpop.f32.mrb[0].mxu0
        %v3864 = vadd.f32 %v3505, %v3863
        %v3865 = vpop.f32.mrb[0].mxu0
        %v3866 = vadd.f32 %v3507, %v3865
        %3867 = vmatprep.mubr.f32.mxu0 0.0
        %v3868 = vand.u32 %v245, 4294901760
        %3869 = vmatmul.mubr.f32.gmra.mrb[0].mxu0 %v3868
        %v3870 = vpop.f32.mrb[0].mxu0
        %v3871 = vadd.f32 %v3514, %v3870
        %v3872 = vpop.f32.mrb[0].mxu0
        %v3873 = vadd.f32 %v3516, %v3872
        %3874 = vmatprep.mubr.f32.mxu0 0.0
        %v3875 = vand.u32 %v248, 4294901760
        %3876 = vmatmul.mubr.f32.gmra.mrb[0].mxu0 %v3875
        %v3877 = vpop.f32.mrb[0].mxu0
        %v3878 = vadd.f32 %v3523, %v3877
        %v3879 = vpop.f32.mrb[0].mxu0
        %v3880 = vadd.f32 %v3525, %v3879
        %3881 = vmatprep.mubr.f32.mxu0 0.0
        %v3882 = vand.u32 %v251, 4294901760
        %3883 = vmatmul.mubr.f32.gmra.mrb[0].mxu0 %v3882
        %v3884 = vpop.f32.mrb[0].mxu0
        %v3885 = vadd.f32 %v3532, %v3884
        %v3886 = vpop.f32.mrb[0].mxu0
        %v3887 = vadd.f32 %v3534, %v3886
        %3888 = vmatprep.mubr.f32.mxu0 0.0
        %v3889 = vand.u32 %v254, 4294901760
        %3890 = vmatmul.mubr.f32.gmra.mrb[0].mxu0 %v3889
        %v3891 = vpop.f32.mrb[0].mxu0
        %v3892 = vadd.f32 %v3541, %v3891
        %v3893 = vpop.f32.mrb[0].mxu0
        %v3894 = vadd.f32 %v3543, %v3893
        %3895 = vmatprep.mubr.f32.mxu0 0.0
        %v3896 = vand.u32 %v257, 4294901760
        %3897 = vmatmul.mubr.f32.gmra.mrb[0].mxu0 %v3896
        %v3898 = vpop.f32.mrb[0].mxu0
        %v3899 = vadd.f32 %v3550, %v3898
        %v3900 = vpop.f32.mrb[0].mxu0
        %v3901 = vadd.f32 %v3552, %v3900
        %3902 = vmatprep.mubr.f32.mxu0 0.0
        %v3903 = vand.u32 %v260, 4294901760
        %3904 = vmatmul.mubr.f32.gmra.mrb[0].mxu0 %v3903
        %v3905 = vpop.f32.mrb[0].mxu0
        %v3906 = vadd.f32 %v3559, %v3905
        %v3907 = vpop.f32.mrb[0].mxu0
        %v3908 = vadd.f32 %v3561, %v3907
        %3909 = vmatprep.mubr.f32.mxu0 0.0
        %v3910 = vand.u32 %v263, 4294901760
        %3911 = vmatmul.mubr.f32.gmra.mrb[0].mxu0 %v3910
        %v3912 = vpop.f32.mrb[0].mxu0
        %v3913 = vadd.f32 %v3568, %v3912
        %v3914 = vpop.f32.mrb[0].mxu0
        %v3915 = vadd.f32 %v3570, %v3914
        %3916 = vmatprep.mubr.f32.mxu0 0.0
        %v3917 = vand.u32 %v266, 4294901760
        %3918 = vmatmul.mubr.f32.gmra.mrb[0].mxu0 %v3917
        %v3919 = vpop.f32.mrb[0].mxu0
        %v3920 = vadd.f32 %v3577, %v3919
        %v3921 = vpop.f32.mrb[0].mxu0
        %v3922 = vadd.f32 %v3579, %v3921
        %3923 = vmatprep.mubr.f32.mxu0 0.0
        %v3924 = vand.u32 %v269, 4294901760
        %3925 = vmatmul.mubr.f32.gmra.mrb[0].mxu0 %v3924
        %v3926 = vpop.f32.mrb[0].mxu0
        %v3927 = vadd.f32 %v3586, %v3926
        %v3928 = vpop.f32.mrb[0].mxu0
        %v3929 = vadd.f32 %v3588, %v3928
        %3930 = vmatprep.mubr.f32.mxu0 0.0
        %v3931 = vand.u32 %v272, 4294901760
        %3932 = vmatmul.mubr.f32.gmra.mrb[0].mxu0 %v3931
        %v3933 = vpop.f32.mrb[0].mxu0
        %v3934 = vadd.f32 %v3595, %v3933
        %v3935 = vpop.f32.mrb[0].mxu0
        %v3936 = vadd.f32 %v3597, %v3935
        %3937 = vmatprep.mubr.f32.mxu0 0.0
        %v3938 = vand.u32 %v275, 4294901760
        %3939 = vmatmul.mubr.f32.gmra.mrb[0].mxu0 %v3938
        %v3940 = vpop.f32.mrb[0].mxu0
        %v3941 = vadd.f32 %v3604, %v3940
        %v3942 = vpop.f32.mrb[0].mxu0
        %v3943 = vadd.f32 %v3606, %v3942
        %3944 = vmatprep.mubr.f32.mxu0 0.0
        %v3945 = vand.u32 %v278, 4294901760
        %3946 = vmatmul.mubr.f32.gmra.mrb[0].mxu0 %v3945
        %v3947 = vpop.f32.mrb[0].mxu0
        %v3948 = vadd.f32 %v3613, %v3947
        %v3949 = vpop.f32.mrb[0].mxu0
        %v3950 = vadd.f32 %v3615, %v3949
        %3951 = vmatprep.mubr.f32.mxu0 0.0
        %v3952 = vand.u32 %v281, 4294901760
        %3953 = vmatmul.mubr.f32.gmra.mrb[0].mxu0 %v3952
        %v3954 = vpop.f32.mrb[0].mxu0
        %v3955 = vadd.f32 %v3622, %v3954
        %v3956 = vpop.f32.mrb[0].mxu0
        %v3957 = vadd.f32 %v3624, %v3956
        %3958 = vmatprep.mubr.f32.mxu0 0.0
        %v3959 = vand.u32 %v284, 4294901760
        %3960 = vmatmul.mubr.f32.gmra.mrb[0].mxu0 %v3959
        %v3961 = vpop.f32.mrb[0].mxu0
        %v3962 = vadd.f32 %v3631, %v3961
        %v3963 = vpop.f32.mrb[0].mxu0
        %v3964 = vadd.f32 %v3633, %v3963
        %3965 = vmatprep.mubr.f32.mxu0 0.0
        %v3966 = vand.u32 %v287, 4294901760
        %3967 = vmatmul.mubr.f32.gmra.mrb[0].mxu0 %v3966
        %v3968 = vpop.f32.mrb[0].mxu0
        %v3969 = vadd.f32 %v3640, %v3968
        %v3970 = vpop.f32.mrb[0].mxu0
        %v3971 = vadd.f32 %v3642, %v3970
        %3972 = vmatprep.mubr.f32.mxu0 0.0
        %v3973 = vand.u32 %v290, 4294901760
        %3974 = vmatmul.mubr.f32.gmra.mrb[0].mxu0 %v3973
        %v3975 = vpop.f32.mrb[0].mxu0
        %v3976 = vadd.f32 %v3649, %v3975
        %v3977 = vpop.f32.mrb[0].mxu0
        %v3978 = vadd.f32 %v3651, %v3977
        %3979 = vmatprep.mubr.f32.mxu0 0.0
        %v3980 = vand.u32 %v293, 4294901760
        %3981 = vmatmul.mubr.f32.gmra.mrb[0].mxu0 %v3980
        %v3982 = vpop.f32.mrb[0].mxu0
        %v3983 = vadd.f32 %v3658, %v3982
        %v3984 = vpop.f32.mrb[0].mxu0
        %v3985 = vadd.f32 %v3660, %v3984
        %3986 = vmatprep.mubr.f32.mxu0 0.0
        %v3987 = vand.u32 %v296, 4294901760
        %3988 = vmatmul.mubr.f32.gmra.mrb[0].mxu0 %v3987
        %v3989 = vpop.f32.mrb[0].mxu0
        %v3990 = vadd.f32 %v3667, %v3989
        %v3991 = vpop.f32.mrb[0].mxu0
        %v3992 = vadd.f32 %v3669, %v3991
        %3993 = vmatprep.mubr.f32.mxu0 0.0
        %v3994 = vand.u32 %v299, 4294901760
        %3995 = vmatmul.mubr.f32.gmra.mrb[0].mxu0 %v3994
        %v3996 = vpop.f32.mrb[0].mxu0
        %v3997 = vadd.f32 %v3676, %v3996
        %v3998 = vpop.f32.mrb[0].mxu0
        %v3999 = vadd.f32 %v3678, %v3998
        %4000 = vmatprep.mubr.f32.mxu0 0.0
        %v4001 = vand.u32 %v302, 4294901760
        %4002 = vmatmul.mubr.f32.gmra.mrb[0].mxu0 %v4001
        %v4003 = vpop.f32.mrb[0].mxu0
        %v4004 = vadd.f32 %v3685, %v4003
        %v4005 = vpop.f32.mrb[0].mxu0
        %v4006 = vadd.f32 %v3687, %v4005
        %4007 = vmatprep.mubr.f32.mxu0 0.0
        %v4008 = vand.u32 %v305, 4294901760
        %4009 = vmatmul.mubr.f32.gmra.mrb[0].mxu0 %v4008
        %v4010 = vpop.f32.mrb[0].mxu0
        %v4011 = vadd.f32 %v3694, %v4010
        %v4012 = vpop.f32.mrb[0].mxu0
        %v4013 = vadd.f32 %v3696, %v4012
        %4014 = vmatprep.mubr.f32.mxu0 0.0
        %v4015 = vand.u32 %v308, 4294901760
        %4016 = vmatmul.mubr.f32.gmra.mrb[0].mxu0 %v4015
        %v4017 = vpop.f32.mrb[0].mxu0
        %v4018 = vadd.f32 %v3703, %v4017
        %v4019 = vpop.f32.mrb[0].mxu0
        %v4020 = vadd.f32 %v3705, %v4019
        %4021 = vmatprep.mubr.f32.mxu0 0.0
        %v4022 = vand.u32 %v311, 4294901760
        %4023 = vmatmul.mubr.f32.gmra.mrb[0].mxu0 %v4022
        %v4024 = vpop.f32.mrb[0].mxu0
        %v4025 = vadd.f32 %v3712, %v4024
        %v4026 = vpop.f32.mrb[0].mxu0
        %v4027 = vadd.f32 %v3714, %v4026
        %4028 = vmatprep.mubr.f32.mxu0 0.0
        %v4029 = vand.u32 %v314, 4294901760
        %4030 = vmatmul.mubr.f32.gmra.mrb[0].mxu0 %v4029
        %v4031 = vpop.f32.mrb[0].mxu0
        %v4032 = vadd.f32 %v3721, %v4031
        %v4033 = vpop.f32.mrb[0].mxu0
        %v4034 = vadd.f32 %v3723, %v4033
        %4035 = vmatprep.mubr.f32.mxu0 0.0
        %v4036 = vand.u32 %v317, 4294901760
        %4037 = vmatmul.mubr.f32.gmra.mrb[0].mxu0 %v4036
        %v4038 = vpop.f32.mrb[0].mxu0
        %v4039 = vadd.f32 %v3730, %v4038
        %v4040 = vpop.f32.mrb[0].mxu0
        %v4041 = vadd.f32 %v3732, %v4040
        %4042 = vmatprep.mubr.f32.mxu0 0.0
        %v4043 = vand.u32 %v320, 4294901760
        %4044 = vmatmul.mubr.f32.gmra.mrb[0].mxu0 %v4043
        %v4045 = vpop.f32.mrb[0].mxu0
        %v4046 = vadd.f32 %v3739, %v4045
        %v4047 = vpop.f32.mrb[0].mxu0
        %v4048 = vadd.f32 %v3741, %v4047
        %4049 = vmatprep.mubr.f32.mxu0 0.0
        %v4050 = vand.u32 %v323, 4294901760
        %4051 = vmatmul.mubr.f32.gmra.mrb[0].mxu0 %v4050
        %v4052 = vpop.f32.mrb[0].mxu0
        %v4053 = vadd.f32 %v3748, %v4052
        %v4054 = vpop.f32.mrb[0].mxu0
        %v4055 = vadd.f32 %v3750, %v4054
        %4056 = vmatprep.mubr.f32.mxu0 0.0
        %v4057 = vand.u32 %v326, 4294901760
        %4058 = vmatmul.mubr.f32.gmra.mrb[0].mxu0 %v4057
        %v4059 = vpop.f32.mrb[0].mxu0
        %v4060 = vadd.f32 %v3757, %v4059
        %v4061 = vpop.f32.mrb[0].mxu0
        %v4062 = vadd.f32 %v3759, %v4061
        %4063 = vmatprep.mubr.f32.mxu0 0.0
        %v4064 = vand.u32 %v329, 4294901760
        %4065 = vmatmul.mubr.f32.gmra.mrb[0].mxu0 %v4064
        %v4066 = vpop.f32.mrb[0].mxu0
        %v4067 = vadd.f32 %v3766, %v4066
        %v4068 = vpop.f32.mrb[0].mxu0
        %v4069 = vadd.f32 %v3768, %v4068
        %4070 = vdwg.mxu0
        %v4071 = vand.u32 %v207, 4294901760
        %4072 = vmatprep.subr.mxu0 %v4071
        %v4073 = vand.u32 %v206, 4294901760
        %4074 = vmatpush1.msra.mxu0 %v4073
        %v4075 = vand.u32 %v342, 4294901760
        %4076 = vmatprep.subr.mxu0 %v4075
        %v4077 = vand.u32 %v339, 4294901760
        %4078 = vmatpush1.msra.mxu0 %v4077
        %4079 = vmatprep.subr.mxu0 0.0
        %4080 = vmatpush1.msra.mxu0 0.0
        %4081 = vmatprep.subr.mxu0 0.0
        %4082 = vmatpush1.msra.mxu0 0.0
        %4083 = vmatprep.subr.mxu0 0.0
        %4084 = vmatpush1.msra.mxu0 0.0
        %4085 = vmatprep.subr.mxu0 0.0
        %4086 = vmatpush1.msra.mxu0 0.0
        %4087 = vmatprep.subr.mxu0 0.0
        %4088 = vmatpush1.msra.mxu0 0.0
        %4089 = vmatprep.subr.mxu0 0.0
        %4090 = vmatpush1.msra.mxu0 0.0
        %4091 = vmatprep.subr.mxu0 0.0
        %4092 = vmatpush1.msra.mxu0 0.0
        %4093 = vmatprep.subr.mxu0 0.0
        %4094 = vmatpush1.msra.mxu0 0.0
        %4095 = vmatprep.subr.mxu0 0.0
        %4096 = vmatpush1.msra.mxu0 0.0
        %4097 = vmatprep.subr.mxu0 0.0
        %4098 = vmatpush1.msra.mxu0 0.0
        %4099 = vmatprep.subr.mxu0 0.0
        %4100 = vmatpush1.msra.mxu0 0.0
        %4101 = vmatprep.subr.mxu0 0.0
        %4102 = vmatpush1.msra.mxu0 0.0
        %4103 = vmatprep.subr.mxu0 0.0
        %4104 = vmatpush1.msra.mxu0 0.0
        %4105 = vmatprep.subr.mxu0 0.0
        %4106 = vmatpush1.msra.mxu0 0.0
        %4107 = vmatprep.subr.mxu0 0.0
        %4108 = vmatpush1.msra.mxu0 0.0
        %4109 = vmatprep.subr.mxu0 0.0
        %4110 = vmatpush1.msra.mxu0 0.0
        %4111 = vmatprep.subr.mxu0 0.0
        %4112 = vmatpush1.msra.mxu0 0.0
        %4113 = vmatprep.subr.mxu0 0.0
        %4114 = vmatpush1.msra.mxu0 0.0
        %4115 = vmatprep.subr.mxu0 0.0
        %4116 = vmatpush1.msra.mxu0 0.0
        %4117 = vmatprep.subr.mxu0 0.0
        %4118 = vmatpush1.msra.mxu0 0.0
        %4119 = vmatprep.subr.mxu0 0.0
        %4120 = vmatpush1.msra.mxu0 0.0
        %4121 = vmatprep.subr.mxu0 0.0
        %4122 = vmatpush1.msra.mxu0 0.0
        %4123 = vmatprep.subr.mxu0 0.0
        %4124 = vmatpush1.msra.mxu0 0.0
        %4125 = vmatprep.subr.mxu0 0.0
        %4126 = vmatpush1.msra.mxu0 0.0
        %4127 = vmatprep.subr.mxu0 0.0
        %4128 = vmatpush1.msra.mxu0 0.0
        %4129 = vmatprep.subr.mxu0 0.0
        %4130 = vmatpush1.msra.mxu0 0.0
        %4131 = vmatprep.subr.mxu0 0.0
        %4132 = vmatpush1.msra.mxu0 0.0
        %4133 = vmatprep.subr.mxu0 0.0
        %4134 = vmatpush1.msra.mxu0 0.0
        %4135 = vmatprep.subr.mxu0 0.0
        %4136 = vmatpush1.msra.mxu0 0.0
        %4137 = vmatprep.subr.mxu0 0.0
        %4138 = vmatpush1.msra.mxu0 0.0
        %4139 = vmatprep.mubr.f32.mxu0 0.0
        %v4140 = vand.u32 %v236, 4294901760
        %4141 = vmatmul.mubr.f32.gmra.mrb[0].mxu0 %v4140
        %v4142 = vpop.f32.mrb[0].mxu0
        %v4143 = vadd.f32 %v3850, %v4142
        %v4144 = vpop.f32.mrb[0].mxu0
        %v4145 = vadd.f32 %v3852, %v4144
        %4146 = vmatprep.mubr.f32.mxu0 0.0
        %v4147 = vand.u32 %v239, 4294901760
        %4148 = vmatmul.mubr.f32.gmra.mrb[0].mxu0 %v4147
        %v4149 = vpop.f32.mrb[0].mxu0
        %v4150 = vadd.f32 %v3857, %v4149
        %v4151 = vpop.f32.mrb[0].mxu0
        %v4152 = vadd.f32 %v3859, %v4151
        %4153 = vmatprep.mubr.f32.mxu0 0.0
        %v4154 = vand.u32 %v242, 4294901760
        %4155 = vmatmul.mubr.f32.gmra.mrb[0].mxu0 %v4154
        %v4156 = vpop.f32.mrb[0].mxu0
        %v4157 = vadd.f32 %v3864, %v4156
        %v4158 = vpop.f32.mrb[0].mxu0
        %v4159 = vadd.f32 %v3866, %v4158
        %4160 = vmatprep.mubr.f32.mxu0 0.0
        %v4161 = vand.u32 %v245, 4294901760
        %4162 = vmatmul.mubr.f32.gmra.mrb[0].mxu0 %v4161
        %v4163 = vpop.f32.mrb[0].mxu0
        %v4164 = vadd.f32 %v3871, %v4163
        %v4165 = vpop.f32.mrb[0].mxu0
        %v4166 = vadd.f32 %v3873, %v4165
        %4167 = vmatprep.mubr.f32.mxu0 0.0
        %v4168 = vand.u32 %v248, 4294901760
        %4169 = vmatmul.mubr.f32.gmra.mrb[0].mxu0 %v4168
        %v4170 = vpop.f32.mrb[0].mxu0
        %v4171 = vadd.f32 %v3878, %v4170
        %v4172 = vpop.f32.mrb[0].mxu0
        %v4173 = vadd.f32 %v3880, %v4172
        %4174 = vmatprep.mubr.f32.mxu0 0.0
        %v4175 = vand.u32 %v251, 4294901760
        %4176 = vmatmul.mubr.f32.gmra.mrb[0].mxu0 %v4175
        %v4177 = vpop.f32.mrb[0].mxu0
        %v4178 = vadd.f32 %v3885, %v4177
        %v4179 = vpop.f32.mrb[0].mxu0
        %v4180 = vadd.f32 %v3887, %v4179
        %4181 = vmatprep.mubr.f32.mxu0 0.0
        %v4182 = vand.u32 %v254, 4294901760
        %4183 = vmatmul.mubr.f32.gmra.mrb[0].mxu0 %v4182
        %v4184 = vpop.f32.mrb[0].mxu0
        %v4185 = vadd.f32 %v3892, %v4184
        %v4186 = vpop.f32.mrb[0].mxu0
        %v4187 = vadd.f32 %v3894, %v4186
        %4188 = vmatprep.mubr.f32.mxu0 0.0
        %v4189 = vand.u32 %v257, 4294901760
        %4190 = vmatmul.mubr.f32.gmra.mrb[0].mxu0 %v4189
        %v4191 = vpop.f32.mrb[0].mxu0
        %v4192 = vadd.f32 %v3899, %v4191
        %v4193 = vpop.f32.mrb[0].mxu0
        %v4194 = vadd.f32 %v3901, %v4193
        %4195 = vmatprep.mubr.f32.mxu0 0.0
        %v4196 = vand.u32 %v260, 4294901760
        %4197 = vmatmul.mubr.f32.gmra.mrb[0].mxu0 %v4196
        %v4198 = vpop.f32.mrb[0].mxu0
        %v4199 = vadd.f32 %v3906, %v4198
        %v4200 = vpop.f32.mrb[0].mxu0
        %v4201 = vadd.f32 %v3908, %v4200
        %4202 = vmatprep.mubr.f32.mxu0 0.0
        %v4203 = vand.u32 %v263, 4294901760
        %4204 = vmatmul.mubr.f32.gmra.mrb[0].mxu0 %v4203
        %v4205 = vpop.f32.mrb[0].mxu0
        %v4206 = vadd.f32 %v3913, %v4205
        %v4207 = vpop.f32.mrb[0].mxu0
        %v4208 = vadd.f32 %v3915, %v4207
        %4209 = vmatprep.mubr.f32.mxu0 0.0
        %v4210 = vand.u32 %v266, 4294901760
        %4211 = vmatmul.mubr.f32.gmra.mrb[0].mxu0 %v4210
        %v4212 = vpop.f32.mrb[0].mxu0
        %v4213 = vadd.f32 %v3920, %v4212
        %v4214 = vpop.f32.mrb[0].mxu0
        %v4215 = vadd.f32 %v3922, %v4214
        %4216 = vmatprep.mubr.f32.mxu0 0.0
        %v4217 = vand.u32 %v269, 4294901760
        %4218 = vmatmul.mubr.f32.gmra.mrb[0].mxu0 %v4217
        %v4219 = vpop.f32.mrb[0].mxu0
        %v4220 = vadd.f32 %v3927, %v4219
        %v4221 = vpop.f32.mrb[0].mxu0
        %v4222 = vadd.f32 %v3929, %v4221
        %4223 = vmatprep.mubr.f32.mxu0 0.0
        %v4224 = vand.u32 %v272, 4294901760
        %4225 = vmatmul.mubr.f32.gmra.mrb[0].mxu0 %v4224
        %v4226 = vpop.f32.mrb[0].mxu0
        %v4227 = vadd.f32 %v3934, %v4226
        %v4228 = vpop.f32.mrb[0].mxu0
        %v4229 = vadd.f32 %v3936, %v4228
        %4230 = vmatprep.mubr.f32.mxu0 0.0
        %v4231 = vand.u32 %v275, 4294901760
        %4232 = vmatmul.mubr.f32.gmra.mrb[0].mxu0 %v4231
        %v4233 = vpop.f32.mrb[0].mxu0
        %v4234 = vadd.f32 %v3941, %v4233
        %v4235 = vpop.f32.mrb[0].mxu0
        %v4236 = vadd.f32 %v3943, %v4235
        %4237 = vmatprep.mubr.f32.mxu0 0.0
        %v4238 = vand.u32 %v278, 4294901760
        %4239 = vmatmul.mubr.f32.gmra.mrb[0].mxu0 %v4238
        %v4240 = vpop.f32.mrb[0].mxu0
        %v4241 = vadd.f32 %v3948, %v4240
        %v4242 = vpop.f32.mrb[0].mxu0
        %v4243 = vadd.f32 %v3950, %v4242
        %4244 = vmatprep.mubr.f32.mxu0 0.0
        %v4245 = vand.u32 %v281, 4294901760
        %4246 = vmatmul.mubr.f32.gmra.mrb[0].mxu0 %v4245
        %v4247 = vpop.f32.mrb[0].mxu0
        %v4248 = vadd.f32 %v3955, %v4247
        %v4249 = vpop.f32.mrb[0].mxu0
        %v4250 = vadd.f32 %v3957, %v4249
        %4251 = vmatprep.mubr.f32.mxu0 0.0
        %v4252 = vand.u32 %v284, 4294901760
        %4253 = vmatmul.mubr.f32.gmra.mrb[0].mxu0 %v4252
        %v4254 = vpop.f32.mrb[0].mxu0
        %v4255 = vadd.f32 %v3962, %v4254
        %v4256 = vpop.f32.mrb[0].mxu0
        %v4257 = vadd.f32 %v3964, %v4256
        %4258 = vmatprep.mubr.f32.mxu0 0.0
        %v4259 = vand.u32 %v287, 4294901760
        %4260 = vmatmul.mubr.f32.gmra.mrb[0].mxu0 %v4259
        %v4261 = vpop.f32.mrb[0].mxu0
        %v4262 = vadd.f32 %v3969, %v4261
        %v4263 = vpop.f32.mrb[0].mxu0
        %v4264 = vadd.f32 %v3971, %v4263
        %4265 = vmatprep.mubr.f32.mxu0 0.0
        %v4266 = vand.u32 %v290, 4294901760
        %4267 = vmatmul.mubr.f32.gmra.mrb[0].mxu0 %v4266
        %v4268 = vpop.f32.mrb[0].mxu0
        %v4269 = vadd.f32 %v3976, %v4268
        %v4270 = vpop.f32.mrb[0].mxu0
        %v4271 = vadd.f32 %v3978, %v4270
        %4272 = vmatprep.mubr.f32.mxu0 0.0
        %v4273 = vand.u32 %v293, 4294901760
        %4274 = vmatmul.mubr.f32.gmra.mrb[0].mxu0 %v4273
        %v4275 = vpop.f32.mrb[0].mxu0
        %v4276 = vadd.f32 %v3983, %v4275
        %v4277 = vpop.f32.mrb[0].mxu0
        %v4278 = vadd.f32 %v3985, %v4277
        %4279 = vmatprep.mubr.f32.mxu0 0.0
        %v4280 = vand.u32 %v296, 4294901760
        %4281 = vmatmul.mubr.f32.gmra.mrb[0].mxu0 %v4280
        %v4282 = vpop.f32.mrb[0].mxu0
        %v4283 = vadd.f32 %v3990, %v4282
        %v4284 = vpop.f32.mrb[0].mxu0
        %v4285 = vadd.f32 %v3992, %v4284
        %4286 = vmatprep.mubr.f32.mxu0 0.0
        %v4287 = vand.u32 %v299, 4294901760
        %4288 = vmatmul.mubr.f32.gmra.mrb[0].mxu0 %v4287
        %v4289 = vpop.f32.mrb[0].mxu0
        %v4290 = vadd.f32 %v3997, %v4289
        %v4291 = vpop.f32.mrb[0].mxu0
        %v4292 = vadd.f32 %v3999, %v4291
        %4293 = vmatprep.mubr.f32.mxu0 0.0
        %v4294 = vand.u32 %v302, 4294901760
        %4295 = vmatmul.mubr.f32.gmra.mrb[0].mxu0 %v4294
        %v4296 = vpop.f32.mrb[0].mxu0
        %v4297 = vadd.f32 %v4004, %v4296
        %v4298 = vpop.f32.mrb[0].mxu0
        %v4299 = vadd.f32 %v4006, %v4298
        %4300 = vmatprep.mubr.f32.mxu0 0.0
        %v4301 = vand.u32 %v305, 4294901760
        %4302 = vmatmul.mubr.f32.gmra.mrb[0].mxu0 %v4301
        %v4303 = vpop.f32.mrb[0].mxu0
        %v4304 = vadd.f32 %v4011, %v4303
        %v4305 = vpop.f32.mrb[0].mxu0
        %v4306 = vadd.f32 %v4013, %v4305
        %4307 = vmatprep.mubr.f32.mxu0 0.0
        %v4308 = vand.u32 %v308, 4294901760
        %4309 = vmatmul.mubr.f32.gmra.mrb[0].mxu0 %v4308
        %v4310 = vpop.f32.mrb[0].mxu0
        %v4311 = vadd.f32 %v4018, %v4310
        %v4312 = vpop.f32.mrb[0].mxu0
        %v4313 = vadd.f32 %v4020, %v4312
        %4314 = vmatprep.mubr.f32.mxu0 0.0
        %v4315 = vand.u32 %v311, 4294901760
        %4316 = vmatmul.mubr.f32.gmra.mrb[0].mxu0 %v4315
        %v4317 = vpop.f32.mrb[0].mxu0
        %v4318 = vadd.f32 %v4025, %v4317
        %v4319 = vpop.f32.mrb[0].mxu0
        %v4320 = vadd.f32 %v4027, %v4319
        %4321 = vmatprep.mubr.f32.mxu0 0.0
        %v4322 = vand.u32 %v314, 4294901760
        %4323 = vmatmul.mubr.f32.gmra.mrb[0].mxu0 %v4322
        %v4324 = vpop.f32.mrb[0].mxu0
        %v4325 = vadd.f32 %v4032, %v4324
        %v4326 = vpop.f32.mrb[0].mxu0
        %v4327 = vadd.f32 %v4034, %v4326
        %4328 = vmatprep.mubr.f32.mxu0 0.0
        %v4329 = vand.u32 %v317, 4294901760
        %4330 = vmatmul.mubr.f32.gmra.mrb[0].mxu0 %v4329
        %v4331 = vpop.f32.mrb[0].mxu0
        %v4332 = vadd.f32 %v4039, %v4331
        %v4333 = vpop.f32.mrb[0].mxu0
        %v4334 = vadd.f32 %v4041, %v4333
        %4335 = vmatprep.mubr.f32.mxu0 0.0
        %v4336 = vand.u32 %v320, 4294901760
        %4337 = vmatmul.mubr.f32.gmra.mrb[0].mxu0 %v4336
        %v4338 = vpop.f32.mrb[0].mxu0
        %v4339 = vadd.f32 %v4046, %v4338
        %v4340 = vpop.f32.mrb[0].mxu0
        %v4341 = vadd.f32 %v4048, %v4340
        %4342 = vmatprep.mubr.f32.mxu0 0.0
        %v4343 = vand.u32 %v323, 4294901760
        %4344 = vmatmul.mubr.f32.gmra.mrb[0].mxu0 %v4343
        %v4345 = vpop.f32.mrb[0].mxu0
        %v4346 = vadd.f32 %v4053, %v4345
        %v4347 = vpop.f32.mrb[0].mxu0
        %v4348 = vadd.f32 %v4055, %v4347
        %4349 = vmatprep.mubr.f32.mxu0 0.0
        %v4350 = vand.u32 %v326, 4294901760
        %4351 = vmatmul.mubr.f32.gmra.mrb[0].mxu0 %v4350
        %v4352 = vpop.f32.mrb[0].mxu0
        %v4353 = vadd.f32 %v4060, %v4352
        %v4354 = vpop.f32.mrb[0].mxu0
        %v4355 = vadd.f32 %v4062, %v4354
        %4356 = vmatprep.mubr.f32.mxu0 0.0
        %v4357 = vand.u32 %v329, 4294901760
        %4358 = vmatmul.mubr.f32.gmra.mrb[0].mxu0 %v4357
        %v4359 = vpop.f32.mrb[0].mxu0
        %v4360 = vadd.f32 %v4067, %v4359
        %v4361 = vpop.f32.mrb[0].mxu0
        %v4362 = vadd.f32 %v4069, %v4361
        %4363 = vdwg.mxu0
        %4364 = vst [vmem:[%s164] sm:$0xff] %v2133
        %4365 = vst [vmem:[%s164 + $0x8] sm:$0xff] %v2135
        %4366 = vst [vmem:[%s164 + $0x10] sm:$0xff] %v4143
        %4367 = vst [vmem:[%s164 + $0x18] sm:$0xff] %v4145
        %4368 = vst [vmem:[%s164 + $0x20] sm:$0xff] %v2140
        %4369 = vst [vmem:[%s164 + $0x28] sm:$0xff] %v2142
        %4370 = vst [vmem:[%s164 + $0x30] sm:$0xff] %v4150
        %4371 = vst [vmem:[%s164 + $0x38] sm:$0xff] %v4152
        %4372 = vst [vmem:[%s164 + $0x40] sm:$0xff] %v2147
        %4373 = vst [vmem:[%s164 + $0x48] sm:$0xff] %v2149
        %4374 = vst [vmem:[%s164 + $0x50] sm:$0xff] %v4157
        %4375 = vst [vmem:[%s164 + $0x58] sm:$0xff] %v4159
        %4376 = vst [vmem:[%s164 + $0x60] sm:$0xff] %v2154
        %4377 = vst [vmem:[%s164 + $0x68] sm:$0xff] %v2156
        %4378 = vst [vmem:[%s164 + $0x70] sm:$0xff] %v4164
        %4379 = vst [vmem:[%s164 + $0x78] sm:$0xff] %v4166
        %4380 = vst [vmem:[%s164 + $0x80] sm:$0xff] %v2161
        %4381 = vst [vmem:[%s164 + $0x88] sm:$0xff] %v2163
        %4382 = vst [vmem:[%s164 + $0x90] sm:$0xff] %v4171
        %4383 = vst [vmem:[%s164 + $0x98] sm:$0xff] %v4173
        %4384 = vst [vmem:[%s164 + $0xa0] sm:$0xff] %v2168
        %4385 = vst [vmem:[%s164 + $0xa8] sm:$0xff] %v2170
        %4386 = vst [vmem:[%s164 + $0xb0] sm:$0xff] %v4178
        %4387 = vst [vmem:[%s164 + $0xb8] sm:$0xff] %v4180
        %4388 = vst [vmem:[%s164 + $0xc0] sm:$0xff] %v2175
        %4389 = vst [vmem:[%s164 + $0xc8] sm:$0xff] %v2177
        %4390 = vst [vmem:[%s164 + $0xd0] sm:$0xff] %v4185
        %4391 = vst [vmem:[%s164 + $0xd8] sm:$0xff] %v4187
        %4392 = vst [vmem:[%s164 + $0xe0] sm:$0xff] %v2182
        %4393 = vst [vmem:[%s164 + $0xe8] sm:$0xff] %v2184
        %4394 = vst [vmem:[%s164 + $0xf0] sm:$0xff] %v4192
        %4395 = vst [vmem:[%s164 + $0xf8] sm:$0xff] %v4194
        %4396 = vst [vmem:[%s164 + $0x100] sm:$0xff] %v2189
        %4397 = vst [vmem:[%s164 + $0x108] sm:$0xff] %v2191
        %4398 = vst [vmem:[%s164 + $0x110] sm:$0xff] %v4199
        %4399 = vst [vmem:[%s164 + $0x118] sm:$0xff] %v4201
        %4400 = vst [vmem:[%s164 + $0x120] sm:$0xff] %v2196
        %4401 = vst [vmem:[%s164 + $0x128] sm:$0xff] %v2198
        %4402 = vst [vmem:[%s164 + $0x130] sm:$0xff] %v4206
        %4403 = vst [vmem:[%s164 + $0x138] sm:$0xff] %v4208
        %4404 = vst [vmem:[%s164 + $0x140] sm:$0xff] %v2203
        %4405 = vst [vmem:[%s164 + $0x148] sm:$0xff] %v2205
        %4406 = vst [vmem:[%s164 + $0x150] sm:$0xff] %v4213
        %4407 = vst [vmem:[%s164 + $0x158] sm:$0xff] %v4215
        %4408 = vst [vmem:[%s164 + $0x160] sm:$0xff] %v2210
        %4409 = vst [vmem:[%s164 + $0x168] sm:$0xff] %v2212
        %4410 = vst [vmem:[%s164 + $0x170] sm:$0xff] %v4220
        %4411 = vst [vmem:[%s164 + $0x178] sm:$0xff] %v4222
        %4412 = vst [vmem:[%s164 + $0x180] sm:$0xff] %v2217
        %4413 = vst [vmem:[%s164 + $0x188] sm:$0xff] %v2219
        %4414 = vst [vmem:[%s164 + $0x190] sm:$0xff] %v4227
        %4415 = vst [vmem:[%s164 + $0x198] sm:$0xff] %v4229
        %4416 = vst [vmem:[%s164 + $0x1a0] sm:$0xff] %v2224
        %4417 = vst [vmem:[%s164 + $0x1a8] sm:$0xff] %v2226
        %4418 = vst [vmem:[%s164 + $0x1b0] sm:$0xff] %v4234
        %4419 = vst [vmem:[%s164 + $0x1b8] sm:$0xff] %v4236
        %4420 = vst [vmem:[%s164 + $0x1c0] sm:$0xff] %v2231
        %4421 = vst [vmem:[%s164 + $0x1c8] sm:$0xff] %v2233
        %4422 = vst [vmem:[%s164 + $0x1d0] sm:$0xff] %v4241
        %4423 = vst [vmem:[%s164 + $0x1d8] sm:$0xff] %v4243
        %4424 = vst [vmem:[%s164 + $0x1e0] sm:$0xff] %v2238
        %4425 = vst [vmem:[%s164 + $0x1e8] sm:$0xff] %v2240
        %4426 = vst [vmem:[%s164 + $0x1f0] sm:$0xff] %v4248
        %4427 = vst [vmem:[%s164 + $0x1f8] sm:$0xff] %v4250
        %4428 = vst [vmem:[%s164 + $0x200] sm:$0xff] %v2245
        %4429 = vst [vmem:[%s164 + $0x208] sm:$0xff] %v2247
        %4430 = vst [vmem:[%s164 + $0x210] sm:$0xff] %v4255
        %4431 = vst [vmem:[%s164 + $0x218] sm:$0xff] %v4257
        %4432 = vst [vmem:[%s164 + $0x220] sm:$0xff] %v2252
        %4433 = vst [vmem:[%s164 + $0x228] sm:$0xff] %v2254
        %4434 = vst [vmem:[%s164 + $0x230] sm:$0xff] %v4262
        %4435 = vst [vmem:[%s164 + $0x238] sm:$0xff] %v4264
        %4436 = vst [vmem:[%s164 + $0x240] sm:$0xff] %v2259
        %4437 = vst [vmem:[%s164 + $0x248] sm:$0xff] %v2261
        %4438 = vst [vmem:[%s164 + $0x250] sm:$0xff] %v4269
        %4439 = vst [vmem:[%s164 + $0x258] sm:$0xff] %v4271
        %4440 = vst [vmem:[%s164 + $0x260] sm:$0xff] %v2266
        %4441 = vst [vmem:[%s164 + $0x268] sm:$0xff] %v2268
        %4442 = vst [vmem:[%s164 + $0x270] sm:$0xff] %v4276
        %4443 = vst [vmem:[%s164 + $0x278] sm:$0xff] %v4278
        %4444 = vst [vmem:[%s164 + $0x280] sm:$0xff] %v2273
        %4445 = vst [vmem:[%s164 + $0x288] sm:$0xff] %v2275
        %4446 = vst [vmem:[%s164 + $0x290] sm:$0xff] %v4283
        %4447 = vst [vmem:[%s164 + $0x298] sm:$0xff] %v4285
        %4448 = vst [vmem:[%s164 + $0x2a0] sm:$0xff] %v2280
        %4449 = vst [vmem:[%s164 + $0x2a8] sm:$0xff] %v2282
        %4450 = vst [vmem:[%s164 + $0x2b0] sm:$0xff] %v4290
        %4451 = vst [vmem:[%s164 + $0x2b8] sm:$0xff] %v4292
        %4452 = vst [vmem:[%s164 + $0x2c0] sm:$0xff] %v2287
        %4453 = vst [vmem:[%s164 + $0x2c8] sm:$0xff] %v2289
        %4454 = vst [vmem:[%s164 + $0x2d0] sm:$0xff] %v4297
        %4455 = vst [vmem:[%s164 + $0x2d8] sm:$0xff] %v4299
        %4456 = vst [vmem:[%s164 + $0x2e0] sm:$0xff] %v2294
        %4457 = vst [vmem:[%s164 + $0x2e8] sm:$0xff] %v2296
        %4458 = vst [vmem:[%s164 + $0x2f0] sm:$0xff] %v4304
        %4459 = vst [vmem:[%s164 + $0x2f8] sm:$0xff] %v4306
        %4460 = vst [vmem:[%s164 + $0x300] sm:$0xff] %v2301
        %4461 = vst [vmem:[%s164 + $0x308] sm:$0xff] %v2303
        %4462 = vst [vmem:[%s164 + $0x310] sm:$0xff] %v4311
        %4463 = vst [vmem:[%s164 + $0x318] sm:$0xff] %v4313
        %4464 = vst [vmem:[%s164 + $0x320] sm:$0xff] %v2308
        %4465 = vst [vmem:[%s164 + $0x328] sm:$0xff] %v2310
        %4466 = vst [vmem:[%s164 + $0x330] sm:$0xff] %v4318
        %4467 = vst [vmem:[%s164 + $0x338] sm:$0xff] %v4320
        %4468 = vst [vmem:[%s164 + $0x340] sm:$0xff] %v2315
        %4469 = vst [vmem:[%s164 + $0x348] sm:$0xff] %v2317
        %4470 = vst [vmem:[%s164 + $0x350] sm:$0xff] %v4325
        %4471 = vst [vmem:[%s164 + $0x358] sm:$0xff] %v4327
        %4472 = vst [vmem:[%s164 + $0x360] sm:$0xff] %v2322
        %4473 = vst [vmem:[%s164 + $0x368] sm:$0xff] %v2324
        %4474 = vst [vmem:[%s164 + $0x370] sm:$0xff] %v4332
        %4475 = vst [vmem:[%s164 + $0x378] sm:$0xff] %v4334
        %4476 = vst [vmem:[%s164 + $0x380] sm:$0xff] %v2329
        %4477 = vst [vmem:[%s164 + $0x388] sm:$0xff] %v2331
        %4478 = vst [vmem:[%s164 + $0x390] sm:$0xff] %v4339
        %4479 = vst [vmem:[%s164 + $0x398] sm:$0xff] %v4341
        %4480 = vst [vmem:[%s164 + $0x3a0] sm:$0xff] %v2336
        %4481 = vst [vmem:[%s164 + $0x3a8] sm:$0xff] %v2338
        %4482 = vst [vmem:[%s164 + $0x3b0] sm:$0xff] %v4346
        %4483 = vst [vmem:[%s164 + $0x3b8] sm:$0xff] %v4348
        %4484 = vst [vmem:[%s164 + $0x3c0] sm:$0xff] %v2343
        %4485 = vst [vmem:[%s164 + $0x3c8] sm:$0xff] %v2345
        %4486 = vst [vmem:[%s164 + $0x3d0] sm:$0xff] %v4353
        %4487 = vst [vmem:[%s164 + $0x3d8] sm:$0xff] %v4355
        %4488 = vst [vmem:[%s164 + $0x3e0] sm:$0xff] %v2350
        %4489 = vst [vmem:[%s164 + $0x3e8] sm:$0xff] %v2352
        %4490 = vst [vmem:[%s164 + $0x3f0] sm:$0xff] %v4360
        %4491 = vst [vmem:[%s164 + $0x3f8] sm:$0xff] %v4362
        %s4492 = sand.u32 %s93, 1
        %s4493 = scalar_lea.sflag [#allocation3], %s4492
        %s4494 = sand.u32 %s93, 1
        %s4495 = smul.addr %s4494, 1024
        %s4496 = scalar_lea.vmem [#allocation2], %s4495
        // Predicated region
        $region33: #{tpu_custom_call.1} parent=31 // pred_check
          %p4497 = pneg %p103
        $region34: #{tpu_custom_call.1} parent=31 // pred_check_branch
          %4499 = sbr.rel (%p4497) target = $region36
        $region35: #{tpu_custom_call.1} parent=31 // pred_region
          %s4500 = smul.u32 32, %s17
          %s4502 = ssub.s32 16384, 16384
          %4503 = vsyncadd %s4493, %s4502
          %s4504 = smul.addr %s4500, 4
          %s4505 = smul.addr %s4504, 128
          %s4506 = scalar_lea.hbm %s3, %s4505
          %s4507 = sshll.u32 %s4496, 4
          %s4508 = int_to_ptr.vmem [resolvable:$true] %s4507
          %4513 = dma.vmem_to_hbm [thread:$0]  %s4508, 16384, %s4506, %s4493, 512, 512, 32
        $region36: #{tpu_custom_call.1} parent=31 // pred_fallthru
          _
      $region32: #{tpu_custom_call.1} parent=5 // pred_fallthru
        _
      %p4514 = scmp.le.s32.totalorder 2, %s12
      // Predicated region
      $region37: #{tpu_custom_call.1} parent=5 // pred_check
        %p4515 = pneg %p4514
      $region38: #{tpu_custom_call.1} parent=5 // pred_check_branch
        %4517 = sbr.rel (%p4515) target = $region40
      $region39: #{tpu_custom_call.1} parent=5 // pred_region
        %s4518 = ssub.s32 %s12, 2
        // Predicated region
        $region41: #{tpu_custom_call.1} parent=39 // pred_check
          %p4519 = pneg %p109
        $region42: #{tpu_custom_call.1} parent=39 // pred_check_branch
          %4521 = sbr.rel (%p4519) target = $region44
        $region43: #{tpu_custom_call.1} parent=39 // pred_region
          %s4522 = sand.u32 %s94, 1
          %s4523 = scalar_lea.sflag [#allocation3], %s4522
          %s4524 = sand.u32 %s94, 1
          %s4525 = smul.addr %s4524, 1024
          %s4526 = scalar_lea.vmem [#allocation2], %s4525
          %4527 = dma.done %s4523, 16384
        $region44: #{tpu_custom_call.1} parent=39 // pred_fallthru
          _
      $region40: #{tpu_custom_call.1} parent=5 // pred_fallthru
        _
    $region6: #{tpu_custom_call.1} parent=1 // loop_footer
      %s16 = sadd.s32 1, %s12
    $region7: #{tpu_custom_call.1} parent=1 // loop_footer_branch
      %11 = sbr.rel target = $region3
    $region8: #{tpu_custom_call.1} parent=1 // loop_exit
      _
    %4528 = vsyncpa [#allocation3], 1
    %s4529 = scalar_lea.sflag [#allocation3], 1
    %4530 = vsyncpa %s4529, 1

</llo_original>
